<compile_context>
chip_gen: v7x
topology: tpu7x:2x2x1
jax: 0.10.0
libtpu: 0.0.40
codegen_flags: <defaults>
</compile_context>

<pallas_src>
import functools
import math

import jax
import jax.numpy as jnp
from jax.experimental import pallas as pl
from jax.experimental.pallas import tpu as pltpu


# ----------------------------------------------------------------------------
# Fused kernel (one grid step == one block of Bb batch elements)
# ----------------------------------------------------------------------------
def _fused_kernel(patches_ref, pos_ref, cw_ref, cb_ref,
                  wq_ref, bq_ref, wk_ref, bk_ref, wv_ref, bv_ref,
                  wo_ref, bo_ref, w1_ref, b1_ref, w2_ref, b2_ref,
                  ln_ref, up_ref, o_ref, *, block_b, n_tokens, nhead, dh,
                  eps, scale):
    f32 = jnp.float32
    bf16 = jnp.bfloat16
    N = n_tokens

    def layer_norm(x, g, b):
        mu = jnp.mean(x, axis=-1, keepdims=True)
        var = jnp.mean((x - mu) ** 2, axis=-1, keepdims=True)
        return (x - mu) * jax.lax.rsqrt(var + eps) * g + b

    # --- patch embedding: ONE bf16 MXU matmul for the whole batch block -----
    p_all = patches_ref[...].reshape(block_b * 3 * N, -1)        # (Bb*3N, Kp) bf16
    e_all = jnp.dot(p_all, cw_ref[...],
                    preferred_element_type=f32) + cb_ref[...]    # (Bb*3N, D) f32
    pos = pos_ref[...]                                           # (N, D) f32

    wq = wq_ref[...]; wk = wk_ref[...]; wv = wv_ref[...]; wo = wo_ref[...]
    bq = bq_ref[...]; bk = bk_ref[...]; bv = bv_ref[...]; bo = bo_ref[...]
    w1 = w1_ref[...]; b1 = b1_ref[...]; w2 = w2_ref[...]; b2 = b2_ref[...]
    ln = ln_ref[...]
    up = up_ref[...]                                             # (N, H*W) bf16

    for bi in range(block_b):                                    # unrolled at trace time
        base = bi * 3 * N
        e_x = e_all[base:base + N, :] + pos                      # q stream
        e_pre = e_all[base + N:base + 2 * N, :] + pos            # k stream
        e_hm = e_all[base + 2 * N:base + 3 * N, :]               # v stream (no pos)

        # --- full-width Q/K/V projections (bf16 MXU, f32 accumulate) -------
        q = jnp.dot(e_x.astype(bf16), wq, preferred_element_type=f32) + bq
        k = jnp.dot(e_pre.astype(bf16), wk, preferred_element_type=f32) + bk
        v = jnp.dot(e_hm.astype(bf16), wv, preferred_element_type=f32) + bv

        # --- multi-head cross attention: heads = static dh-wide lane slices -
        heads = []
        for h in range(nhead):
            lo = h * dh
            qh = q[:, lo:lo + dh]
            kh = k[:, lo:lo + dh]
            vh = v[:, lo:lo + dh]
            s = jax.lax.dot_general(qh.astype(bf16), kh.astype(bf16),
                                    (((1,), (1,)), ((), ())),
                                    preferred_element_type=f32) * scale
            s = s - jnp.max(s, axis=-1, keepdims=True)
            p = jnp.exp(s)
            p = p / jnp.sum(p, axis=-1, keepdims=True)           # exact softmax
            heads.append(jnp.dot(p.astype(bf16), vh.astype(bf16),
                                 preferred_element_type=f32))
        o_heads = jnp.concatenate(heads, axis=-1)                # (N, D) f32
        attn = jnp.dot(o_heads.astype(bf16), wo,
                       preferred_element_type=f32) + bo

        # --- post-norm encoder layer (dropout = identity in eval mode) -----
        src = layer_norm(e_x + attn, ln[0:1, :], ln[1:2, :])
        ff = jnp.dot(src.astype(bf16), w1, preferred_element_type=f32) + b1
        ff = jnp.maximum(ff, 0.0)
        ff = jnp.dot(ff.astype(bf16), w2, preferred_element_type=f32) + b2
        src = layer_norm(src + ff, ln[2:3, :], ln[3:4, :])
        src = layer_norm(src, ln[4:5, :], ln[5:6, :])            # encoder final norm

        # --- tokens -> (D, H*W): bilinear upsample as transposed-LHS matmul -
        # contraction over token axis (no in-kernel transpose / vxpose)
        o_ref[bi] = jax.lax.dot_general(
            src.astype(bf16), up, (((0,), (0,)), ((), ())),
            preferred_element_type=f32).astype(o_ref.dtype)


# ----------------------------------------------------------------------------
# Parameters / helpers
# ----------------------------------------------------------------------------
def make_params(key, c, h, w, embedding_dim, kernel_stride, nhead=4, dim_ff=64):
    assert w % kernel_stride == 0 and h % kernel_stride == 0
    assert embedding_dim % nhead == 0
    num_patches = (w // kernel_stride) * (h // kernel_stride)
    D = embedding_dim
    ks = kernel_stride
    keys = jax.random.split(key, 8)
    std = 0.02
    p = {
        "conv_w": jax.random.normal(keys[0], (D, c, ks, ks), jnp.float32) * std,
        "conv_b": jnp.zeros((D,), jnp.float32),
        "pos": jax.random.normal(keys[1], (1, num_patches, D), jnp.float32) * std,
        "wq": jax.random.normal(keys[2], (D, D), jnp.float32) * std,
        "wk": jax.random.normal(keys[3], (D, D), jnp.float32) * std,
        "wv": jax.random.normal(keys[4], (D, D), jnp.float32) * std,
        "bq": jnp.zeros((D,), jnp.float32),
        "bk": jnp.zeros((D,), jnp.float32),
        "bv": jnp.zeros((D,), jnp.float32),
        "wo": jax.random.normal(keys[5], (D, D), jnp.float32) * std,
        "bo": jnp.zeros((D,), jnp.float32),
        "w1": jax.random.normal(keys[6], (D, dim_ff), jnp.float32) * std,
        "b1": jnp.zeros((dim_ff,), jnp.float32),
        "w2": jax.random.normal(keys[7], (dim_ff, D), jnp.float32) * std,
        "b2": jnp.zeros((D,), jnp.float32),
        "norm1_g": jnp.ones((D,), jnp.float32),
        "norm1_b": jnp.zeros((D,), jnp.float32),
        "norm2_g": jnp.ones((D,), jnp.float32),
        "norm2_b": jnp.zeros((D,), jnp.float32),
        "normf_g": jnp.ones((D,), jnp.float32),
        "normf_b": jnp.zeros((D,), jnp.float32),
    }
    cfg = dict(embedding_dim=D, kernel_stride=ks, nhead=nhead,
               num_patches=num_patches, dim_ff=dim_ff)
    return p, cfg


def _interp_matrix(s_in, s_out):
    """Bilinear interpolation matrix (align_corners=True), shape (s_out, s_in)."""
    if s_in == 1:
        return jnp.ones((s_out, 1), jnp.float32)
    scale = (s_in - 1) / (s_out - 1)
    pos = jnp.arange(s_out, dtype=jnp.float32) * scale
    i0 = jnp.clip(jnp.floor(pos).astype(jnp.int32), 0, s_in - 2)
    frac = pos - i0.astype(jnp.float32)
    A = jnp.zeros((s_out, s_in), jnp.float32)
    rows = jnp.arange(s_out)
    A = A.at[rows, i0].set(1.0 - frac)
    A = A.at[rows, i0 + 1].add(frac)
    return A


def _pick_block_b(B, n_tokens):
    """Largest divisor of B no larger than what gives ~128 rows of 3N tokens."""
    want = max(1, -(-128 // (3 * n_tokens)))     # cdiv(128, 3N)
    bb = min(B, want)
    while B % bb:
        bb -= 1
    return bb


# ----------------------------------------------------------------------------
# Forward pass
# ----------------------------------------------------------------------------
def temporal_fusion_forward(params, cfg, x, x_pre, hm_pre, block_b=None):
    B, C, H, W = x.shape
    D = cfg["embedding_dim"]
    ks = cfg["kernel_stride"]
    nhead = cfg["nhead"]
    Fdim = cfg["dim_ff"]
    hp, wp = H // ks, W // ks
    N = hp * wp
    Kp = C * ks * ks
    dh = D // nhead
    scale = 1.0 / math.sqrt(dh)
    bf16 = jnp.bfloat16

    Bb = _pick_block_b(B, N) if block_b is None else block_b
    assert B % Bb == 0
    grid = (B // Bb,)

    # --- cheap XLA-side layout prep (im2col patches + param reshapes) -------
    def patches(t):
        return (t.reshape(B, C, hp, ks, wp, ks)
                 .transpose(0, 2, 4, 1, 3, 5)
                 .reshape(B, N, Kp))

    p_all = jnp.concatenate([patches(x), patches(x_pre), patches(hm_pre)],
                            axis=1).astype(bf16)                   # (B, 3N, Kp)

    cw = params["conv_w"].reshape(D, Kp).T.astype(bf16)            # (Kp, D)
    cb = params["conv_b"].reshape(1, D)
    pos = params["pos"].reshape(N, D)
    wq = params["wq"].astype(bf16)
    wk = params["wk"].astype(bf16)
    wv = params["wv"].astype(bf16)
    wo = params["wo"].astype(bf16)
    bq = params["bq"].reshape(1, D)
    bk = params["bk"].reshape(1, D)
    bv = params["bv"].reshape(1, D)
    bo = params["bo"].reshape(1, D)
    w1 = params["w1"].astype(bf16)
    b1 = params["b1"].reshape(1, Fdim)
    w2 = params["w2"].astype(bf16)
    b2 = params["b2"].reshape(1, D)
    lnp = jnp.stack([params["norm1_g"], params["norm1_b"],
                     params["norm2_g"], params["norm2_b"],
                     params["normf_g"], params["normf_b"]], axis=0)  # (6, D)

    # bilinear upsample (align_corners=True) as one matrix: kron(A_h, A_w)^T
    up = jnp.kron(_interp_matrix(hp, H),
                  _interp_matrix(wp, W)).T.astype(bf16)            # (N, H*W)

    def rep(shape):   # grid-invariant (replicated) operand
        nd = len(shape)
        return pl.BlockSpec(shape, lambda b, _nd=nd: (0,) * _nd)

    out = pl.pallas_call(
        functools.partial(_fused_kernel, block_b=Bb, n_tokens=N, nhead=nhead,
                          dh=dh, eps=1e-5, scale=scale),
        out_shape=jax.ShapeDtypeStruct((B, D, H * W), jnp.float32),
        grid=grid,
        in_specs=[
            pl.BlockSpec((Bb, 3 * N, Kp), lambda b: (b, 0, 0)),    # patches (bf16)
            rep((N, D)),                                           # pos
            rep((Kp, D)), rep((1, D)),                             # conv w / b
            rep((D, D)), rep((1, D)),                              # wq / bq
            rep((D, D)), rep((1, D)),                              # wk / bk
            rep((D, D)), rep((1, D)),                              # wv / bv
            rep((D, D)), rep((1, D)),                              # wo / bo
            rep((D, Fdim)), rep((1, Fdim)),                        # w1 / b1
            rep((Fdim, D)), rep((1, D)),                           # w2 / b2
            rep((6, D)),                                           # LN params
            rep((N, H * W)),                                       # upsample matrix (bf16)
        ],
        out_specs=pl.BlockSpec((Bb, D, H * W), lambda b: (b, 0, 0)),
        compiler_params=pltpu.CompilerParams(
            dimension_semantics=("parallel",),
            vmem_limit_bytes=32 * 1024 * 1024),
    )(p_all, pos, cw, cb, wq, bq, wk, bk, wv, bv, wo, bo,
      w1, b1, w2, b2, lnp, up)

    return out.reshape(B, D, H, W)


# ----------------------------------------------------------------------------
# main
# ----------------------------------------------------------------------------
if __name__ == "__main__":
    B, C, H, W = 2, 4, 16, 16
    embedding_dim = 32
    kernel_stride = 4

    key = jax.random.PRNGKey(0)
    kp, kx, kxp, khm = jax.random.split(key, 4)
    params, cfg = make_params(kp, C, H, W, embedding_dim, kernel_stride)

    x = jax.random.normal(kx, (B, C, H, W), jnp.float32)
    x_pre = jax.random.normal(kxp, (B, C, H, W), jnp.float32)
    hm_pre = jax.random.normal(khm, (B, C, H, W), jnp.float32)

    out = temporal_fusion_forward(params, cfg, x, x_pre, hm_pre)
    out = jax.block_until_ready(out)
    assert out.shape == (B, embedding_dim, H, W), out.shape
    assert bool(jnp.all(jnp.isfinite(out)))
    print("KERNEL_OK")
</pallas_src>

<mosaic_0001>
module attributes {stable_mosaic.version = 11 : i64} {
  func.func @_fused_kernel(%arg0: i32, %arg1: memref<2x48x64xbf16, #tpu.memory_space<vmem>>, %arg2: memref<16x32xf32, #tpu.memory_space<vmem>>, %arg3: memref<64x32xbf16, #tpu.memory_space<vmem>>, %arg4: memref<1x32xf32, #tpu.memory_space<vmem>>, %arg5: memref<32x32xbf16, #tpu.memory_space<vmem>>, %arg6: memref<1x32xf32, #tpu.memory_space<vmem>>, %arg7: memref<32x32xbf16, #tpu.memory_space<vmem>>, %arg8: memref<1x32xf32, #tpu.memory_space<vmem>>, %arg9: memref<32x32xbf16, #tpu.memory_space<vmem>>, %arg10: memref<1x32xf32, #tpu.memory_space<vmem>>, %arg11: memref<32x32xbf16, #tpu.memory_space<vmem>>, %arg12: memref<1x32xf32, #tpu.memory_space<vmem>>, %arg13: memref<32x64xbf16, #tpu.memory_space<vmem>>, %arg14: memref<1x64xf32, #tpu.memory_space<vmem>>, %arg15: memref<64x32xbf16, #tpu.memory_space<vmem>>, %arg16: memref<1x32xf32, #tpu.memory_space<vmem>>, %arg17: memref<6x32xf32, #tpu.memory_space<vmem>>, %arg18: memref<16x256xbf16, #tpu.memory_space<vmem>>, %arg19: memref<2x32x256xf32, #tpu.memory_space<vmem>>) attributes {dimension_semantics = [#tpu.dimension_semantics<parallel>], iteration_bounds = array<i64: 1>, scalar_prefetch = 0 : i64, scratch_operands = 0 : i64, tpu.core_type = #tpu.core_type<tc>, window_params = [{transform_indices = @transform_0, window_bounds = array<i64: 2, 48, 64>}, {pipeline_mode = #tpu.pipeline_mode<synchronous>, transform_indices = @transform_1, window_bounds = array<i64: 16, 32>}, {pipeline_mode = #tpu.pipeline_mode<synchronous>, transform_indices = @transform_2, window_bounds = array<i64: 64, 32>}, {pipeline_mode = #tpu.pipeline_mode<synchronous>, transform_indices = @transform_3, window_bounds = array<i64: 1, 32>}, {pipeline_mode = #tpu.pipeline_mode<synchronous>, transform_indices = @transform_4, window_bounds = array<i64: 32, 32>}, {pipeline_mode = #tpu.pipeline_mode<synchronous>, transform_indices = @transform_5, window_bounds = array<i64: 1, 32>}, {pipeline_mode = #tpu.pipeline_mode<synchronous>, transform_indices = @transform_6, window_bounds = array<i64: 32, 32>}, {pipeline_mode = #tpu.pipeline_mode<synchronous>, transform_indices = @transform_7, window_bounds = array<i64: 1, 32>}, {pipeline_mode = #tpu.pipeline_mode<synchronous>, transform_indices = @transform_8, window_bounds = array<i64: 32, 32>}, {pipeline_mode = #tpu.pipeline_mode<synchronous>, transform_indices = @transform_9, window_bounds = array<i64: 1, 32>}, {pipeline_mode = #tpu.pipeline_mode<synchronous>, transform_indices = @transform_10, window_bounds = array<i64: 32, 32>}, {pipeline_mode = #tpu.pipeline_mode<synchronous>, transform_indices = @transform_11, window_bounds = array<i64: 1, 32>}, {pipeline_mode = #tpu.pipeline_mode<synchronous>, transform_indices = @transform_12, window_bounds = array<i64: 32, 64>}, {pipeline_mode = #tpu.pipeline_mode<synchronous>, transform_indices = @transform_13, window_bounds = array<i64: 1, 64>}, {pipeline_mode = #tpu.pipeline_mode<synchronous>, transform_indices = @transform_14, window_bounds = array<i64: 64, 32>}, {pipeline_mode = #tpu.pipeline_mode<synchronous>, transform_indices = @transform_15, window_bounds = array<i64: 1, 32>}, {pipeline_mode = #tpu.pipeline_mode<synchronous>, transform_indices = @transform_16, window_bounds = array<i64: 6, 32>}, {pipeline_mode = #tpu.pipeline_mode<synchronous>, transform_indices = @transform_17, window_bounds = array<i64: 16, 256>}, {transform_indices = @transform_18, window_bounds = array<i64: 2, 32, 256>}]} {
    %c0 = arith.constant 0 : index
    %c0_0 = arith.constant 0 : index
    %c0_1 = arith.constant 0 : index
    %0 = vector.load %arg1[%c0, %c0_0, %c0_1] : memref<2x48x64xbf16, #tpu.memory_space<vmem>>, vector<2x48x64xbf16>
    %1 = vector.shape_cast %0 : vector<2x48x64xbf16> to vector<96x64xbf16>
    %c0_2 = arith.constant 0 : index
    %c0_3 = arith.constant 0 : index
    %2 = vector.load %arg3[%c0_2, %c0_3] : memref<64x32xbf16, #tpu.memory_space<vmem>>, vector<64x32xbf16>
    %cst = arith.constant dense<0.000000e+00> : vector<96x32xf32>
    %3 = tpu.matmul %1, %2, %cst {dimension_numbers = #tpu.dot_dimension_numbers<[1], [0], [0], [1], [0, 0, 1, 1], [], []>} : vector<96x64xbf16>, vector<64x32xbf16>, vector<96x32xf32> -> vector<96x32xf32>
    %c0_4 = arith.constant 0 : index
    %c0_5 = arith.constant 0 : index
    %4 = vector.load %arg4[%c0_4, %c0_5] : memref<1x32xf32, #tpu.memory_space<vmem>>, vector<1x32xf32>
    %5 = vector.broadcast %4 : vector<1x32xf32> to vector<96x32xf32>
    %6 = arith.addf %3, %5 : vector<96x32xf32>
    %c0_6 = arith.constant 0 : index
    %c0_7 = arith.constant 0 : index
    %7 = vector.load %arg2[%c0_6, %c0_7] : memref<16x32xf32, #tpu.memory_space<vmem>>, vector<16x32xf32>
    %c0_8 = arith.constant 0 : index
    %c0_9 = arith.constant 0 : index
    %8 = vector.load %arg5[%c0_8, %c0_9] : memref<32x32xbf16, #tpu.memory_space<vmem>>, vector<32x32xbf16>
    %c0_10 = arith.constant 0 : index
    %c0_11 = arith.constant 0 : index
    %9 = vector.load %arg7[%c0_10, %c0_11] : memref<32x32xbf16, #tpu.memory_space<vmem>>, vector<32x32xbf16>
    %c0_12 = arith.constant 0 : index
    %c0_13 = arith.constant 0 : index
    %10 = vector.load %arg9[%c0_12, %c0_13] : memref<32x32xbf16, #tpu.memory_space<vmem>>, vector<32x32xbf16>
    %c0_14 = arith.constant 0 : index
    %c0_15 = arith.constant 0 : index
    %11 = vector.load %arg11[%c0_14, %c0_15] : memref<32x32xbf16, #tpu.memory_space<vmem>>, vector<32x32xbf16>
    %c0_16 = arith.constant 0 : index
    %c0_17 = arith.constant 0 : index
    %12 = vector.load %arg6[%c0_16, %c0_17] : memref<1x32xf32, #tpu.memory_space<vmem>>, vector<1x32xf32>
    %c0_18 = arith.constant 0 : index
    %c0_19 = arith.constant 0 : index
    %13 = vector.load %arg8[%c0_18, %c0_19] : memref<1x32xf32, #tpu.memory_space<vmem>>, vector<1x32xf32>
    %c0_20 = arith.constant 0 : index
    %c0_21 = arith.constant 0 : index
    %14 = vector.load %arg10[%c0_20, %c0_21] : memref<1x32xf32, #tpu.memory_space<vmem>>, vector<1x32xf32>
    %c0_22 = arith.constant 0 : index
    %c0_23 = arith.constant 0 : index
    %15 = vector.load %arg12[%c0_22, %c0_23] : memref<1x32xf32, #tpu.memory_space<vmem>>, vector<1x32xf32>
    %c0_24 = arith.constant 0 : index
    %c0_25 = arith.constant 0 : index
    %16 = vector.load %arg13[%c0_24, %c0_25] : memref<32x64xbf16, #tpu.memory_space<vmem>>, vector<32x64xbf16>
    %c0_26 = arith.constant 0 : index
    %c0_27 = arith.constant 0 : index
    %17 = vector.load %arg14[%c0_26, %c0_27] : memref<1x64xf32, #tpu.memory_space<vmem>>, vector<1x64xf32>
    %c0_28 = arith.constant 0 : index
    %c0_29 = arith.constant 0 : index
    %18 = vector.load %arg15[%c0_28, %c0_29] : memref<64x32xbf16, #tpu.memory_space<vmem>>, vector<64x32xbf16>
    %c0_30 = arith.constant 0 : index
    %c0_31 = arith.constant 0 : index
    %19 = vector.load %arg16[%c0_30, %c0_31] : memref<1x32xf32, #tpu.memory_space<vmem>>, vector<1x32xf32>
    %c0_32 = arith.constant 0 : index
    %c0_33 = arith.constant 0 : index
    %20 = vector.load %arg17[%c0_32, %c0_33] : memref<6x32xf32, #tpu.memory_space<vmem>>, vector<6x32xf32>
    %c0_34 = arith.constant 0 : index
    %c0_35 = arith.constant 0 : index
    %21 = vector.load %arg18[%c0_34, %c0_35] : memref<16x256xbf16, #tpu.memory_space<vmem>>, vector<16x256xbf16>
    %22 = vector.extract_strided_slice %6 {offsets = [0, 0], sizes = [16, 32], strides = [1, 1]} : vector<96x32xf32> to vector<16x32xf32>
    %23 = arith.addf %22, %7 : vector<16x32xf32>
    %24 = vector.extract_strided_slice %6 {offsets = [16, 0], sizes = [16, 32], strides = [1, 1]} : vector<96x32xf32> to vector<16x32xf32>
    %25 = arith.addf %24, %7 : vector<16x32xf32>
    %26 = vector.extract_strided_slice %6 {offsets = [32, 0], sizes = [16, 32], strides = [1, 1]} : vector<96x32xf32> to vector<16x32xf32>
    %27 = arith.truncf %23 : vector<16x32xf32> to vector<16x32xbf16>
    %cst_36 = arith.constant dense<0.000000e+00> : vector<16x32xf32>
    %28 = tpu.matmul %27, %8, %cst_36 {dimension_numbers = #tpu.dot_dimension_numbers<[1], [0], [0], [1], [0, 0, 1, 1], [], []>} : vector<16x32xbf16>, vector<32x32xbf16>, vector<16x32xf32> -> vector<16x32xf32>
    %29 = vector.broadcast %12 : vector<1x32xf32> to vector<16x32xf32>
    %30 = arith.addf %28, %29 : vector<16x32xf32>
    %31 = arith.truncf %25 : vector<16x32xf32> to vector<16x32xbf16>
    %cst_37 = arith.constant dense<0.000000e+00> : vector<16x32xf32>
    %32 = tpu.matmul %31, %9, %cst_37 {dimension_numbers = #tpu.dot_dimension_numbers<[1], [0], [0], [1], [0, 0, 1, 1], [], []>} : vector<16x32xbf16>, vector<32x32xbf16>, vector<16x32xf32> -> vector<16x32xf32>
    %33 = vector.broadcast %13 : vector<1x32xf32> to vector<16x32xf32>
    %34 = arith.addf %32, %33 : vector<16x32xf32>
    %35 = arith.truncf %26 : vector<16x32xf32> to vector<16x32xbf16>
    %cst_38 = arith.constant dense<0.000000e+00> : vector<16x32xf32>
    %36 = tpu.matmul %35, %10, %cst_38 {dimension_numbers = #tpu.dot_dimension_numbers<[1], [0], [0], [1], [0, 0, 1, 1], [], []>} : vector<16x32xbf16>, vector<32x32xbf16>, vector<16x32xf32> -> vector<16x32xf32>
    %37 = vector.broadcast %14 : vector<1x32xf32> to vector<16x32xf32>
    %38 = arith.addf %36, %37 : vector<16x32xf32>
    %39 = vector.extract_strided_slice %30 {offsets = [0, 0], sizes = [16, 8], strides = [1, 1]} : vector<16x32xf32> to vector<16x8xf32>
    %40 = vector.extract_strided_slice %34 {offsets = [0, 0], sizes = [16, 8], strides = [1, 1]} : vector<16x32xf32> to vector<16x8xf32>
    %41 = vector.extract_strided_slice %38 {offsets = [0, 0], sizes = [16, 8], strides = [1, 1]} : vector<16x32xf32> to vector<16x8xf32>
    %42 = arith.truncf %39 : vector<16x8xf32> to vector<16x8xbf16>
    %43 = arith.truncf %40 : vector<16x8xf32> to vector<16x8xbf16>
    %cst_39 = arith.constant dense<0.000000e+00> : vector<16x16xf32>
    %44 = tpu.matmul %42, %43, %cst_39 {dimension_numbers = #tpu.dot_dimension_numbers<[1], [1], [0], [0], [0, 0, 1, 0], [], []>} : vector<16x8xbf16>, vector<16x8xbf16>, vector<16x16xf32> -> vector<16x16xf32>
    %cst_40 = arith.constant 0.353553385 : f32
    %45 = vector.broadcast %cst_40 : f32 to vector<16x16xf32>
    %46 = arith.mulf %44, %45 : vector<16x16xf32>
    %cst_41 = arith.constant dense<0xFF800000> : vector<16xf32>
    %47 = vector.multi_reduction <maximumf>, %46, %cst_41 [1] : vector<16x16xf32> to vector<16xf32>
    %48 = vector.shape_cast %47 : vector<16xf32> to vector<16x1xf32>
    %49 = vector.broadcast %48 : vector<16x1xf32> to vector<16x16xf32>
    %50 = arith.subf %46, %49 : vector<16x16xf32>
    %51 = math.exp %50 : vector<16x16xf32>
    %cst_42 = arith.constant dense<0.000000e+00> : vector<16xf32>
    %52 = vector.multi_reduction <add>, %51, %cst_42 [1] : vector<16x16xf32> to vector<16xf32>
    %53 = vector.shape_cast %52 : vector<16xf32> to vector<16x1xf32>
    %54 = vector.broadcast %53 : vector<16x1xf32> to vector<16x16xf32>
    %55 = arith.divf %51, %54 : vector<16x16xf32>
    %56 = arith.truncf %55 : vector<16x16xf32> to vector<16x16xbf16>
    %57 = arith.truncf %41 : vector<16x8xf32> to vector<16x8xbf16>
    %cst_43 = arith.constant dense<0.000000e+00> : vector<16x8xf32>
    %58 = tpu.matmul %56, %57, %cst_43 {dimension_numbers = #tpu.dot_dimension_numbers<[1], [0], [0], [1], [0, 0, 1, 1], [], []>} : vector<16x16xbf16>, vector<16x8xbf16>, vector<16x8xf32> -> vector<16x8xf32>
    %59 = vector.extract_strided_slice %30 {offsets = [0, 8], sizes = [16, 8], strides = [1, 1]} : vector<16x32xf32> to vector<16x8xf32>
    %60 = vector.extract_strided_slice %34 {offsets = [0, 8], sizes = [16, 8], strides = [1, 1]} : vector<16x32xf32> to vector<16x8xf32>
    %61 = vector.extract_strided_slice %38 {offsets = [0, 8], sizes = [16, 8], strides = [1, 1]} : vector<16x32xf32> to vector<16x8xf32>
    %62 = arith.truncf %59 : vector<16x8xf32> to vector<16x8xbf16>
    %63 = arith.truncf %60 : vector<16x8xf32> to vector<16x8xbf16>
    %cst_44 = arith.constant dense<0.000000e+00> : vector<16x16xf32>
    %64 = tpu.matmul %62, %63, %cst_44 {dimension_numbers = #tpu.dot_dimension_numbers<[1], [1], [0], [0], [0, 0, 1, 0], [], []>} : vector<16x8xbf16>, vector<16x8xbf16>, vector<16x16xf32> -> vector<16x16xf32>
    %cst_45 = arith.constant 0.353553385 : f32
    %65 = vector.broadcast %cst_45 : f32 to vector<16x16xf32>
    %66 = arith.mulf %64, %65 : vector<16x16xf32>
    %cst_46 = arith.constant dense<0xFF800000> : vector<16xf32>
    %67 = vector.multi_reduction <maximumf>, %66, %cst_46 [1] : vector<16x16xf32> to vector<16xf32>
    %68 = vector.shape_cast %67 : vector<16xf32> to vector<16x1xf32>
    %69 = vector.broadcast %68 : vector<16x1xf32> to vector<16x16xf32>
    %70 = arith.subf %66, %69 : vector<16x16xf32>
    %71 = math.exp %70 : vector<16x16xf32>
    %cst_47 = arith.constant dense<0.000000e+00> : vector<16xf32>
    %72 = vector.multi_reduction <add>, %71, %cst_47 [1] : vector<16x16xf32> to vector<16xf32>
    %73 = vector.shape_cast %72 : vector<16xf32> to vector<16x1xf32>
    %74 = vector.broadcast %73 : vector<16x1xf32> to vector<16x16xf32>
    %75 = arith.divf %71, %74 : vector<16x16xf32>
    %76 = arith.truncf %75 : vector<16x16xf32> to vector<16x16xbf16>
    %77 = arith.truncf %61 : vector<16x8xf32> to vector<16x8xbf16>
    %cst_48 = arith.constant dense<0.000000e+00> : vector<16x8xf32>
    %78 = tpu.matmul %76, %77, %cst_48 {dimension_numbers = #tpu.dot_dimension_numbers<[1], [0], [0], [1], [0, 0, 1, 1], [], []>} : vector<16x16xbf16>, vector<16x8xbf16>, vector<16x8xf32> -> vector<16x8xf32>
    %79 = vector.extract_strided_slice %30 {offsets = [0, 16], sizes = [16, 8], strides = [1, 1]} : vector<16x32xf32> to vector<16x8xf32>
    %80 = vector.extract_strided_slice %34 {offsets = [0, 16], sizes = [16, 8], strides = [1, 1]} : vector<16x32xf32> to vector<16x8xf32>
    %81 = vector.extract_strided_slice %38 {offsets = [0, 16], sizes = [16, 8], strides = [1, 1]} : vector<16x32xf32> to vector<16x8xf32>
    %82 = arith.truncf %79 : vector<16x8xf32> to vector<16x8xbf16>
    %83 = arith.truncf %80 : vector<16x8xf32> to vector<16x8xbf16>
    %cst_49 = arith.constant dense<0.000000e+00> : vector<16x16xf32>
    %84 = tpu.matmul %82, %83, %cst_49 {dimension_numbers = #tpu.dot_dimension_numbers<[1], [1], [0], [0], [0, 0, 1, 0], [], []>} : vector<16x8xbf16>, vector<16x8xbf16>, vector<16x16xf32> -> vector<16x16xf32>
    %cst_50 = arith.constant 0.353553385 : f32
    %85 = vector.broadcast %cst_50 : f32 to vector<16x16xf32>
    %86 = arith.mulf %84, %85 : vector<16x16xf32>
    %cst_51 = arith.constant dense<0xFF800000> : vector<16xf32>
    %87 = vector.multi_reduction <maximumf>, %86, %cst_51 [1] : vector<16x16xf32> to vector<16xf32>
    %88 = vector.shape_cast %87 : vector<16xf32> to vector<16x1xf32>
    %89 = vector.broadcast %88 : vector<16x1xf32> to vector<16x16xf32>
    %90 = arith.subf %86, %89 : vector<16x16xf32>
    %91 = math.exp %90 : vector<16x16xf32>
    %cst_52 = arith.constant dense<0.000000e+00> : vector<16xf32>
    %92 = vector.multi_reduction <add>, %91, %cst_52 [1] : vector<16x16xf32> to vector<16xf32>
    %93 = vector.shape_cast %92 : vector<16xf32> to vector<16x1xf32>
    %94 = vector.broadcast %93 : vector<16x1xf32> to vector<16x16xf32>
    %95 = arith.divf %91, %94 : vector<16x16xf32>
    %96 = arith.truncf %95 : vector<16x16xf32> to vector<16x16xbf16>
    %97 = arith.truncf %81 : vector<16x8xf32> to vector<16x8xbf16>
    %cst_53 = arith.constant dense<0.000000e+00> : vector<16x8xf32>
    %98 = tpu.matmul %96, %97, %cst_53 {dimension_numbers = #tpu.dot_dimension_numbers<[1], [0], [0], [1], [0, 0, 1, 1], [], []>} : vector<16x16xbf16>, vector<16x8xbf16>, vector<16x8xf32> -> vector<16x8xf32>
    %99 = vector.extract_strided_slice %30 {offsets = [0, 24], sizes = [16, 8], strides = [1, 1]} : vector<16x32xf32> to vector<16x8xf32>
    %100 = vector.extract_strided_slice %34 {offsets = [0, 24], sizes = [16, 8], strides = [1, 1]} : vector<16x32xf32> to vector<16x8xf32>
    %101 = vector.extract_strided_slice %38 {offsets = [0, 24], sizes = [16, 8], strides = [1, 1]} : vector<16x32xf32> to vector<16x8xf32>
    %102 = arith.truncf %99 : vector<16x8xf32> to vector<16x8xbf16>
    %103 = arith.truncf %100 : vector<16x8xf32> to vector<16x8xbf16>
    %cst_54 = arith.constant dense<0.000000e+00> : vector<16x16xf32>
    %104 = tpu.matmul %102, %103, %cst_54 {dimension_numbers = #tpu.dot_dimension_numbers<[1], [1], [0], [0], [0, 0, 1, 0], [], []>} : vector<16x8xbf16>, vector<16x8xbf16>, vector<16x16xf32> -> vector<16x16xf32>
    %cst_55 = arith.constant 0.353553385 : f32
    %105 = vector.broadcast %cst_55 : f32 to vector<16x16xf32>
    %106 = arith.mulf %104, %105 : vector<16x16xf32>
    %cst_56 = arith.constant dense<0xFF800000> : vector<16xf32>
    %107 = vector.multi_reduction <maximumf>, %106, %cst_56 [1] : vector<16x16xf32> to vector<16xf32>
    %108 = vector.shape_cast %107 : vector<16xf32> to vector<16x1xf32>
    %109 = vector.broadcast %108 : vector<16x1xf32> to vector<16x16xf32>
    %110 = arith.subf %106, %109 : vector<16x16xf32>
    %111 = math.exp %110 : vector<16x16xf32>
    %cst_57 = arith.constant dense<0.000000e+00> : vector<16xf32>
    %112 = vector.multi_reduction <add>, %111, %cst_57 [1] : vector<16x16xf32> to vector<16xf32>
    %113 = vector.shape_cast %112 : vector<16xf32> to vector<16x1xf32>
    %114 = vector.broadcast %113 : vector<16x1xf32> to vector<16x16xf32>
    %115 = arith.divf %111, %114 : vector<16x16xf32>
    %116 = arith.truncf %115 : vector<16x16xf32> to vector<16x16xbf16>
    %117 = arith.truncf %101 : vector<16x8xf32> to vector<16x8xbf16>
    %cst_58 = arith.constant dense<0.000000e+00> : vector<16x8xf32>
    %118 = tpu.matmul %116, %117, %cst_58 {dimension_numbers = #tpu.dot_dimension_numbers<[1], [0], [0], [1], [0, 0, 1, 1], [], []>} : vector<16x16xbf16>, vector<16x8xbf16>, vector<16x8xf32> -> vector<16x8xf32>
    %119 = tpu.concatenate %58, %78, %98, %118 in 1 : vector<16x8xf32>, vector<16x8xf32>, vector<16x8xf32>, vector<16x8xf32> -> vector<16x32xf32>
    %120 = arith.truncf %119 : vector<16x32xf32> to vector<16x32xbf16>
    %cst_59 = arith.constant dense<0.000000e+00> : vector<16x32xf32>
    %121 = tpu.matmul %120, %11, %cst_59 {dimension_numbers = #tpu.dot_dimension_numbers<[1], [0], [0], [1], [0, 0, 1, 1], [], []>} : vector<16x32xbf16>, vector<32x32xbf16>, vector<16x32xf32> -> vector<16x32xf32>
    %122 = vector.broadcast %15 : vector<1x32xf32> to vector<16x32xf32>
    %123 = arith.addf %121, %122 : vector<16x32xf32>
    %124 = arith.addf %23, %123 : vector<16x32xf32>
    %125 = vector.extract_strided_slice %20 {offsets = [0, 0], sizes = [1, 32], strides = [1, 1]} : vector<6x32xf32> to vector<1x32xf32>
    %126 = vector.extract_strided_slice %20 {offsets = [1, 0], sizes = [1, 32], strides = [1, 1]} : vector<6x32xf32> to vector<1x32xf32>
    %cst_60 = arith.constant dense<0.000000e+00> : vector<16xf32>
    %127 = vector.multi_reduction <add>, %124, %cst_60 [1] : vector<16x32xf32> to vector<16xf32>
    %128 = vector.shape_cast %127 : vector<16xf32> to vector<16x1xf32>
    %cst_61 = arith.constant 3.200000e+01 : f32
    %129 = vector.broadcast %cst_61 : f32 to vector<16x1xf32>
    %130 = arith.divf %128, %129 : vector<16x1xf32>
    %131 = vector.broadcast %130 : vector<16x1xf32> to vector<16x32xf32>
    %132 = arith.subf %124, %131 : vector<16x32xf32>
    %133 = arith.mulf %132, %132 : vector<16x32xf32>
    %cst_62 = arith.constant dense<0.000000e+00> : vector<16xf32>
    %134 = vector.multi_reduction <add>, %133, %cst_62 [1] : vector<16x32xf32> to vector<16xf32>
    %135 = vector.shape_cast %134 : vector<16xf32> to vector<16x1xf32>
    %cst_63 = arith.constant 3.200000e+01 : f32
    %136 = vector.broadcast %cst_63 : f32 to vector<16x1xf32>
    %137 = arith.divf %135, %136 : vector<16x1xf32>
    %138 = vector.broadcast %130 : vector<16x1xf32> to vector<16x32xf32>
    %139 = arith.subf %124, %138 : vector<16x32xf32>
    %cst_64 = arith.constant 9.99999974E-6 : f32
    %140 = vector.broadcast %cst_64 : f32 to vector<16x1xf32>
    %141 = arith.addf %137, %140 : vector<16x1xf32>
    %142 = math.rsqrt %141 : vector<16x1xf32>
    %143 = vector.broadcast %142 : vector<16x1xf32> to vector<16x32xf32>
    %144 = arith.mulf %139, %143 : vector<16x32xf32>
    %145 = vector.broadcast %125 : vector<1x32xf32> to vector<16x32xf32>
    %146 = arith.mulf %144, %145 : vector<16x32xf32>
    %147 = vector.broadcast %126 : vector<1x32xf32> to vector<16x32xf32>
    %148 = arith.addf %146, %147 : vector<16x32xf32>
    %149 = arith.truncf %148 : vector<16x32xf32> to vector<16x32xbf16>
    %cst_65 = arith.constant dense<0.000000e+00> : vector<16x64xf32>
    %150 = tpu.matmul %149, %16, %cst_65 {dimension_numbers = #tpu.dot_dimension_numbers<[1], [0], [0], [1], [0, 0, 1, 1], [], []>} : vector<16x32xbf16>, vector<32x64xbf16>, vector<16x64xf32> -> vector<16x64xf32>
    %151 = vector.broadcast %17 : vector<1x64xf32> to vector<16x64xf32>
    %152 = arith.addf %150, %151 : vector<16x64xf32>
    %cst_66 = arith.constant 0.000000e+00 : f32
    %153 = vector.broadcast %cst_66 : f32 to vector<16x64xf32>
    %154 = arith.maximumf %152, %153 : vector<16x64xf32>
    %155 = arith.truncf %154 : vector<16x64xf32> to vector<16x64xbf16>
    %cst_67 = arith.constant dense<0.000000e+00> : vector<16x32xf32>
    %156 = tpu.matmul %155, %18, %cst_67 {dimension_numbers = #tpu.dot_dimension_numbers<[1], [0], [0], [1], [0, 0, 1, 1], [], []>} : vector<16x64xbf16>, vector<64x32xbf16>, vector<16x32xf32> -> vector<16x32xf32>
    %157 = vector.broadcast %19 : vector<1x32xf32> to vector<16x32xf32>
    %158 = arith.addf %156, %157 : vector<16x32xf32>
    %159 = arith.addf %148, %158 : vector<16x32xf32>
    %160 = vector.extract_strided_slice %20 {offsets = [2, 0], sizes = [1, 32], strides = [1, 1]} : vector<6x32xf32> to vector<1x32xf32>
    %161 = vector.extract_strided_slice %20 {offsets = [3, 0], sizes = [1, 32], strides = [1, 1]} : vector<6x32xf32> to vector<1x32xf32>
    %cst_68 = arith.constant dense<0.000000e+00> : vector<16xf32>
    %162 = vector.multi_reduction <add>, %159, %cst_68 [1] : vector<16x32xf32> to vector<16xf32>
    %163 = vector.shape_cast %162 : vector<16xf32> to vector<16x1xf32>
    %cst_69 = arith.constant 3.200000e+01 : f32
    %164 = vector.broadcast %cst_69 : f32 to vector<16x1xf32>
    %165 = arith.divf %163, %164 : vector<16x1xf32>
    %166 = vector.broadcast %165 : vector<16x1xf32> to vector<16x32xf32>
    %167 = arith.subf %159, %166 : vector<16x32xf32>
    %168 = arith.mulf %167, %167 : vector<16x32xf32>
    %cst_70 = arith.constant dense<0.000000e+00> : vector<16xf32>
    %169 = vector.multi_reduction <add>, %168, %cst_70 [1] : vector<16x32xf32> to vector<16xf32>
    %170 = vector.shape_cast %169 : vector<16xf32> to vector<16x1xf32>
    %cst_71 = arith.constant 3.200000e+01 : f32
    %171 = vector.broadcast %cst_71 : f32 to vector<16x1xf32>
    %172 = arith.divf %170, %171 : vector<16x1xf32>
    %173 = vector.broadcast %165 : vector<16x1xf32> to vector<16x32xf32>
    %174 = arith.subf %159, %173 : vector<16x32xf32>
    %cst_72 = arith.constant 9.99999974E-6 : f32
    %175 = vector.broadcast %cst_72 : f32 to vector<16x1xf32>
    %176 = arith.addf %172, %175 : vector<16x1xf32>
    %177 = math.rsqrt %176 : vector<16x1xf32>
    %178 = vector.broadcast %177 : vector<16x1xf32> to vector<16x32xf32>
    %179 = arith.mulf %174, %178 : vector<16x32xf32>
    %180 = vector.broadcast %160 : vector<1x32xf32> to vector<16x32xf32>
    %181 = arith.mulf %179, %180 : vector<16x32xf32>
    %182 = vector.broadcast %161 : vector<1x32xf32> to vector<16x32xf32>
    %183 = arith.addf %181, %182 : vector<16x32xf32>
    %184 = vector.extract_strided_slice %20 {offsets = [4, 0], sizes = [1, 32], strides = [1, 1]} : vector<6x32xf32> to vector<1x32xf32>
    %185 = vector.extract_strided_slice %20 {offsets = [5, 0], sizes = [1, 32], strides = [1, 1]} : vector<6x32xf32> to vector<1x32xf32>
    %cst_73 = arith.constant dense<0.000000e+00> : vector<16xf32>
    %186 = vector.multi_reduction <add>, %183, %cst_73 [1] : vector<16x32xf32> to vector<16xf32>
    %187 = vector.shape_cast %186 : vector<16xf32> to vector<16x1xf32>
    %cst_74 = arith.constant 3.200000e+01 : f32
    %188 = vector.broadcast %cst_74 : f32 to vector<16x1xf32>
    %189 = arith.divf %187, %188 : vector<16x1xf32>
    %190 = vector.broadcast %189 : vector<16x1xf32> to vector<16x32xf32>
    %191 = arith.subf %183, %190 : vector<16x32xf32>
    %192 = arith.mulf %191, %191 : vector<16x32xf32>
    %cst_75 = arith.constant dense<0.000000e+00> : vector<16xf32>
    %193 = vector.multi_reduction <add>, %192, %cst_75 [1] : vector<16x32xf32> to vector<16xf32>
    %194 = vector.shape_cast %193 : vector<16xf32> to vector<16x1xf32>
    %cst_76 = arith.constant 3.200000e+01 : f32
    %195 = vector.broadcast %cst_76 : f32 to vector<16x1xf32>
    %196 = arith.divf %194, %195 : vector<16x1xf32>
    %197 = vector.broadcast %189 : vector<16x1xf32> to vector<16x32xf32>
    %198 = arith.subf %183, %197 : vector<16x32xf32>
    %cst_77 = arith.constant 9.99999974E-6 : f32
    %199 = vector.broadcast %cst_77 : f32 to vector<16x1xf32>
    %200 = arith.addf %196, %199 : vector<16x1xf32>
    %201 = math.rsqrt %200 : vector<16x1xf32>
    %202 = vector.broadcast %201 : vector<16x1xf32> to vector<16x32xf32>
    %203 = arith.mulf %198, %202 : vector<16x32xf32>
    %204 = vector.broadcast %184 : vector<1x32xf32> to vector<16x32xf32>
    %205 = arith.mulf %203, %204 : vector<16x32xf32>
    %206 = vector.broadcast %185 : vector<1x32xf32> to vector<16x32xf32>
    %207 = arith.addf %205, %206 : vector<16x32xf32>
    %208 = arith.truncf %207 : vector<16x32xf32> to vector<16x32xbf16>
    %cst_78 = arith.constant dense<0.000000e+00> : vector<32x256xf32>
    %209 = tpu.matmul %208, %21, %cst_78 {dimension_numbers = #tpu.dot_dimension_numbers<[0], [0], [1], [1], [0, 1, 1, 1], [], []>} : vector<16x32xbf16>, vector<16x256xbf16>, vector<32x256xf32> -> vector<32x256xf32>
    %c0_79 = arith.constant 0 : index
    %c0_80 = arith.constant 0 : index
    %c0_81 = arith.constant 0 : index
    %210 = vector.load %arg19[%c0_79, %c0_80, %c0_81] : memref<2x32x256xf32, #tpu.memory_space<vmem>>, vector<1x32x256xf32>
    %211 = vector.shape_cast %210 : vector<1x32x256xf32> to vector<32x256xf32>
    %212 = vector.shape_cast %209 : vector<32x256xf32> to vector<1x32x256xf32>
    tpu.vector_store %arg19[%c0_79, %c0_80, %c0_81], %212 {strides = array<i32>} : memref<2x32x256xf32, #tpu.memory_space<vmem>>, vector<1x32x256xf32>,
    %213 = vector.extract_strided_slice %6 {offsets = [48, 0], sizes = [16, 32], strides = [1, 1]} : vector<96x32xf32> to vector<16x32xf32>
    %214 = arith.addf %213, %7 : vector<16x32xf32>
    %215 = vector.extract_strided_slice %6 {offsets = [64, 0], sizes = [16, 32], strides = [1, 1]} : vector<96x32xf32> to vector<16x32xf32>
    %216 = arith.addf %215, %7 : vector<16x32xf32>
    %217 = vector.extract_strided_slice %6 {offsets = [80, 0], sizes = [16, 32], strides = [1, 1]} : vector<96x32xf32> to vector<16x32xf32>
    %218 = arith.truncf %214 : vector<16x32xf32> to vector<16x32xbf16>
    %cst_82 = arith.constant dense<0.000000e+00> : vector<16x32xf32>
    %219 = tpu.matmul %218, %8, %cst_82 {dimension_numbers = #tpu.dot_dimension_numbers<[1], [0], [0], [1], [0, 0, 1, 1], [], []>} : vector<16x32xbf16>, vector<32x32xbf16>, vector<16x32xf32> -> vector<16x32xf32>
    %220 = vector.broadcast %12 : vector<1x32xf32> to vector<16x32xf32>
    %221 = arith.addf %219, %220 : vector<16x32xf32>
    %222 = arith.truncf %216 : vector<16x32xf32> to vector<16x32xbf16>
    %cst_83 = arith.constant dense<0.000000e+00> : vector<16x32xf32>
    %223 = tpu.matmul %222, %9, %cst_83 {dimension_numbers = #tpu.dot_dimension_numbers<[1], [0], [0], [1], [0, 0, 1, 1], [], []>} : vector<16x32xbf16>, vector<32x32xbf16>, vector<16x32xf32> -> vector<16x32xf32>
    %224 = vector.broadcast %13 : vector<1x32xf32> to vector<16x32xf32>
    %225 = arith.addf %223, %224 : vector<16x32xf32>
    %226 = arith.truncf %217 : vector<16x32xf32> to vector<16x32xbf16>
    %cst_84 = arith.constant dense<0.000000e+00> : vector<16x32xf32>
    %227 = tpu.matmul %226, %10, %cst_84 {dimension_numbers = #tpu.dot_dimension_numbers<[1], [0], [0], [1], [0, 0, 1, 1], [], []>} : vector<16x32xbf16>, vector<32x32xbf16>, vector<16x32xf32> -> vector<16x32xf32>
    %228 = vector.broadcast %14 : vector<1x32xf32> to vector<16x32xf32>
    %229 = arith.addf %227, %228 : vector<16x32xf32>
    %230 = vector.extract_strided_slice %221 {offsets = [0, 0], sizes = [16, 8], strides = [1, 1]} : vector<16x32xf32> to vector<16x8xf32>
    %231 = vector.extract_strided_slice %225 {offsets = [0, 0], sizes = [16, 8], strides = [1, 1]} : vector<16x32xf32> to vector<16x8xf32>
    %232 = vector.extract_strided_slice %229 {offsets = [0, 0], sizes = [16, 8], strides = [1, 1]} : vector<16x32xf32> to vector<16x8xf32>
    %233 = arith.truncf %230 : vector<16x8xf32> to vector<16x8xbf16>
    %234 = arith.truncf %231 : vector<16x8xf32> to vector<16x8xbf16>
    %cst_85 = arith.constant dense<0.000000e+00> : vector<16x16xf32>
    %235 = tpu.matmul %233, %234, %cst_85 {dimension_numbers = #tpu.dot_dimension_numbers<[1], [1], [0], [0], [0, 0, 1, 0], [], []>} : vector<16x8xbf16>, vector<16x8xbf16>, vector<16x16xf32> -> vector<16x16xf32>
    %cst_86 = arith.constant 0.353553385 : f32
    %236 = vector.broadcast %cst_86 : f32 to vector<16x16xf32>
    %237 = arith.mulf %235, %236 : vector<16x16xf32>
    %cst_87 = arith.constant dense<0xFF800000> : vector<16xf32>
    %238 = vector.multi_reduction <maximumf>, %237, %cst_87 [1] : vector<16x16xf32> to vector<16xf32>
    %239 = vector.shape_cast %238 : vector<16xf32> to vector<16x1xf32>
    %240 = vector.broadcast %239 : vector<16x1xf32> to vector<16x16xf32>
    %241 = arith.subf %237, %240 : vector<16x16xf32>
    %242 = math.exp %241 : vector<16x16xf32>
    %cst_88 = arith.constant dense<0.000000e+00> : vector<16xf32>
    %243 = vector.multi_reduction <add>, %242, %cst_88 [1] : vector<16x16xf32> to vector<16xf32>
    %244 = vector.shape_cast %243 : vector<16xf32> to vector<16x1xf32>
    %245 = vector.broadcast %244 : vector<16x1xf32> to vector<16x16xf32>
    %246 = arith.divf %242, %245 : vector<16x16xf32>
    %247 = arith.truncf %246 : vector<16x16xf32> to vector<16x16xbf16>
    %248 = arith.truncf %232 : vector<16x8xf32> to vector<16x8xbf16>
    %cst_89 = arith.constant dense<0.000000e+00> : vector<16x8xf32>
    %249 = tpu.matmul %247, %248, %cst_89 {dimension_numbers = #tpu.dot_dimension_numbers<[1], [0], [0], [1], [0, 0, 1, 1], [], []>} : vector<16x16xbf16>, vector<16x8xbf16>, vector<16x8xf32> -> vector<16x8xf32>
    %250 = vector.extract_strided_slice %221 {offsets = [0, 8], sizes = [16, 8], strides = [1, 1]} : vector<16x32xf32> to vector<16x8xf32>
    %251 = vector.extract_strided_slice %225 {offsets = [0, 8], sizes = [16, 8], strides = [1, 1]} : vector<16x32xf32> to vector<16x8xf32>
    %252 = vector.extract_strided_slice %229 {offsets = [0, 8], sizes = [16, 8], strides = [1, 1]} : vector<16x32xf32> to vector<16x8xf32>
    %253 = arith.truncf %250 : vector<16x8xf32> to vector<16x8xbf16>
    %254 = arith.truncf %251 : vector<16x8xf32> to vector<16x8xbf16>
    %cst_90 = arith.constant dense<0.000000e+00> : vector<16x16xf32>
    %255 = tpu.matmul %253, %254, %cst_90 {dimension_numbers = #tpu.dot_dimension_numbers<[1], [1], [0], [0], [0, 0, 1, 0], [], []>} : vector<16x8xbf16>, vector<16x8xbf16>, vector<16x16xf32> -> vector<16x16xf32>
    %cst_91 = arith.constant 0.353553385 : f32
    %256 = vector.broadcast %cst_91 : f32 to vector<16x16xf32>
    %257 = arith.mulf %255, %256 : vector<16x16xf32>
    %cst_92 = arith.constant dense<0xFF800000> : vector<16xf32>
    %258 = vector.multi_reduction <maximumf>, %257, %cst_92 [1] : vector<16x16xf32> to vector<16xf32>
    %259 = vector.shape_cast %258 : vector<16xf32> to vector<16x1xf32>
    %260 = vector.broadcast %259 : vector<16x1xf32> to vector<16x16xf32>
    %261 = arith.subf %257, %260 : vector<16x16xf32>
    %262 = math.exp %261 : vector<16x16xf32>
    %cst_93 = arith.constant dense<0.000000e+00> : vector<16xf32>
    %263 = vector.multi_reduction <add>, %262, %cst_93 [1] : vector<16x16xf32> to vector<16xf32>
    %264 = vector.shape_cast %263 : vector<16xf32> to vector<16x1xf32>
    %265 = vector.broadcast %264 : vector<16x1xf32> to vector<16x16xf32>
    %266 = arith.divf %262, %265 : vector<16x16xf32>
    %267 = arith.truncf %266 : vector<16x16xf32> to vector<16x16xbf16>
    %268 = arith.truncf %252 : vector<16x8xf32> to vector<16x8xbf16>
    %cst_94 = arith.constant dense<0.000000e+00> : vector<16x8xf32>
    %269 = tpu.matmul %267, %268, %cst_94 {dimension_numbers = #tpu.dot_dimension_numbers<[1], [0], [0], [1], [0, 0, 1, 1], [], []>} : vector<16x16xbf16>, vector<16x8xbf16>, vector<16x8xf32> -> vector<16x8xf32>
    %270 = vector.extract_strided_slice %221 {offsets = [0, 16], sizes = [16, 8], strides = [1, 1]} : vector<16x32xf32> to vector<16x8xf32>
    %271 = vector.extract_strided_slice %225 {offsets = [0, 16], sizes = [16, 8], strides = [1, 1]} : vector<16x32xf32> to vector<16x8xf32>
    %272 = vector.extract_strided_slice %229 {offsets = [0, 16], sizes = [16, 8], strides = [1, 1]} : vector<16x32xf32> to vector<16x8xf32>
    %273 = arith.truncf %270 : vector<16x8xf32> to vector<16x8xbf16>
    %274 = arith.truncf %271 : vector<16x8xf32> to vector<16x8xbf16>
    %cst_95 = arith.constant dense<0.000000e+00> : vector<16x16xf32>
    %275 = tpu.matmul %273, %274, %cst_95 {dimension_numbers = #tpu.dot_dimension_numbers<[1], [1], [0], [0], [0, 0, 1, 0], [], []>} : vector<16x8xbf16>, vector<16x8xbf16>, vector<16x16xf32> -> vector<16x16xf32>
    %cst_96 = arith.constant 0.353553385 : f32
    %276 = vector.broadcast %cst_96 : f32 to vector<16x16xf32>
    %277 = arith.mulf %275, %276 : vector<16x16xf32>
    %cst_97 = arith.constant dense<0xFF800000> : vector<16xf32>
    %278 = vector.multi_reduction <maximumf>, %277, %cst_97 [1] : vector<16x16xf32> to vector<16xf32>
    %279 = vector.shape_cast %278 : vector<16xf32> to vector<16x1xf32>
    %280 = vector.broadcast %279 : vector<16x1xf32> to vector<16x16xf32>
    %281 = arith.subf %277, %280 : vector<16x16xf32>
    %282 = math.exp %281 : vector<16x16xf32>
    %cst_98 = arith.constant dense<0.000000e+00> : vector<16xf32>
    %283 = vector.multi_reduction <add>, %282, %cst_98 [1] : vector<16x16xf32> to vector<16xf32>
    %284 = vector.shape_cast %283 : vector<16xf32> to vector<16x1xf32>
    %285 = vector.broadcast %284 : vector<16x1xf32> to vector<16x16xf32>
    %286 = arith.divf %282, %285 : vector<16x16xf32>
    %287 = arith.truncf %286 : vector<16x16xf32> to vector<16x16xbf16>
    %288 = arith.truncf %272 : vector<16x8xf32> to vector<16x8xbf16>
    %cst_99 = arith.constant dense<0.000000e+00> : vector<16x8xf32>
    %289 = tpu.matmul %287, %288, %cst_99 {dimension_numbers = #tpu.dot_dimension_numbers<[1], [0], [0], [1], [0, 0, 1, 1], [], []>} : vector<16x16xbf16>, vector<16x8xbf16>, vector<16x8xf32> -> vector<16x8xf32>
    %290 = vector.extract_strided_slice %221 {offsets = [0, 24], sizes = [16, 8], strides = [1, 1]} : vector<16x32xf32> to vector<16x8xf32>
    %291 = vector.extract_strided_slice %225 {offsets = [0, 24], sizes = [16, 8], strides = [1, 1]} : vector<16x32xf32> to vector<16x8xf32>
    %292 = vector.extract_strided_slice %229 {offsets = [0, 24], sizes = [16, 8], strides = [1, 1]} : vector<16x32xf32> to vector<16x8xf32>
    %293 = arith.truncf %290 : vector<16x8xf32> to vector<16x8xbf16>
    %294 = arith.truncf %291 : vector<16x8xf32> to vector<16x8xbf16>
    %cst_100 = arith.constant dense<0.000000e+00> : vector<16x16xf32>
    %295 = tpu.matmul %293, %294, %cst_100 {dimension_numbers = #tpu.dot_dimension_numbers<[1], [1], [0], [0], [0, 0, 1, 0], [], []>} : vector<16x8xbf16>, vector<16x8xbf16>, vector<16x16xf32> -> vector<16x16xf32>
    %cst_101 = arith.constant 0.353553385 : f32
    %296 = vector.broadcast %cst_101 : f32 to vector<16x16xf32>
    %297 = arith.mulf %295, %296 : vector<16x16xf32>
    %cst_102 = arith.constant dense<0xFF800000> : vector<16xf32>
    %298 = vector.multi_reduction <maximumf>, %297, %cst_102 [1] : vector<16x16xf32> to vector<16xf32>
    %299 = vector.shape_cast %298 : vector<16xf32> to vector<16x1xf32>
    %300 = vector.broadcast %299 : vector<16x1xf32> to vector<16x16xf32>
    %301 = arith.subf %297, %300 : vector<16x16xf32>
    %302 = math.exp %301 : vector<16x16xf32>
    %cst_103 = arith.constant dense<0.000000e+00> : vector<16xf32>
    %303 = vector.multi_reduction <add>, %302, %cst_103 [1] : vector<16x16xf32> to vector<16xf32>
    %304 = vector.shape_cast %303 : vector<16xf32> to vector<16x1xf32>
    %305 = vector.broadcast %304 : vector<16x1xf32> to vector<16x16xf32>
    %306 = arith.divf %302, %305 : vector<16x16xf32>
    %307 = arith.truncf %306 : vector<16x16xf32> to vector<16x16xbf16>
    %308 = arith.truncf %292 : vector<16x8xf32> to vector<16x8xbf16>
    %cst_104 = arith.constant dense<0.000000e+00> : vector<16x8xf32>
    %309 = tpu.matmul %307, %308, %cst_104 {dimension_numbers = #tpu.dot_dimension_numbers<[1], [0], [0], [1], [0, 0, 1, 1], [], []>} : vector<16x16xbf16>, vector<16x8xbf16>, vector<16x8xf32> -> vector<16x8xf32>
    %310 = tpu.concatenate %249, %269, %289, %309 in 1 : vector<16x8xf32>, vector<16x8xf32>, vector<16x8xf32>, vector<16x8xf32> -> vector<16x32xf32>
    %311 = arith.truncf %310 : vector<16x32xf32> to vector<16x32xbf16>
    %cst_105 = arith.constant dense<0.000000e+00> : vector<16x32xf32>
    %312 = tpu.matmul %311, %11, %cst_105 {dimension_numbers = #tpu.dot_dimension_numbers<[1], [0], [0], [1], [0, 0, 1, 1], [], []>} : vector<16x32xbf16>, vector<32x32xbf16>, vector<16x32xf32> -> vector<16x32xf32>
    %313 = vector.broadcast %15 : vector<1x32xf32> to vector<16x32xf32>
    %314 = arith.addf %312, %313 : vector<16x32xf32>
    %315 = arith.addf %214, %314 : vector<16x32xf32>
    %316 = vector.extract_strided_slice %20 {offsets = [0, 0], sizes = [1, 32], strides = [1, 1]} : vector<6x32xf32> to vector<1x32xf32>
    %317 = vector.extract_strided_slice %20 {offsets = [1, 0], sizes = [1, 32], strides = [1, 1]} : vector<6x32xf32> to vector<1x32xf32>
    %cst_106 = arith.constant dense<0.000000e+00> : vector<16xf32>
    %318 = vector.multi_reduction <add>, %315, %cst_106 [1] : vector<16x32xf32> to vector<16xf32>
    %319 = vector.shape_cast %318 : vector<16xf32> to vector<16x1xf32>
    %cst_107 = arith.constant 3.200000e+01 : f32
    %320 = vector.broadcast %cst_107 : f32 to vector<16x1xf32>
    %321 = arith.divf %319, %320 : vector<16x1xf32>
    %322 = vector.broadcast %321 : vector<16x1xf32> to vector<16x32xf32>
    %323 = arith.subf %315, %322 : vector<16x32xf32>
    %324 = arith.mulf %323, %323 : vector<16x32xf32>
    %cst_108 = arith.constant dense<0.000000e+00> : vector<16xf32>
    %325 = vector.multi_reduction <add>, %324, %cst_108 [1] : vector<16x32xf32> to vector<16xf32>
    %326 = vector.shape_cast %325 : vector<16xf32> to vector<16x1xf32>
    %cst_109 = arith.constant 3.200000e+01 : f32
    %327 = vector.broadcast %cst_109 : f32 to vector<16x1xf32>
    %328 = arith.divf %326, %327 : vector<16x1xf32>
    %329 = vector.broadcast %321 : vector<16x1xf32> to vector<16x32xf32>
    %330 = arith.subf %315, %329 : vector<16x32xf32>
    %cst_110 = arith.constant 9.99999974E-6 : f32
    %331 = vector.broadcast %cst_110 : f32 to vector<16x1xf32>
    %332 = arith.addf %328, %331 : vector<16x1xf32>
    %333 = math.rsqrt %332 : vector<16x1xf32>
    %334 = vector.broadcast %333 : vector<16x1xf32> to vector<16x32xf32>
    %335 = arith.mulf %330, %334 : vector<16x32xf32>
    %336 = vector.broadcast %316 : vector<1x32xf32> to vector<16x32xf32>
    %337 = arith.mulf %335, %336 : vector<16x32xf32>
    %338 = vector.broadcast %317 : vector<1x32xf32> to vector<16x32xf32>
    %339 = arith.addf %337, %338 : vector<16x32xf32>
    %340 = arith.truncf %339 : vector<16x32xf32> to vector<16x32xbf16>
    %cst_111 = arith.constant dense<0.000000e+00> : vector<16x64xf32>
    %341 = tpu.matmul %340, %16, %cst_111 {dimension_numbers = #tpu.dot_dimension_numbers<[1], [0], [0], [1], [0, 0, 1, 1], [], []>} : vector<16x32xbf16>, vector<32x64xbf16>, vector<16x64xf32> -> vector<16x64xf32>
    %342 = vector.broadcast %17 : vector<1x64xf32> to vector<16x64xf32>
    %343 = arith.addf %341, %342 : vector<16x64xf32>
    %cst_112 = arith.constant 0.000000e+00 : f32
    %344 = vector.broadcast %cst_112 : f32 to vector<16x64xf32>
    %345 = arith.maximumf %343, %344 : vector<16x64xf32>
    %346 = arith.truncf %345 : vector<16x64xf32> to vector<16x64xbf16>
    %cst_113 = arith.constant dense<0.000000e+00> : vector<16x32xf32>
    %347 = tpu.matmul %346, %18, %cst_113 {dimension_numbers = #tpu.dot_dimension_numbers<[1], [0], [0], [1], [0, 0, 1, 1], [], []>} : vector<16x64xbf16>, vector<64x32xbf16>, vector<16x32xf32> -> vector<16x32xf32>
    %348 = vector.broadcast %19 : vector<1x32xf32> to vector<16x32xf32>
    %349 = arith.addf %347, %348 : vector<16x32xf32>
    %350 = arith.addf %339, %349 : vector<16x32xf32>
    %351 = vector.extract_strided_slice %20 {offsets = [2, 0], sizes = [1, 32], strides = [1, 1]} : vector<6x32xf32> to vector<1x32xf32>
    %352 = vector.extract_strided_slice %20 {offsets = [3, 0], sizes = [1, 32], strides = [1, 1]} : vector<6x32xf32> to vector<1x32xf32>
    %cst_114 = arith.constant dense<0.000000e+00> : vector<16xf32>
    %353 = vector.multi_reduction <add>, %350, %cst_114 [1] : vector<16x32xf32> to vector<16xf32>
    %354 = vector.shape_cast %353 : vector<16xf32> to vector<16x1xf32>
    %cst_115 = arith.constant 3.200000e+01 : f32
    %355 = vector.broadcast %cst_115 : f32 to vector<16x1xf32>
    %356 = arith.divf %354, %355 : vector<16x1xf32>
    %357 = vector.broadcast %356 : vector<16x1xf32> to vector<16x32xf32>
    %358 = arith.subf %350, %357 : vector<16x32xf32>
    %359 = arith.mulf %358, %358 : vector<16x32xf32>
    %cst_116 = arith.constant dense<0.000000e+00> : vector<16xf32>
    %360 = vector.multi_reduction <add>, %359, %cst_116 [1] : vector<16x32xf32> to vector<16xf32>
    %361 = vector.shape_cast %360 : vector<16xf32> to vector<16x1xf32>
    %cst_117 = arith.constant 3.200000e+01 : f32
    %362 = vector.broadcast %cst_117 : f32 to vector<16x1xf32>
    %363 = arith.divf %361, %362 : vector<16x1xf32>
    %364 = vector.broadcast %356 : vector<16x1xf32> to vector<16x32xf32>
    %365 = arith.subf %350, %364 : vector<16x32xf32>
    %cst_118 = arith.constant 9.99999974E-6 : f32
    %366 = vector.broadcast %cst_118 : f32 to vector<16x1xf32>
    %367 = arith.addf %363, %366 : vector<16x1xf32>
    %368 = math.rsqrt %367 : vector<16x1xf32>
    %369 = vector.broadcast %368 : vector<16x1xf32> to vector<16x32xf32>
    %370 = arith.mulf %365, %369 : vector<16x32xf32>
    %371 = vector.broadcast %351 : vector<1x32xf32> to vector<16x32xf32>
    %372 = arith.mulf %370, %371 : vector<16x32xf32>
    %373 = vector.broadcast %352 : vector<1x32xf32> to vector<16x32xf32>
    %374 = arith.addf %372, %373 : vector<16x32xf32>
    %375 = vector.extract_strided_slice %20 {offsets = [4, 0], sizes = [1, 32], strides = [1, 1]} : vector<6x32xf32> to vector<1x32xf32>
    %376 = vector.extract_strided_slice %20 {offsets = [5, 0], sizes = [1, 32], strides = [1, 1]} : vector<6x32xf32> to vector<1x32xf32>
    %cst_119 = arith.constant dense<0.000000e+00> : vector<16xf32>
    %377 = vector.multi_reduction <add>, %374, %cst_119 [1] : vector<16x32xf32> to vector<16xf32>
    %378 = vector.shape_cast %377 : vector<16xf32> to vector<16x1xf32>
    %cst_120 = arith.constant 3.200000e+01 : f32
    %379 = vector.broadcast %cst_120 : f32 to vector<16x1xf32>
    %380 = arith.divf %378, %379 : vector<16x1xf32>
    %381 = vector.broadcast %380 : vector<16x1xf32> to vector<16x32xf32>
    %382 = arith.subf %374, %381 : vector<16x32xf32>
    %383 = arith.mulf %382, %382 : vector<16x32xf32>
    %cst_121 = arith.constant dense<0.000000e+00> : vector<16xf32>
    %384 = vector.multi_reduction <add>, %383, %cst_121 [1] : vector<16x32xf32> to vector<16xf32>
    %385 = vector.shape_cast %384 : vector<16xf32> to vector<16x1xf32>
    %cst_122 = arith.constant 3.200000e+01 : f32
    %386 = vector.broadcast %cst_122 : f32 to vector<16x1xf32>
    %387 = arith.divf %385, %386 : vector<16x1xf32>
    %388 = vector.broadcast %380 : vector<16x1xf32> to vector<16x32xf32>
    %389 = arith.subf %374, %388 : vector<16x32xf32>
    %cst_123 = arith.constant 9.99999974E-6 : f32
    %390 = vector.broadcast %cst_123 : f32 to vector<16x1xf32>
    %391 = arith.addf %387, %390 : vector<16x1xf32>
    %392 = math.rsqrt %391 : vector<16x1xf32>
    %393 = vector.broadcast %392 : vector<16x1xf32> to vector<16x32xf32>
    %394 = arith.mulf %389, %393 : vector<16x32xf32>
    %395 = vector.broadcast %375 : vector<1x32xf32> to vector<16x32xf32>
    %396 = arith.mulf %394, %395 : vector<16x32xf32>
    %397 = vector.broadcast %376 : vector<1x32xf32> to vector<16x32xf32>
    %398 = arith.addf %396, %397 : vector<16x32xf32>
    %399 = arith.truncf %398 : vector<16x32xf32> to vector<16x32xbf16>
    %cst_124 = arith.constant dense<0.000000e+00> : vector<32x256xf32>
    %400 = tpu.matmul %399, %21, %cst_124 {dimension_numbers = #tpu.dot_dimension_numbers<[0], [0], [1], [1], [0, 1, 1, 1], [], []>} : vector<16x32xbf16>, vector<16x256xbf16>, vector<32x256xf32> -> vector<32x256xf32>
    %c1 = arith.constant 1 : index
    %c0_125 = arith.constant 0 : index
    %c0_126 = arith.constant 0 : index
    %401 = vector.load %arg19[%c1, %c0_125, %c0_126] : memref<2x32x256xf32, #tpu.memory_space<vmem>>, vector<1x32x256xf32>
    %402 = vector.shape_cast %401 : vector<1x32x256xf32> to vector<32x256xf32>
    %403 = vector.shape_cast %400 : vector<32x256xf32> to vector<1x32x256xf32>
    tpu.vector_store %arg19[%c1, %c0_125, %c0_126], %403 {strides = array<i32>} : memref<2x32x256xf32, #tpu.memory_space<vmem>>, vector<1x32x256xf32>,
    return
  }
  func.func @transform_0(%arg0: i32) -> (i32, i32, i32) {
    %c0_i32 = arith.constant 0 : i32
    %c0_i32_0 = arith.constant 0 : i32
    %c0_i32_1 = arith.constant 0 : i32
    return %arg0, %c0_i32, %c0_i32_0 : i32, i32, i32
  }
  func.func @transform_1(%arg0: i32) -> (i32, i32) {
    %c0_i32 = arith.constant 0 : i32
    %c0_i32_0 = arith.constant 0 : i32
    %c0_i32_1 = arith.constant 0 : i32
    return %c0_i32, %c0_i32_0 : i32, i32
  }
  func.func @transform_2(%arg0: i32) -> (i32, i32) {
    %c0_i32 = arith.constant 0 : i32
    %c0_i32_0 = arith.constant 0 : i32
    %c0_i32_1 = arith.constant 0 : i32
    return %c0_i32, %c0_i32_0 : i32, i32
  }
  func.func @transform_3(%arg0: i32) -> (i32, i32) {
    %c0_i32 = arith.constant 0 : i32
    %c0_i32_0 = arith.constant 0 : i32
    %c0_i32_1 = arith.constant 0 : i32
    return %c0_i32, %c0_i32_0 : i32, i32
  }
  func.func @transform_4(%arg0: i32) -> (i32, i32) {
    %c0_i32 = arith.constant 0 : i32
    %c0_i32_0 = arith.constant 0 : i32
    %c0_i32_1 = arith.constant 0 : i32
    return %c0_i32, %c0_i32_0 : i32, i32
  }
  func.func @transform_5(%arg0: i32) -> (i32, i32) {
    %c0_i32 = arith.constant 0 : i32
    %c0_i32_0 = arith.constant 0 : i32
    %c0_i32_1 = arith.constant 0 : i32
    return %c0_i32, %c0_i32_0 : i32, i32
  }
  func.func @transform_6(%arg0: i32) -> (i32, i32) {
    %c0_i32 = arith.constant 0 : i32
    %c0_i32_0 = arith.constant 0 : i32
    %c0_i32_1 = arith.constant 0 : i32
    return %c0_i32, %c0_i32_0 : i32, i32
  }
  func.func @transform_7(%arg0: i32) -> (i32, i32) {
    %c0_i32 = arith.constant 0 : i32
    %c0_i32_0 = arith.constant 0 : i32
    %c0_i32_1 = arith.constant 0 : i32
    return %c0_i32, %c0_i32_0 : i32, i32
  }
  func.func @transform_8(%arg0: i32) -> (i32, i32) {
    %c0_i32 = arith.constant 0 : i32
    %c0_i32_0 = arith.constant 0 : i32
    %c0_i32_1 = arith.constant 0 : i32
    return %c0_i32, %c0_i32_0 : i32, i32
  }
  func.func @transform_9(%arg0: i32) -> (i32, i32) {
    %c0_i32 = arith.constant 0 : i32
    %c0_i32_0 = arith.constant 0 : i32
    %c0_i32_1 = arith.constant 0 : i32
    return %c0_i32, %c0_i32_0 : i32, i32
  }
  func.func @transform_10(%arg0: i32) -> (i32, i32) {
    %c0_i32 = arith.constant 0 : i32
    %c0_i32_0 = arith.constant 0 : i32
    %c0_i32_1 = arith.constant 0 : i32
    return %c0_i32, %c0_i32_0 : i32, i32
  }
  func.func @transform_11(%arg0: i32) -> (i32, i32) {
    %c0_i32 = arith.constant 0 : i32
    %c0_i32_0 = arith.constant 0 : i32
    %c0_i32_1 = arith.constant 0 : i32
    return %c0_i32, %c0_i32_0 : i32, i32
  }
  func.func @transform_12(%arg0: i32) -> (i32, i32) {
    %c0_i32 = arith.constant 0 : i32
    %c0_i32_0 = arith.constant 0 : i32
    %c0_i32_1 = arith.constant 0 : i32
    return %c0_i32, %c0_i32_0 : i32, i32
  }
  func.func @transform_13(%arg0: i32) -> (i32, i32) {
    %c0_i32 = arith.constant 0 : i32
    %c0_i32_0 = arith.constant 0 : i32
    %c0_i32_1 = arith.constant 0 : i32
    return %c0_i32, %c0_i32_0 : i32, i32
  }
  func.func @transform_14(%arg0: i32) -> (i32, i32) {
    %c0_i32 = arith.constant 0 : i32
    %c0_i32_0 = arith.constant 0 : i32
    %c0_i32_1 = arith.constant 0 : i32
    return %c0_i32, %c0_i32_0 : i32, i32
  }
  func.func @transform_15(%arg0: i32) -> (i32, i32) {
    %c0_i32 = arith.constant 0 : i32
    %c0_i32_0 = arith.constant 0 : i32
    %c0_i32_1 = arith.constant 0 : i32
    return %c0_i32, %c0_i32_0 : i32, i32
  }
  func.func @transform_16(%arg0: i32) -> (i32, i32) {
    %c0_i32 = arith.constant 0 : i32
    %c0_i32_0 = arith.constant 0 : i32
    %c0_i32_1 = arith.constant 0 : i32
    return %c0_i32, %c0_i32_0 : i32, i32
  }
  func.func @transform_17(%arg0: i32) -> (i32, i32) {
    %c0_i32 = arith.constant 0 : i32
    %c0_i32_0 = arith.constant 0 : i32
    %c0_i32_1 = arith.constant 0 : i32
    return %c0_i32, %c0_i32_0 : i32, i32
  }
  func.func @transform_18(%arg0: i32) -> (i32, i32, i32) {
    %c0_i32 = arith.constant 0 : i32
    %c0_i32_0 = arith.constant 0 : i32
    %c0_i32_1 = arith.constant 0 : i32
    return %arg0, %c0_i32, %c0_i32_0 : i32, i32, i32
  }
}

</mosaic_0001>

<llo_original>
// kernel: tpu_custom_call.1
$region0: #{tpu_custom_call.1}
  #allocation0 [shape = 'u32[]', space=smem, size = 0x4, offset = 0x4, fixed_abs, tag = 'smem constant byte address 0x4 - core index']
  #allocation1 [shape = 'u32[144,128]{1,0:T(1,128)}', space=vmem, size = 0x12000, scoped, tag = 'internal scratch']
  %s0 = inlined_call_operand.vmem [shape: bf16[2,48,64], index: 0, kind: input, shape index: {}]
  %s1 = inlined_call_operand.vmem [shape: f32[16,32], index: 1, kind: input, shape index: {}]
  %s2 = inlined_call_operand.vmem [shape: bf16[64,32], index: 2, kind: input, shape index: {}]
  %s3 = inlined_call_operand.hbm [shape: f32[1,32], index: 3, kind: input, shape index: {}]
  %s4 = inlined_call_operand.vmem [shape: bf16[32,32], index: 4, kind: input, shape index: {}]
  %s5 = inlined_call_operand.hbm [shape: f32[1,32], index: 5, kind: input, shape index: {}]
  %s6 = inlined_call_operand.vmem [shape: bf16[32,32], index: 6, kind: input, shape index: {}]
  %s7 = inlined_call_operand.hbm [shape: f32[1,32], index: 7, kind: input, shape index: {}]
  %s8 = inlined_call_operand.hbm [shape: bf16[32,32], index: 8, kind: input, shape index: {}]
  %s9 = inlined_call_operand.hbm [shape: f32[1,32], index: 9, kind: input, shape index: {}]
  %s10 = inlined_call_operand.vmem [shape: bf16[32,32], index: 10, kind: input, shape index: {}]
  %s11 = inlined_call_operand.hbm [shape: f32[1,32], index: 11, kind: input, shape index: {}]
  %s12 = inlined_call_operand.hbm [shape: bf16[32,64], index: 12, kind: input, shape index: {}]
  %s13 = inlined_call_operand.hbm [shape: f32[1,64], index: 13, kind: input, shape index: {}]
  %s14 = inlined_call_operand.vmem [shape: bf16[64,32], index: 14, kind: input, shape index: {}]
  %s15 = inlined_call_operand.hbm [shape: f32[1,32], index: 15, kind: input, shape index: {}]
  %s16 = inlined_call_operand.vmem [shape: f32[6,32], index: 16, kind: input, shape index: {}]
  %s17 = inlined_call_operand.vmem [shape: bf16[16,256], index: 17, kind: input, shape index: {}]
  %s18 = inlined_call_operand.hbm [shape: f32[2,32,256], index: 18, kind: output, shape index: {}]
  %s19 = sld [smem:[#allocation0]]
  $region118: #{tpu_custom_call.1} parent=0
    _
  %s21 = ssub.s32 1, %s19
  %s22 = scalar_select 0, %s21, %s19
  $region1: #{tpu_custom_call.1} parent=0
    #allocation2 [shape = 'u8[512]{0}', space=vmem, size = 0x400, scoped, tag = 'input window, operand 3, single buffered']
    #allocation3 [shape = 's32[1]{0}', space=sflag, size = 0x4, scoped, tag = 'scoped memory for tpu_custom_call.1']
    #allocation4 [shape = 's32[1]{0}', space=sflag, size = 0x4, scoped, tag = 'scoped memory for tpu_custom_call.1']
    #allocation5 [shape = 'u8[512]{0}', space=vmem, size = 0x400, scoped, tag = 'input window, operand 5, single buffered']
    #allocation6 [shape = 's32[1]{0}', space=sflag, size = 0x4, scoped, tag = 'scoped memory for tpu_custom_call.1']
    #allocation7 [shape = 'u8[512]{0}', space=vmem, size = 0x400, scoped, tag = 'input window, operand 7, single buffered']
    #allocation8 [shape = 'u8[8192]{0}', space=vmem, size = 0x2000, scoped, tag = 'input window, operand 8, single buffered']
    #allocation9 [shape = 's32[1]{0}', space=sflag, size = 0x4, scoped, tag = 'scoped memory for tpu_custom_call.1']
    #allocation10 [shape = 'u8[512]{0}', space=vmem, size = 0x400, scoped, tag = 'input window, operand 9, single buffered']
    #allocation11 [shape = 'u8[512]{0}', space=vmem, size = 0x400, scoped, tag = 'input window, operand 11, single buffered']
    #allocation12 [shape = 's32[1]{0}', space=sflag, size = 0x4, scoped, tag = 'scoped memory for tpu_custom_call.1']
    #allocation13 [shape = 'u8[8192]{0}', space=vmem, size = 0x2000, scoped, tag = 'input window, operand 12, single buffered']
    #allocation14 [shape = 'u8[512]{0}', space=vmem, size = 0x400, scoped, tag = 'input window, operand 13, single buffered']
    #allocation15 [shape = 's32[1]{0}', space=sflag, size = 0x4, scoped, tag = 'scoped memory for tpu_custom_call.1']
    #allocation16 [shape = 'u8[512]{0}', space=vmem, size = 0x400, scoped, tag = 'input window, operand 15, single buffered']
    #allocation17 [shape = 'u8[65536]{0}', space=vmem, size = 0x10000, scoped, tag = 'output window, operand 0, single buffered']
    %23 = vsyncpa [#allocation3], 0
    %24 = vsyncpa [#allocation6], 0
    %25 = vsyncpa [#allocation9], 0
    %26 = vsyncpa [#allocation12], 0
    %27 = vsyncpa [#allocation15], 0
    %28 = vsyncpa [#allocation4], 0
    // Predicated region
    $region2: #{tpu_custom_call.1} parent=1 // pred_check
      _
    $region3: #{tpu_custom_call.1} parent=1 // pred_check_branch
      %30 = sbr.rel (0) target = $region5
    $region4: #{tpu_custom_call.1} parent=1 // pred_region
      _
    $region5: #{tpu_custom_call.1} parent=1 // pred_fallthru
      _
    // Predicated region
    $region6: #{tpu_custom_call.1} parent=1 // pred_check
      _
    $region7: #{tpu_custom_call.1} parent=1 // pred_check_branch
      %32 = sbr.rel (0) target = $region9
    $region8: #{tpu_custom_call.1} parent=1 // pred_region
      _
    $region9: #{tpu_custom_call.1} parent=1 // pred_fallthru
      _
    // Predicated region
    $region10: #{tpu_custom_call.1} parent=1 // pred_check
      _
    $region11: #{tpu_custom_call.1} parent=1 // pred_check_branch
      %34 = sbr.rel (0) target = $region13
    $region12: #{tpu_custom_call.1} parent=1 // pred_region
      _
    $region13: #{tpu_custom_call.1} parent=1 // pred_fallthru
      _
    // Predicated region
    $region14: #{tpu_custom_call.1} parent=1 // pred_check
      _
    $region15: #{tpu_custom_call.1} parent=1 // pred_check_branch
      %36 = sbr.rel (0) target = $region17
    $region16: #{tpu_custom_call.1} parent=1 // pred_region
      %s38 = ssub.s32 16, 16
      %39 = vsyncadd [#allocation3], %s38
      %s41 = sshll.u32 [#allocation2], 4
      %s42 = int_to_ptr.vmem [resolvable:$true] %s41
      %44 = dma.hbm_to_vmem [thread:$0]  %s3, 16, %s42, [#allocation3]
    $region17: #{tpu_custom_call.1} parent=1 // pred_fallthru
      _
    // Predicated region
    $region18: #{tpu_custom_call.1} parent=1 // pred_check
      _
    $region19: #{tpu_custom_call.1} parent=1 // pred_check_branch
      %46 = sbr.rel (0) target = $region21
    $region20: #{tpu_custom_call.1} parent=1 // pred_region
      _
    $region21: #{tpu_custom_call.1} parent=1 // pred_fallthru
      _
    // Predicated region
    $region22: #{tpu_custom_call.1} parent=1 // pred_check
      _
    $region23: #{tpu_custom_call.1} parent=1 // pred_check_branch
      %48 = sbr.rel (0) target = $region25
    $region24: #{tpu_custom_call.1} parent=1 // pred_region
      %s50 = ssub.s32 16, 16
      %51 = vsyncadd [#allocation6], %s50
      %s53 = sshll.u32 [#allocation5], 4
      %s54 = int_to_ptr.vmem [resolvable:$true] %s53
      %56 = dma.hbm_to_vmem [thread:$0]  %s5, 16, %s54, [#allocation6]
    $region25: #{tpu_custom_call.1} parent=1 // pred_fallthru
      _
    // Predicated region
    $region26: #{tpu_custom_call.1} parent=1 // pred_check
      _
    $region27: #{tpu_custom_call.1} parent=1 // pred_check_branch
      %58 = sbr.rel (0) target = $region29
    $region28: #{tpu_custom_call.1} parent=1 // pred_region
      _
    $region29: #{tpu_custom_call.1} parent=1 // pred_fallthru
      _
    // Predicated region
    $region30: #{tpu_custom_call.1} parent=1 // pred_check
      _
    $region31: #{tpu_custom_call.1} parent=1 // pred_check_branch
      %60 = sbr.rel (0) target = $region33
    $region32: #{tpu_custom_call.1} parent=1 // pred_region
      %s62 = ssub.s32 16, 16
      %63 = vsyncadd [#allocation6], %s62
      %s65 = sshll.u32 [#allocation7], 4
      %s66 = int_to_ptr.vmem [resolvable:$true] %s65
      %68 = dma.hbm_to_vmem [thread:$0]  %s7, 16, %s66, [#allocation6]
    $region33: #{tpu_custom_call.1} parent=1 // pred_fallthru
      _
    // Predicated region
    $region34: #{tpu_custom_call.1} parent=1 // pred_check
      _
    $region35: #{tpu_custom_call.1} parent=1 // pred_check_branch
      %70 = sbr.rel (0) target = $region37
    $region36: #{tpu_custom_call.1} parent=1 // pred_region
      %s72 = ssub.s32 256, 256
      %73 = vsyncadd [#allocation9], %s72
      %s74 = sshll.u32 [#allocation8], 4
      %s75 = int_to_ptr.vmem [resolvable:$true] %s74
      %80 = dma.hbm_to_vmem [thread:$0]  %s8, 256, %s75, [#allocation9], 64, 64, 4
    $region37: #{tpu_custom_call.1} parent=1 // pred_fallthru
      _
    // Predicated region
    $region38: #{tpu_custom_call.1} parent=1 // pred_check
      _
    $region39: #{tpu_custom_call.1} parent=1 // pred_check_branch
      %82 = sbr.rel (0) target = $region41
    $region40: #{tpu_custom_call.1} parent=1 // pred_region
      %s84 = ssub.s32 16, 16
      %85 = vsyncadd [#allocation9], %s84
      %s87 = sshll.u32 [#allocation10], 4
      %s88 = int_to_ptr.vmem [resolvable:$true] %s87
      %90 = dma.hbm_to_vmem [thread:$0]  %s9, 16, %s88, [#allocation9]
    $region41: #{tpu_custom_call.1} parent=1 // pred_fallthru
      _
    // Predicated region
    $region42: #{tpu_custom_call.1} parent=1 // pred_check
      _
    $region43: #{tpu_custom_call.1} parent=1 // pred_check_branch
      %92 = sbr.rel (0) target = $region45
    $region44: #{tpu_custom_call.1} parent=1 // pred_region
      _
    $region45: #{tpu_custom_call.1} parent=1 // pred_fallthru
      _
    // Predicated region
    $region46: #{tpu_custom_call.1} parent=1 // pred_check
      _
    $region47: #{tpu_custom_call.1} parent=1 // pred_check_branch
      %94 = sbr.rel (0) target = $region49
    $region48: #{tpu_custom_call.1} parent=1 // pred_region
      %s96 = ssub.s32 16, 16
      %97 = vsyncadd [#allocation12], %s96
      %s99 = sshll.u32 [#allocation11], 4
      %s100 = int_to_ptr.vmem [resolvable:$true] %s99
      %102 = dma.hbm_to_vmem [thread:$0]  %s11, 16, %s100, [#allocation12]
    $region49: #{tpu_custom_call.1} parent=1 // pred_fallthru
      _
    // Predicated region
    $region50: #{tpu_custom_call.1} parent=1 // pred_check
      _
    $region51: #{tpu_custom_call.1} parent=1 // pred_check_branch
      %104 = sbr.rel (0) target = $region53
    $region52: #{tpu_custom_call.1} parent=1 // pred_region
      %s106 = ssub.s32 256, 256
      %107 = vsyncadd [#allocation12], %s106
      %s108 = sshll.u32 [#allocation13], 4
      %s109 = int_to_ptr.vmem [resolvable:$true] %s108
      %114 = dma.hbm_to_vmem [thread:$0]  %s12, 256, %s109, [#allocation12], 64, 64, 4
    $region53: #{tpu_custom_call.1} parent=1 // pred_fallthru
      _
    // Predicated region
    $region54: #{tpu_custom_call.1} parent=1 // pred_check
      _
    $region55: #{tpu_custom_call.1} parent=1 // pred_check_branch
      %116 = sbr.rel (0) target = $region57
    $region56: #{tpu_custom_call.1} parent=1 // pred_region
      %s118 = ssub.s32 16, 16
      %119 = vsyncadd [#allocation15], %s118
      %s121 = sshll.u32 [#allocation14], 4
      %s122 = int_to_ptr.vmem [resolvable:$true] %s121
      %124 = dma.hbm_to_vmem [thread:$0]  %s13, 16, %s122, [#allocation15]
    $region57: #{tpu_custom_call.1} parent=1 // pred_fallthru
      _
    // Predicated region
    $region58: #{tpu_custom_call.1} parent=1 // pred_check
      _
    $region59: #{tpu_custom_call.1} parent=1 // pred_check_branch
      %126 = sbr.rel (0) target = $region61
    $region60: #{tpu_custom_call.1} parent=1 // pred_region
      _
    $region61: #{tpu_custom_call.1} parent=1 // pred_fallthru
      _
    // Predicated region
    $region62: #{tpu_custom_call.1} parent=1 // pred_check
      _
    $region63: #{tpu_custom_call.1} parent=1 // pred_check_branch
      %128 = sbr.rel (0) target = $region65
    $region64: #{tpu_custom_call.1} parent=1 // pred_region
      %s130 = ssub.s32 16, 16
      %131 = vsyncadd [#allocation15], %s130
      %s133 = sshll.u32 [#allocation16], 4
      %s134 = int_to_ptr.vmem [resolvable:$true] %s133
      %136 = dma.hbm_to_vmem [thread:$0]  %s15, 16, %s134, [#allocation15]
    $region65: #{tpu_custom_call.1} parent=1 // pred_fallthru
      _
    // Predicated region
    $region66: #{tpu_custom_call.1} parent=1 // pred_check
      _
    $region67: #{tpu_custom_call.1} parent=1 // pred_check_branch
      %138 = sbr.rel (0) target = $region69
    $region68: #{tpu_custom_call.1} parent=1 // pred_region
      _
    $region69: #{tpu_custom_call.1} parent=1 // pred_fallthru
      _
    // Predicated region
    $region70: #{tpu_custom_call.1} parent=1 // pred_check
      _
    $region71: #{tpu_custom_call.1} parent=1 // pred_check_branch
      %140 = sbr.rel (0) target = $region73
    $region72: #{tpu_custom_call.1} parent=1 // pred_region
      _
    $region73: #{tpu_custom_call.1} parent=1 // pred_fallthru
      _
    // Predicated region
    $region74: #{tpu_custom_call.1} parent=1 // pred_check
      _
    $region75: #{tpu_custom_call.1} parent=1 // pred_check_branch
      %142 = sbr.rel (0) target = $region77
    $region76: #{tpu_custom_call.1} parent=1 // pred_region
      %143 = dma.done [#allocation3], 16
    $region77: #{tpu_custom_call.1} parent=1 // pred_fallthru
      _
    // Predicated region
    $region78: #{tpu_custom_call.1} parent=1 // pred_check
      _
    $region79: #{tpu_custom_call.1} parent=1 // pred_check_branch
      %145 = sbr.rel (0) target = $region81
    $region80: #{tpu_custom_call.1} parent=1 // pred_region
      %146 = dma.done [#allocation6], 16
    $region81: #{tpu_custom_call.1} parent=1 // pred_fallthru
      _
    // Predicated region
    $region82: #{tpu_custom_call.1} parent=1 // pred_check
      _
    $region83: #{tpu_custom_call.1} parent=1 // pred_check_branch
      %148 = sbr.rel (0) target = $region85
    $region84: #{tpu_custom_call.1} parent=1 // pred_region
      %149 = dma.done [#allocation6], 16
    $region85: #{tpu_custom_call.1} parent=1 // pred_fallthru
      _
    // Predicated region
    $region86: #{tpu_custom_call.1} parent=1 // pred_check
      _
    $region87: #{tpu_custom_call.1} parent=1 // pred_check_branch
      %151 = sbr.rel (0) target = $region89
    $region88: #{tpu_custom_call.1} parent=1 // pred_region
      %152 = dma.done [#allocation9], 256
    $region89: #{tpu_custom_call.1} parent=1 // pred_fallthru
      _
    // Predicated region
    $region90: #{tpu_custom_call.1} parent=1 // pred_check
      _
    $region91: #{tpu_custom_call.1} parent=1 // pred_check_branch
      %154 = sbr.rel (0) target = $region93
    $region92: #{tpu_custom_call.1} parent=1 // pred_region
      %155 = dma.done [#allocation9], 16
    $region93: #{tpu_custom_call.1} parent=1 // pred_fallthru
      _
    // Predicated region
    $region94: #{tpu_custom_call.1} parent=1 // pred_check
      _
    $region95: #{tpu_custom_call.1} parent=1 // pred_check_branch
      %157 = sbr.rel (0) target = $region97
    $region96: #{tpu_custom_call.1} parent=1 // pred_region
      %158 = dma.done [#allocation12], 16
    $region97: #{tpu_custom_call.1} parent=1 // pred_fallthru
      _
    // Predicated region
    $region98: #{tpu_custom_call.1} parent=1 // pred_check
      _
    $region99: #{tpu_custom_call.1} parent=1 // pred_check_branch
      %160 = sbr.rel (0) target = $region101
    $region100: #{tpu_custom_call.1} parent=1 // pred_region
      %161 = dma.done [#allocation12], 256
    $region101: #{tpu_custom_call.1} parent=1 // pred_fallthru
      _
    // Predicated region
    $region102: #{tpu_custom_call.1} parent=1 // pred_check
      _
    $region103: #{tpu_custom_call.1} parent=1 // pred_check_branch
      %163 = sbr.rel (0) target = $region105
    $region104: #{tpu_custom_call.1} parent=1 // pred_region
      %164 = dma.done [#allocation15], 16
    $region105: #{tpu_custom_call.1} parent=1 // pred_fallthru
      _
    // Predicated region
    $region106: #{tpu_custom_call.1} parent=1 // pred_check
      _
    $region107: #{tpu_custom_call.1} parent=1 // pred_check_branch
      %166 = sbr.rel (0) target = $region109
    $region108: #{tpu_custom_call.1} parent=1 // pred_region
      %167 = dma.done [#allocation15], 16
    $region109: #{tpu_custom_call.1} parent=1 // pred_fallthru
      _
    %v169 = vld [vmem:[%s0] sm:$0xf]
    %v170 = vld [vmem:[%s0 + $0x4] sm:$0xf]
    %v171 = vld [vmem:[%s0 + $0x8] sm:$0xf]
    %v172 = vld [vmem:[%s0 + $0xc] sm:$0xf]
    %v173 = vld [vmem:[%s0 + $0x10] sm:$0xf]
    %v174 = vld [vmem:[%s0 + $0x14] sm:$0xf]
    %v175 = vld [vmem:[%s0 + $0x18] sm:$0xf]
    %v176 = vld [vmem:[%s0 + $0x1c] sm:$0xf]
    %v177 = vld [vmem:[%s0 + $0x20] sm:$0xf]
    %v178 = vld [vmem:[%s0 + $0x24] sm:$0xf]
    %v179 = vld [vmem:[%s0 + $0x28] sm:$0xf]
    %v180 = vld [vmem:[%s0 + $0x2c] sm:$0xf]
    %v181 = vld [vmem:[%s2] sm:$0xf]
    %v182 = vld [vmem:[%s2 + $0x4] sm:$0xf]
    %v183 = vld [vmem:[%s2 + $0x8] sm:$0xf]
    %v184 = vld [vmem:[%s2 + $0xc] sm:$0xf]
    %v185 = vld [vmem:[%s2 + $0x10] sm:$0xf]
    %v186 = vld [vmem:[%s2 + $0x14] sm:$0xf]
    %v187 = vld [vmem:[%s2 + $0x18] sm:$0xf]
    %v188 = vld [vmem:[%s2 + $0x1c] sm:$0xf]
    %v189 = vld [vmem:[#allocation2] sm:$0x1]
    %v191 = vlaneseq
    %v192 = vshrl.u32 %v191, 7
    %v193 = vsub.s32 0, %v192
    %v194 = vrot.slane %v189, %v193
    %v208 = vunpack.c.l.b16 %v169
    %v209 = vunpack.c.l.b16 %v170
    %v210 = vunpack.c.l.b16 %v171
    %v211 = vunpack.c.l.b16 %v172
    %v212 = vunpack.c.l.b16 %v173
    %v213 = vunpack.c.l.b16 %v174
    %v214 = vunpack.c.l.b16 %v175
    %v215 = vunpack.c.l.b16 %v176
    %v216 = vunpack.c.l.b16 %v177
    %v217 = vunpack.c.l.b16 %v178
    %v218 = vunpack.c.l.b16 %v179
    %v219 = vunpack.c.l.b16 %v180
    %v220 = vpack.c.b16 %v209, %v208
    %v221 = vpack.c.b16 %v211, %v210
    %v222 = vpack.c.b16 %v213, %v212
    %v223 = vpack.c.b16 %v215, %v214
    %v224 = vpack.c.b16 %v217, %v216
    %v225 = vpack.c.b16 %v219, %v218
    %v234 = vunpack.c.l.b16 %v181
    %v235 = vunpack.c.l.b16 %v182
    %v236 = vunpack.c.l.b16 %v183
    %v237 = vunpack.c.l.b16 %v184
    %v238 = vunpack.c.l.b16 %v185
    %v239 = vunpack.c.l.b16 %v186
    %v240 = vunpack.c.l.b16 %v187
    %v241 = vunpack.c.l.b16 %v188
    %v242 = vpack.c.b16 %v235, %v234
    %v243 = vpack.c.b16 %v237, %v236
    %v244 = vpack.c.b16 %v239, %v238
    %v245 = vpack.c.b16 %v241, %v240
    %vm250 = vcmask 523264
    %v252 = vsel %vm250, %v220, 0
    %v255 = vsel %vm250, %v221, 0
    %v258 = vsel %vm250, %v222, 0
    %v261 = vsel %vm250, %v223, 0
    %v264 = vsel %vm250, %v224, 0
    %v267 = vsel %vm250, %v225, 0
    %269 = vmatprep.subr.bf16.mxu0 0
    %270 = vmatpush1.bf16.msra.mxu0 %v242
    %271 = vmatprep.subr.bf16.mxu0 0
    %272 = vmatpush1.bf16.msra.mxu0 %v243
    %273 = vmatprep.subr.bf16.mxu0 0
    %274 = vmatpush1.bf16.msra.mxu0 %v244
    %275 = vmatprep.subr.bf16.mxu0 0
    %276 = vmatpush1.bf16.msra.mxu0 %v245
    %277 = vmatprep.subr.bf16.mxu0 0
    %278 = vmatpush1.bf16.msra.mxu0 0
    %279 = vmatprep.subr.bf16.mxu0 0
    %280 = vmatpush1.bf16.msra.mxu0 0
    %281 = vmatprep.subr.bf16.mxu0 0
    %282 = vmatpush1.bf16.msra.mxu0 0
    %283 = vmatprep.subr.bf16.mxu0 0
    %284 = vmatpush1.bf16.msra.mxu0 0
    %285 = vmatprep.subr.bf16.mxu0 0
    %286 = vmatpush1.bf16.msra.mxu0 0
    %287 = vmatprep.subr.bf16.mxu0 0
    %288 = vmatpush1.bf16.msra.mxu0 0
    %289 = vmatprep.subr.bf16.mxu0 0
    %290 = vmatpush1.bf16.msra.mxu0 0
    %291 = vmatprep.subr.bf16.mxu0 0
    %292 = vmatpush1.bf16.msra.mxu0 0
    %293 = vmatprep.subr.bf16.mxu0 0
    %294 = vmatpush1.bf16.msra.mxu0 0
    %295 = vmatprep.subr.bf16.mxu0 0
    %296 = vmatpush1.bf16.msra.mxu0 0
    %297 = vmatprep.subr.bf16.mxu0 0
    %298 = vmatpush1.bf16.msra.mxu0 0
    %299 = vmatprep.subr.bf16.mxu0 0
    %300 = vmatpush1.bf16.msra.mxu0 0
    %301 = vmatprep.mubr.bf16.mxu0 0
    %302 = vmatmul.mubr.bf16.gmra.mrb[0].mxu0 %v252
    %v303 = vpop.f32.mrb[0].mxu0
    %v304 = vadd.f32 %v194, %v303
    %v305 = vpop.f32.mrb[0].mxu0
    %v306 = vpop.f32.mrb[0].mxu0
    %v307 = vadd.f32 %v194, %v306
    %v308 = vpop.f32.mrb[0].mxu0
    %309 = vmatprep.mubr.bf16.mxu0 0
    %310 = vmatmul.mubr.bf16.gmra.mrb[0].mxu0 %v255
    %v311 = vpop.f32.mrb[0].mxu0
    %v312 = vadd.f32 %v194, %v311
    %v313 = vpop.f32.mrb[0].mxu0
    %v314 = vpop.f32.mrb[0].mxu0
    %v315 = vadd.f32 %v194, %v314
    %v316 = vpop.f32.mrb[0].mxu0
    %317 = vmatprep.mubr.bf16.mxu0 0
    %318 = vmatmul.mubr.bf16.gmra.mrb[0].mxu0 %v258
    %v319 = vpop.f32.mrb[0].mxu0
    %v320 = vadd.f32 %v194, %v319
    %v321 = vpop.f32.mrb[0].mxu0
    %v322 = vpop.f32.mrb[0].mxu0
    %v323 = vadd.f32 %v194, %v322
    %v324 = vpop.f32.mrb[0].mxu0
    %325 = vmatprep.mubr.bf16.mxu0 0
    %326 = vmatmul.mubr.bf16.gmra.mrb[0].mxu0 %v261
    %v327 = vpop.f32.mrb[0].mxu0
    %v328 = vadd.f32 %v194, %v327
    %v329 = vpop.f32.mrb[0].mxu0
    %v330 = vpop.f32.mrb[0].mxu0
    %v331 = vadd.f32 %v194, %v330
    %v332 = vpop.f32.mrb[0].mxu0
    %333 = vmatprep.mubr.bf16.mxu0 0
    %334 = vmatmul.mubr.bf16.gmra.mrb[0].mxu0 %v264
    %v335 = vpop.f32.mrb[0].mxu0
    %v336 = vadd.f32 %v194, %v335
    %v337 = vpop.f32.mrb[0].mxu0
    %v338 = vpop.f32.mrb[0].mxu0
    %v339 = vadd.f32 %v194, %v338
    %v340 = vpop.f32.mrb[0].mxu0
    %341 = vmatprep.mubr.bf16.mxu0 0
    %342 = vmatmul.mubr.bf16.gmra.mrb[0].mxu0 %v267
    %v343 = vpop.f32.mrb[0].mxu0
    %v344 = vadd.f32 %v194, %v343
    %v345 = vpop.f32.mrb[0].mxu0
    %v346 = vpop.f32.mrb[0].mxu0
    %v347 = vadd.f32 %v194, %v346
    %v348 = vpop.f32.mrb[0].mxu0
    %349 = vdwg.mxu0
    %v350 = vld [vmem:[%s1] sm:$0xff]
    %v351 = vld [vmem:[%s1 + $0x8] sm:$0xff]
    %v352 = vld [vmem:[%s4] sm:$0xf]
    %v353 = vld [vmem:[%s4 + $0x4] sm:$0xf]
    %v354 = vld [vmem:[%s4 + $0x8] sm:$0xf]
    %v355 = vld [vmem:[%s4 + $0xc] sm:$0xf]
    %v356 = vld [vmem:[%s6] sm:$0xf]
    %v357 = vld [vmem:[%s6 + $0x4] sm:$0xf]
    %v358 = vld [vmem:[%s6 + $0x8] sm:$0xf]
    %v359 = vld [vmem:[%s6 + $0xc] sm:$0xf]
    %v360 = vld [vmem:[#allocation8] sm:$0xf]
    %v361 = vld [vmem:[#allocation8 + $0x4] sm:$0xf]
    %v362 = vld [vmem:[#allocation8 + $0x8] sm:$0xf]
    %v363 = vld [vmem:[#allocation8 + $0xc] sm:$0xf]
    %v364 = vld [vmem:[%s10] sm:$0xf]
    %v365 = vld [vmem:[%s10 + $0x4] sm:$0xf]
    %v366 = vld [vmem:[%s10 + $0x8] sm:$0xf]
    %v367 = vld [vmem:[%s10 + $0xc] sm:$0xf]
    %v368 = vld [vmem:[#allocation5] sm:$0x1]
    %v369 = vld [vmem:[#allocation7] sm:$0x1]
    %v370 = vld [vmem:[#allocation10] sm:$0x1]
    %v371 = vld [vmem:[#allocation11] sm:$0x1]
    %v372 = vld [vmem:[#allocation13] sm:$0xf]
    %v373 = vld [vmem:[#allocation13 + $0x4] sm:$0xf]
    %v374 = vld [vmem:[#allocation13 + $0x8] sm:$0xf]
    %v375 = vld [vmem:[#allocation13 + $0xc] sm:$0xf]
    %v376 = vld [vmem:[#allocation14] sm:$0x1]
    %v377 = vld [vmem:[%s14] sm:$0xf]
    %v378 = vld [vmem:[%s14 + $0x4] sm:$0xf]
    %v379 = vld [vmem:[%s14 + $0x8] sm:$0xf]
    %v380 = vld [vmem:[%s14 + $0xc] sm:$0xf]
    %v381 = vld [vmem:[%s14 + $0x10] sm:$0xf]
    %v382 = vld [vmem:[%s14 + $0x14] sm:$0xf]
    %v383 = vld [vmem:[%s14 + $0x18] sm:$0xf]
    %v384 = vld [vmem:[%s14 + $0x1c] sm:$0xf]
    %v385 = vld [vmem:[#allocation16] sm:$0x1]
    %v386 = vld [vmem:[%s16] sm:$0x3f]
    %v387 = vld [vmem:[%s17] sm:$0xff]
    %v388 = vld [vmem:[%s17 + $0x8] sm:$0xff]
    %v389 = vadd.f32 %v304, %v350
    %v390 = vadd.f32 %v307, %v351
    %v391 = vadd.f32 %v312, %v350
    %v392 = vadd.f32 %v315, %v351
    %v393 = vpack.c.bf16 %v390, %v389
    %v395 = vlaneseq
    %v396 = vshrl.u32 %v395, 7
    %v397 = vsub.s32 0, %v396
    %v398 = vrot.slane %v368, %v397
    %v404 = vunpack.c.l.b16 %v352
    %v405 = vunpack.c.l.b16 %v353
    %v406 = vunpack.c.l.b16 %v354
    %v407 = vunpack.c.l.b16 %v355
    %v408 = vpack.c.b16 %v405, %v404
    %v409 = vpack.c.b16 %v407, %v406
    %vm412 = vcmask 261120
    %v414 = vsel %vm412, %v393, 0
    %416 = vmatprep.subr.bf16.mxu0 0
    %417 = vmatpush1.bf16.msra.mxu0 %v408
    %418 = vmatprep.subr.bf16.mxu0 0
    %419 = vmatpush1.bf16.msra.mxu0 %v409
    %420 = vmatprep.subr.bf16.mxu0 0
    %421 = vmatpush1.bf16.msra.mxu0 0
    %422 = vmatprep.subr.bf16.mxu0 0
    %423 = vmatpush1.bf16.msra.mxu0 0
    %424 = vmatprep.subr.bf16.mxu0 0
    %425 = vmatpush1.bf16.msra.mxu0 0
    %426 = vmatprep.subr.bf16.mxu0 0
    %427 = vmatpush1.bf16.msra.mxu0 0
    %428 = vmatprep.subr.bf16.mxu0 0
    %429 = vmatpush1.bf16.msra.mxu0 0
    %430 = vmatprep.subr.bf16.mxu0 0
    %431 = vmatpush1.bf16.msra.mxu0 0
    %432 = vmatprep.subr.bf16.mxu0 0
    %433 = vmatpush1.bf16.msra.mxu0 0
    %434 = vmatprep.subr.bf16.mxu0 0
    %435 = vmatpush1.bf16.msra.mxu0 0
    %436 = vmatprep.subr.bf16.mxu0 0
    %437 = vmatpush1.bf16.msra.mxu0 0
    %438 = vmatprep.subr.bf16.mxu0 0
    %439 = vmatpush1.bf16.msra.mxu0 0
    %440 = vmatprep.subr.bf16.mxu0 0
    %441 = vmatpush1.bf16.msra.mxu0 0
    %442 = vmatprep.subr.bf16.mxu0 0
    %443 = vmatpush1.bf16.msra.mxu0 0
    %444 = vmatprep.subr.bf16.mxu0 0
    %445 = vmatpush1.bf16.msra.mxu0 0
    %446 = vmatprep.subr.bf16.mxu0 0
    %447 = vmatpush1.bf16.msra.mxu0 0
    %448 = vmatprep.mubr.bf16.mxu0 0
    %449 = vmatmul.mubr.bf16.gmra.mrb[0].mxu0 %v414
    %v450 = vpop.f32.mrb[0].mxu0
    %v451 = vadd.f32 %v398, %v450
    %v452 = vpop.f32.mrb[0].mxu0
    %v453 = vpop.f32.mrb[0].mxu0
    %v454 = vadd.f32 %v398, %v453
    %v455 = vpop.f32.mrb[0].mxu0
    %456 = vdwg.mxu0
    %v457 = vpack.c.bf16 %v392, %v391
    %v459 = vlaneseq
    %v460 = vshrl.u32 %v459, 7
    %v461 = vsub.s32 0, %v460
    %v462 = vrot.slane %v369, %v461
    %v468 = vunpack.c.l.b16 %v356
    %v469 = vunpack.c.l.b16 %v357
    %v470 = vunpack.c.l.b16 %v358
    %v471 = vunpack.c.l.b16 %v359
    %v472 = vpack.c.b16 %v469, %v468
    %v473 = vpack.c.b16 %v471, %v470
    %v477 = vsel %vm412, %v457, 0
    %479 = vmatprep.subr.bf16.mxu0 0
    %480 = vmatpush1.bf16.msra.mxu0 %v472
    %481 = vmatprep.subr.bf16.mxu0 0
    %482 = vmatpush1.bf16.msra.mxu0 %v473
    %483 = vmatprep.subr.bf16.mxu0 0
    %484 = vmatpush1.bf16.msra.mxu0 0
    %485 = vmatprep.subr.bf16.mxu0 0
    %486 = vmatpush1.bf16.msra.mxu0 0
    %487 = vmatprep.subr.bf16.mxu0 0
    %488 = vmatpush1.bf16.msra.mxu0 0
    %489 = vmatprep.subr.bf16.mxu0 0
    %490 = vmatpush1.bf16.msra.mxu0 0
    %491 = vmatprep.subr.bf16.mxu0 0
    %492 = vmatpush1.bf16.msra.mxu0 0
    %493 = vmatprep.subr.bf16.mxu0 0
    %494 = vmatpush1.bf16.msra.mxu0 0
    %495 = vmatprep.subr.bf16.mxu0 0
    %496 = vmatpush1.bf16.msra.mxu0 0
    %497 = vmatprep.subr.bf16.mxu0 0
    %498 = vmatpush1.bf16.msra.mxu0 0
    %499 = vmatprep.subr.bf16.mxu0 0
    %500 = vmatpush1.bf16.msra.mxu0 0
    %501 = vmatprep.subr.bf16.mxu0 0
    %502 = vmatpush1.bf16.msra.mxu0 0
    %503 = vmatprep.subr.bf16.mxu0 0
    %504 = vmatpush1.bf16.msra.mxu0 0
    %505 = vmatprep.subr.bf16.mxu0 0
    %506 = vmatpush1.bf16.msra.mxu0 0
    %507 = vmatprep.subr.bf16.mxu0 0
    %508 = vmatpush1.bf16.msra.mxu0 0
    %509 = vmatprep.subr.bf16.mxu0 0
    %510 = vmatpush1.bf16.msra.mxu0 0
    %511 = vmatprep.mubr.bf16.mxu0 0
    %512 = vmatmul.mubr.bf16.gmra.mrb[0].mxu0 %v477
    %v513 = vpop.f32.mrb[0].mxu0
    %v514 = vadd.f32 %v462, %v513
    %v515 = vpop.f32.mrb[0].mxu0
    %v516 = vpop.f32.mrb[0].mxu0
    %v517 = vadd.f32 %v462, %v516
    %v518 = vpop.f32.mrb[0].mxu0
    %519 = vdwg.mxu0
    %v520 = vpack.c.bf16 %v323, %v320
    %v522 = vlaneseq
    %v523 = vshrl.u32 %v522, 7
    %v524 = vsub.s32 0, %v523
    %v525 = vrot.slane %v370, %v524
    %v531 = vunpack.c.l.b16 %v360
    %v532 = vunpack.c.l.b16 %v361
    %v533 = vunpack.c.l.b16 %v362
    %v534 = vunpack.c.l.b16 %v363
    %v535 = vpack.c.b16 %v532, %v531
    %v536 = vpack.c.b16 %v534, %v533
    %v540 = vsel %vm412, %v520, 0
    %542 = vmatprep.subr.bf16.mxu0 0
    %543 = vmatpush1.bf16.msra.mxu0 %v535
    %544 = vmatprep.subr.bf16.mxu0 0
    %545 = vmatpush1.bf16.msra.mxu0 %v536
    %546 = vmatprep.subr.bf16.mxu0 0
    %547 = vmatpush1.bf16.msra.mxu0 0
    %548 = vmatprep.subr.bf16.mxu0 0
    %549 = vmatpush1.bf16.msra.mxu0 0
    %550 = vmatprep.subr.bf16.mxu0 0
    %551 = vmatpush1.bf16.msra.mxu0 0
    %552 = vmatprep.subr.bf16.mxu0 0
    %553 = vmatpush1.bf16.msra.mxu0 0
    %554 = vmatprep.subr.bf16.mxu0 0
    %555 = vmatpush1.bf16.msra.mxu0 0
    %556 = vmatprep.subr.bf16.mxu0 0
    %557 = vmatpush1.bf16.msra.mxu0 0
    %558 = vmatprep.subr.bf16.mxu0 0
    %559 = vmatpush1.bf16.msra.mxu0 0
    %560 = vmatprep.subr.bf16.mxu0 0
    %561 = vmatpush1.bf16.msra.mxu0 0
    %562 = vmatprep.subr.bf16.mxu0 0
    %563 = vmatpush1.bf16.msra.mxu0 0
    %564 = vmatprep.subr.bf16.mxu0 0
    %565 = vmatpush1.bf16.msra.mxu0 0
    %566 = vmatprep.subr.bf16.mxu0 0
    %567 = vmatpush1.bf16.msra.mxu0 0
    %568 = vmatprep.subr.bf16.mxu0 0
    %569 = vmatpush1.bf16.msra.mxu0 0
    %570 = vmatprep.subr.bf16.mxu0 0
    %571 = vmatpush1.bf16.msra.mxu0 0
    %572 = vmatprep.subr.bf16.mxu0 0
    %573 = vmatpush1.bf16.msra.mxu0 0
    %574 = vmatprep.mubr.bf16.mxu0 0
    %575 = vmatmul.mubr.bf16.gmra.mrb[0].mxu0 %v540
    %v576 = vpop.f32.mrb[0].mxu0
    %v577 = vadd.f32 %v525, %v576
    %v578 = vpop.f32.mrb[0].mxu0
    %v579 = vpop.f32.mrb[0].mxu0
    %v580 = vadd.f32 %v525, %v579
    %v581 = vpop.f32.mrb[0].mxu0
    %582 = vdwg.mxu0
    %v583 = vpack.c.bf16 %v454, %v451
    %v584 = vpack.c.bf16 %v517, %v514
    %vm585 = vcmask 64512
    %v587 = vsel %vm585, %v583, 0
    %v590 = vsel %vm585, %v584, 0
    %592 = vmatprep.subr.bf16.mxu0 0
    %593 = vmatpush1.bf16.xpose.msra.mxu0 %v590
    %594 = vmatprep.subr.bf16.mxu0 0
    %595 = vmatpush1.bf16.xpose.msra.mxu0 0
    %596 = vmatprep.subr.bf16.mxu0 0
    %597 = vmatpush1.bf16.xpose.msra.mxu0 0
    %598 = vmatprep.subr.bf16.mxu0 0
    %599 = vmatpush1.bf16.xpose.msra.mxu0 0
    %600 = vmatprep.subr.bf16.mxu0 0
    %601 = vmatpush1.bf16.xpose.msra.mxu0 0
    %602 = vmatprep.subr.bf16.mxu0 0
    %603 = vmatpush1.bf16.xpose.msra.mxu0 0
    %604 = vmatprep.subr.bf16.mxu0 0
    %605 = vmatpush1.bf16.xpose.msra.mxu0 0
    %606 = vmatprep.subr.bf16.mxu0 0
    %607 = vmatpush1.bf16.xpose.msra.mxu0 0
    %608 = vmatprep.subr.bf16.mxu0 0
    %609 = vmatpush1.bf16.xpose.msra.mxu0 0
    %610 = vmatprep.subr.bf16.mxu0 0
    %611 = vmatpush1.bf16.xpose.msra.mxu0 0
    %612 = vmatprep.subr.bf16.mxu0 0
    %613 = vmatpush1.bf16.xpose.msra.mxu0 0
    %614 = vmatprep.subr.bf16.mxu0 0
    %615 = vmatpush1.bf16.xpose.msra.mxu0 0
    %616 = vmatprep.subr.bf16.mxu0 0
    %617 = vmatpush1.bf16.xpose.msra.mxu0 0
    %618 = vmatprep.subr.bf16.mxu0 0
    %619 = vmatpush1.bf16.xpose.msra.mxu0 0
    %620 = vmatprep.subr.bf16.mxu0 0
    %621 = vmatpush1.bf16.xpose.msra.mxu0 0
    %622 = vmatprep.subr.bf16.mxu0 0
    %623 = vmatpush1.bf16.xpose.msra.mxu0 0
    %624 = vmatprep.mubr.bf16.mxu0 0
    %625 = vmatmul.mubr.bf16.gmra.mrb[0].mxu0 %v587
    %v626 = vpop.f32.mrb[0].mxu0
    %v627 = vadd.f32 0.0, %v626
    %v628 = vpop.f32.mrb[0].mxu0
    %v629 = vpop.f32.mrb[0].mxu0
    %v630 = vadd.f32 0.0, %v629
    %v631 = vpop.f32.mrb[0].mxu0
    %632 = vdwg.mxu0
    %v633 = vmul.f32 %v627, 0.35355338
    %v634 = vmul.f32 %v630, 0.35355338
    %vm635 = vcmask 130048
    %v636 = vsel %vm635, %v633, -inf
    %637 = vmax.xlane.f32.xlu0 %v636
    %v638 = vpop.xlane.xlu0 %637
    %v639 = vsel %vm635, %v634, -inf
    %640 = vmax.xlane.f32.xlu0 %v639
    %v641 = vpop.xlane.xlu0 %640
    %v642 = vsub.f32 %v633, %v638
    %v643 = vsub.f32 %v634, %v641
    %v644 = vmul.f32 %v642, 1.442695
    %v645 = vpow.pop %v644
    %v646 = vmul.f32 %v643, 1.442695
    %v647 = vpow.pop %v646
    %v648 = vsel %vm635, %v645, 0.0
    %649 = vadd.xlane.f32.xlu0 %v648
    %v650 = vpop.xlane.xlu0 %649
    %v651 = vsel %vm635, %v647, 0.0
    %652 = vadd.xlane.f32.xlu0 %v651
    %v653 = vpop.xlane.xlu0 %652
    %v654 = vrcp.pop %v650
    %v655 = vmul.f32 %v645, %v654
    %v656 = vrcp.pop %v653
    %v657 = vmul.f32 %v647, %v656
    %v658 = vpack.c.bf16 %v657, %v655
    %v659 = vpack.c.bf16 %v580, %v577
    %v661 = vsel %vm635, %v658, 0
    %663 = vmatprep.subr.bf16.mxu0 0
    %664 = vmatpush1.bf16.msra.mxu0 %v659
    %665 = vmatprep.subr.bf16.mxu0 0
    %666 = vmatpush1.bf16.msra.mxu0 0
    %667 = vmatprep.subr.bf16.mxu0 0
    %668 = vmatpush1.bf16.msra.mxu0 0
    %669 = vmatprep.subr.bf16.mxu0 0
    %670 = vmatpush1.bf16.msra.mxu0 0
    %671 = vmatprep.subr.bf16.mxu0 0
    %672 = vmatpush1.bf16.msra.mxu0 0
    %673 = vmatprep.subr.bf16.mxu0 0
    %674 = vmatpush1.bf16.msra.mxu0 0
    %675 = vmatprep.subr.bf16.mxu0 0
    %676 = vmatpush1.bf16.msra.mxu0 0
    %677 = vmatprep.subr.bf16.mxu0 0
    %678 = vmatpush1.bf16.msra.mxu0 0
    %679 = vmatprep.subr.bf16.mxu0 0
    %680 = vmatpush1.bf16.msra.mxu0 0
    %681 = vmatprep.subr.bf16.mxu0 0
    %682 = vmatpush1.bf16.msra.mxu0 0
    %683 = vmatprep.subr.bf16.mxu0 0
    %684 = vmatpush1.bf16.msra.mxu0 0
    %685 = vmatprep.subr.bf16.mxu0 0
    %686 = vmatpush1.bf16.msra.mxu0 0
    %687 = vmatprep.subr.bf16.mxu0 0
    %688 = vmatpush1.bf16.msra.mxu0 0
    %689 = vmatprep.subr.bf16.mxu0 0
    %690 = vmatpush1.bf16.msra.mxu0 0
    %691 = vmatprep.subr.bf16.mxu0 0
    %692 = vmatpush1.bf16.msra.mxu0 0
    %693 = vmatprep.subr.bf16.mxu0 0
    %694 = vmatpush1.bf16.msra.mxu0 0
    %695 = vmatprep.mubr.bf16.mxu0 0
    %696 = vmatmul.mubr.bf16.gmra.mrb[0].mxu0 %v661
    %v697 = vpop.f32.mrb[0].mxu0
    %v698 = vadd.f32 0.0, %v697
    %v699 = vpop.f32.mrb[0].mxu0
    %v700 = vpop.f32.mrb[0].mxu0
    %v701 = vadd.f32 0.0, %v700
    %v702 = vpop.f32.mrb[0].mxu0
    %703 = vdwg.mxu0
    %705 = vrot.lane.b32.xlu0 %v583, 120
    %v706 = vpop.permute.xlu0 %705
    %708 = vrot.lane.b32.xlu0 %v584, 120
    %v709 = vpop.permute.xlu0 %708
    %v711 = vsel %vm585, %v706, 0
    %v714 = vsel %vm585, %v709, 0
    %716 = vmatprep.subr.bf16.mxu0 0
    %717 = vmatpush1.bf16.xpose.msra.mxu0 %v714
    %718 = vmatprep.subr.bf16.mxu0 0
    %719 = vmatpush1.bf16.xpose.msra.mxu0 0
    %720 = vmatprep.subr.bf16.mxu0 0
    %721 = vmatpush1.bf16.xpose.msra.mxu0 0
    %722 = vmatprep.subr.bf16.mxu0 0
    %723 = vmatpush1.bf16.xpose.msra.mxu0 0
    %724 = vmatprep.subr.bf16.mxu0 0
    %725 = vmatpush1.bf16.xpose.msra.mxu0 0
    %726 = vmatprep.subr.bf16.mxu0 0
    %727 = vmatpush1.bf16.xpose.msra.mxu0 0
    %728 = vmatprep.subr.bf16.mxu0 0
    %729 = vmatpush1.bf16.xpose.msra.mxu0 0
    %730 = vmatprep.subr.bf16.mxu0 0
    %731 = vmatpush1.bf16.xpose.msra.mxu0 0
    %732 = vmatprep.subr.bf16.mxu0 0
    %733 = vmatpush1.bf16.xpose.msra.mxu0 0
    %734 = vmatprep.subr.bf16.mxu0 0
    %735 = vmatpush1.bf16.xpose.msra.mxu0 0
    %736 = vmatprep.subr.bf16.mxu0 0
    %737 = vmatpush1.bf16.xpose.msra.mxu0 0
    %738 = vmatprep.subr.bf16.mxu0 0
    %739 = vmatpush1.bf16.xpose.msra.mxu0 0
    %740 = vmatprep.subr.bf16.mxu0 0
    %741 = vmatpush1.bf16.xpose.msra.mxu0 0
    %742 = vmatprep.subr.bf16.mxu0 0
    %743 = vmatpush1.bf16.xpose.msra.mxu0 0
    %744 = vmatprep.subr.bf16.mxu0 0
    %745 = vmatpush1.bf16.xpose.msra.mxu0 0
    %746 = vmatprep.subr.bf16.mxu0 0
    %747 = vmatpush1.bf16.xpose.msra.mxu0 0
    %748 = vmatprep.mubr.bf16.mxu0 0
    %749 = vmatmul.mubr.bf16.gmra.mrb[0].mxu0 %v711
    %v750 = vpop.f32.mrb[0].mxu0
    %v751 = vadd.f32 0.0, %v750
    %v752 = vpop.f32.mrb[0].mxu0
    %v753 = vpop.f32.mrb[0].mxu0
    %v754 = vadd.f32 0.0, %v753
    %v755 = vpop.f32.mrb[0].mxu0
    %756 = vdwg.mxu0
    %v757 = vmul.f32 %v751, 0.35355338
    %v758 = vmul.f32 %v754, 0.35355338
    %v759 = vsel %vm635, %v757, -inf
    %760 = vmax.xlane.f32.xlu0 %v759
    %v761 = vpop.xlane.xlu0 %760
    %v762 = vsel %vm635, %v758, -inf
    %763 = vmax.xlane.f32.xlu0 %v762
    %v764 = vpop.xlane.xlu0 %763
    %v765 = vsub.f32 %v757, %v761
    %v766 = vsub.f32 %v758, %v764
    %v767 = vmul.f32 %v765, 1.442695
    %v768 = vpow.pop %v767
    %v769 = vmul.f32 %v766, 1.442695
    %v770 = vpow.pop %v769
    %v771 = vsel %vm635, %v768, 0.0
    %772 = vadd.xlane.f32.xlu0 %v771
    %v773 = vpop.xlane.xlu0 %772
    %v774 = vsel %vm635, %v770, 0.0
    %775 = vadd.xlane.f32.xlu0 %v774
    %v776 = vpop.xlane.xlu0 %775
    %v777 = vrcp.pop %v773
    %v778 = vmul.f32 %v768, %v777
    %v779 = vrcp.pop %v776
    %v780 = vmul.f32 %v770, %v779
    %v781 = vpack.c.bf16 %v780, %v778
    %783 = vrot.lane.b32.xlu0 %v659, 120
    %v784 = vpop.permute.xlu0 %783
    %v787 = vsel %vm635, %v781, 0
    %789 = vmatprep.subr.bf16.mxu0 0
    %790 = vmatpush1.bf16.msra.mxu0 %v784
    %791 = vmatprep.subr.bf16.mxu0 0
    %792 = vmatpush1.bf16.msra.mxu0 0
    %793 = vmatprep.subr.bf16.mxu0 0
    %794 = vmatpush1.bf16.msra.mxu0 0
    %795 = vmatprep.subr.bf16.mxu0 0
    %796 = vmatpush1.bf16.msra.mxu0 0
    %797 = vmatprep.subr.bf16.mxu0 0
    %798 = vmatpush1.bf16.msra.mxu0 0
    %799 = vmatprep.subr.bf16.mxu0 0
    %800 = vmatpush1.bf16.msra.mxu0 0
    %801 = vmatprep.subr.bf16.mxu0 0
    %802 = vmatpush1.bf16.msra.mxu0 0
    %803 = vmatprep.subr.bf16.mxu0 0
    %804 = vmatpush1.bf16.msra.mxu0 0
    %805 = vmatprep.subr.bf16.mxu0 0
    %806 = vmatpush1.bf16.msra.mxu0 0
    %807 = vmatprep.subr.bf16.mxu0 0
    %808 = vmatpush1.bf16.msra.mxu0 0
    %809 = vmatprep.subr.bf16.mxu0 0
    %810 = vmatpush1.bf16.msra.mxu0 0
    %811 = vmatprep.subr.bf16.mxu0 0
    %812 = vmatpush1.bf16.msra.mxu0 0
    %813 = vmatprep.subr.bf16.mxu0 0
    %814 = vmatpush1.bf16.msra.mxu0 0
    %815 = vmatprep.subr.bf16.mxu0 0
    %816 = vmatpush1.bf16.msra.mxu0 0
    %817 = vmatprep.subr.bf16.mxu0 0
    %818 = vmatpush1.bf16.msra.mxu0 0
    %819 = vmatprep.subr.bf16.mxu0 0
    %820 = vmatpush1.bf16.msra.mxu0 0
    %821 = vmatprep.mubr.bf16.mxu0 0
    %822 = vmatmul.mubr.bf16.gmra.mrb[0].mxu0 %v787
    %v823 = vpop.f32.mrb[0].mxu0
    %v824 = vadd.f32 0.0, %v823
    %v825 = vpop.f32.mrb[0].mxu0
    %v826 = vpop.f32.mrb[0].mxu0
    %v827 = vadd.f32 0.0, %v826
    %v828 = vpop.f32.mrb[0].mxu0
    %829 = vdwg.mxu0
    %830 = vrot.lane.b32.xlu0 %v583, 112
    %v831 = vpop.permute.xlu0 %830
    %832 = vrot.lane.b32.xlu0 %v584, 112
    %v833 = vpop.permute.xlu0 %832
    %v835 = vsel %vm585, %v831, 0
    %v838 = vsel %vm585, %v833, 0
    %840 = vmatprep.subr.bf16.mxu0 0
    %841 = vmatpush1.bf16.xpose.msra.mxu0 %v838
    %842 = vmatprep.subr.bf16.mxu0 0
    %843 = vmatpush1.bf16.xpose.msra.mxu0 0
    %844 = vmatprep.subr.bf16.mxu0 0
    %845 = vmatpush1.bf16.xpose.msra.mxu0 0
    %846 = vmatprep.subr.bf16.mxu0 0
    %847 = vmatpush1.bf16.xpose.msra.mxu0 0
    %848 = vmatprep.subr.bf16.mxu0 0
    %849 = vmatpush1.bf16.xpose.msra.mxu0 0
    %850 = vmatprep.subr.bf16.mxu0 0
    %851 = vmatpush1.bf16.xpose.msra.mxu0 0
    %852 = vmatprep.subr.bf16.mxu0 0
    %853 = vmatpush1.bf16.xpose.msra.mxu0 0
    %854 = vmatprep.subr.bf16.mxu0 0
    %855 = vmatpush1.bf16.xpose.msra.mxu0 0
    %856 = vmatprep.subr.bf16.mxu0 0
    %857 = vmatpush1.bf16.xpose.msra.mxu0 0
    %858 = vmatprep.subr.bf16.mxu0 0
    %859 = vmatpush1.bf16.xpose.msra.mxu0 0
    %860 = vmatprep.subr.bf16.mxu0 0
    %861 = vmatpush1.bf16.xpose.msra.mxu0 0
    %862 = vmatprep.subr.bf16.mxu0 0
    %863 = vmatpush1.bf16.xpose.msra.mxu0 0
    %864 = vmatprep.subr.bf16.mxu0 0
    %865 = vmatpush1.bf16.xpose.msra.mxu0 0
    %866 = vmatprep.subr.bf16.mxu0 0
    %867 = vmatpush1.bf16.xpose.msra.mxu0 0
    %868 = vmatprep.subr.bf16.mxu0 0
    %869 = vmatpush1.bf16.xpose.msra.mxu0 0
    %870 = vmatprep.subr.bf16.mxu0 0
    %871 = vmatpush1.bf16.xpose.msra.mxu0 0
    %872 = vmatprep.mubr.bf16.mxu0 0
    %873 = vmatmul.mubr.bf16.gmra.mrb[0].mxu0 %v835
    %v874 = vpop.f32.mrb[0].mxu0
    %v875 = vadd.f32 0.0, %v874
    %v876 = vpop.f32.mrb[0].mxu0
    %v877 = vpop.f32.mrb[0].mxu0
    %v878 = vadd.f32 0.0, %v877
    %v879 = vpop.f32.mrb[0].mxu0
    %880 = vdwg.mxu0
    %v881 = vmul.f32 %v875, 0.35355338
    %v882 = vmul.f32 %v878, 0.35355338
    %v883 = vsel %vm635, %v881, -inf
    %884 = vmax.xlane.f32.xlu0 %v883
    %v885 = vpop.xlane.xlu0 %884
    %v886 = vsel %vm635, %v882, -inf
    %887 = vmax.xlane.f32.xlu0 %v886
    %v888 = vpop.xlane.xlu0 %887
    %v889 = vsub.f32 %v881, %v885
    %v890 = vsub.f32 %v882, %v888
    %v891 = vmul.f32 %v889, 1.442695
    %v892 = vpow.pop %v891
    %v893 = vmul.f32 %v890, 1.442695
    %v894 = vpow.pop %v893
    %v895 = vsel %vm635, %v892, 0.0
    %896 = vadd.xlane.f32.xlu0 %v895
    %v897 = vpop.xlane.xlu0 %896
    %v898 = vsel %vm635, %v894, 0.0
    %899 = vadd.xlane.f32.xlu0 %v898
    %v900 = vpop.xlane.xlu0 %899
    %v901 = vrcp.pop %v897
    %v902 = vmul.f32 %v892, %v901
    %v903 = vrcp.pop %v900
    %v904 = vmul.f32 %v894, %v903
    %v905 = vpack.c.bf16 %v904, %v902
    %906 = vrot.lane.b32.xlu0 %v659, 112
    %v907 = vpop.permute.xlu0 %906
    %v910 = vsel %vm635, %v905, 0
    %912 = vmatprep.subr.bf16.mxu0 0
    %913 = vmatpush1.bf16.msra.mxu0 %v907
    %914 = vmatprep.subr.bf16.mxu0 0
    %915 = vmatpush1.bf16.msra.mxu0 0
    %916 = vmatprep.subr.bf16.mxu0 0
    %917 = vmatpush1.bf16.msra.mxu0 0
    %918 = vmatprep.subr.bf16.mxu0 0
    %919 = vmatpush1.bf16.msra.mxu0 0
    %920 = vmatprep.subr.bf16.mxu0 0
    %921 = vmatpush1.bf16.msra.mxu0 0
    %922 = vmatprep.subr.bf16.mxu0 0
    %923 = vmatpush1.bf16.msra.mxu0 0
    %924 = vmatprep.subr.bf16.mxu0 0
    %925 = vmatpush1.bf16.msra.mxu0 0
    %926 = vmatprep.subr.bf16.mxu0 0
    %927 = vmatpush1.bf16.msra.mxu0 0
    %928 = vmatprep.subr.bf16.mxu0 0
    %929 = vmatpush1.bf16.msra.mxu0 0
    %930 = vmatprep.subr.bf16.mxu0 0
    %931 = vmatpush1.bf16.msra.mxu0 0
    %932 = vmatprep.subr.bf16.mxu0 0
    %933 = vmatpush1.bf16.msra.mxu0 0
    %934 = vmatprep.subr.bf16.mxu0 0
    %935 = vmatpush1.bf16.msra.mxu0 0
    %936 = vmatprep.subr.bf16.mxu0 0
    %937 = vmatpush1.bf16.msra.mxu0 0
    %938 = vmatprep.subr.bf16.mxu0 0
    %939 = vmatpush1.bf16.msra.mxu0 0
    %940 = vmatprep.subr.bf16.mxu0 0
    %941 = vmatpush1.bf16.msra.mxu0 0
    %942 = vmatprep.subr.bf16.mxu0 0
    %943 = vmatpush1.bf16.msra.mxu0 0
    %944 = vmatprep.mubr.bf16.mxu0 0
    %945 = vmatmul.mubr.bf16.gmra.mrb[0].mxu0 %v910
    %v946 = vpop.f32.mrb[0].mxu0
    %v947 = vadd.f32 0.0, %v946
    %v948 = vpop.f32.mrb[0].mxu0
    %v949 = vpop.f32.mrb[0].mxu0
    %v950 = vadd.f32 0.0, %v949
    %v951 = vpop.f32.mrb[0].mxu0
    %952 = vdwg.mxu0
    %953 = vrot.lane.b32.xlu0 %v583, 104
    %v954 = vpop.permute.xlu0 %953
    %955 = vrot.lane.b32.xlu0 %v584, 104
    %v956 = vpop.permute.xlu0 %955
    %v958 = vsel %vm585, %v954, 0
    %v961 = vsel %vm585, %v956, 0
    %963 = vmatprep.subr.bf16.mxu0 0
    %964 = vmatpush1.bf16.xpose.msra.mxu0 %v961
    %965 = vmatprep.subr.bf16.mxu0 0
    %966 = vmatpush1.bf16.xpose.msra.mxu0 0
    %967 = vmatprep.subr.bf16.mxu0 0
    %968 = vmatpush1.bf16.xpose.msra.mxu0 0
    %969 = vmatprep.subr.bf16.mxu0 0
    %970 = vmatpush1.bf16.xpose.msra.mxu0 0
    %971 = vmatprep.subr.bf16.mxu0 0
    %972 = vmatpush1.bf16.xpose.msra.mxu0 0
    %973 = vmatprep.subr.bf16.mxu0 0
    %974 = vmatpush1.bf16.xpose.msra.mxu0 0
    %975 = vmatprep.subr.bf16.mxu0 0
    %976 = vmatpush1.bf16.xpose.msra.mxu0 0
    %977 = vmatprep.subr.bf16.mxu0 0
    %978 = vmatpush1.bf16.xpose.msra.mxu0 0
    %979 = vmatprep.subr.bf16.mxu0 0
    %980 = vmatpush1.bf16.xpose.msra.mxu0 0
    %981 = vmatprep.subr.bf16.mxu0 0
    %982 = vmatpush1.bf16.xpose.msra.mxu0 0
    %983 = vmatprep.subr.bf16.mxu0 0
    %984 = vmatpush1.bf16.xpose.msra.mxu0 0
    %985 = vmatprep.subr.bf16.mxu0 0
    %986 = vmatpush1.bf16.xpose.msra.mxu0 0
    %987 = vmatprep.subr.bf16.mxu0 0
    %988 = vmatpush1.bf16.xpose.msra.mxu0 0
    %989 = vmatprep.subr.bf16.mxu0 0
    %990 = vmatpush1.bf16.xpose.msra.mxu0 0
    %991 = vmatprep.subr.bf16.mxu0 0
    %992 = vmatpush1.bf16.xpose.msra.mxu0 0
    %993 = vmatprep.subr.bf16.mxu0 0
    %994 = vmatpush1.bf16.xpose.msra.mxu0 0
    %995 = vmatprep.mubr.bf16.mxu0 0
    %996 = vmatmul.mubr.bf16.gmra.mrb[0].mxu0 %v958
    %v997 = vpop.f32.mrb[0].mxu0
    %v998 = vadd.f32 0.0, %v997
    %v999 = vpop.f32.mrb[0].mxu0
    %v1000 = vpop.f32.mrb[0].mxu0
    %v1001 = vadd.f32 0.0, %v1000
    %v1002 = vpop.f32.mrb[0].mxu0
    %1003 = vdwg.mxu0
    %v1004 = vmul.f32 %v998, 0.35355338
    %v1005 = vmul.f32 %v1001, 0.35355338
    %v1006 = vsel %vm635, %v1004, -inf
    %1007 = vmax.xlane.f32.xlu0 %v1006
    %v1008 = vpop.xlane.xlu0 %1007
    %v1009 = vsel %vm635, %v1005, -inf
    %1010 = vmax.xlane.f32.xlu0 %v1009
    %v1011 = vpop.xlane.xlu0 %1010
    %v1012 = vsub.f32 %v1004, %v1008
    %v1013 = vsub.f32 %v1005, %v1011
    %v1014 = vmul.f32 %v1012, 1.442695
    %v1015 = vpow.pop %v1014
    %v1016 = vmul.f32 %v1013, 1.442695
    %v1017 = vpow.pop %v1016
    %v1018 = vsel %vm635, %v1015, 0.0
    %1019 = vadd.xlane.f32.xlu0 %v1018
    %v1020 = vpop.xlane.xlu0 %1019
    %v1021 = vsel %vm635, %v1017, 0.0
    %1022 = vadd.xlane.f32.xlu0 %v1021
    %v1023 = vpop.xlane.xlu0 %1022
    %v1024 = vrcp.pop %v1020
    %v1025 = vmul.f32 %v1015, %v1024
    %v1026 = vrcp.pop %v1023
    %v1027 = vmul.f32 %v1017, %v1026
    %v1028 = vpack.c.bf16 %v1027, %v1025
    %1029 = vrot.lane.b32.xlu0 %v659, 104
    %v1030 = vpop.permute.xlu0 %1029
    %v1033 = vsel %vm635, %v1028, 0
    %1035 = vmatprep.subr.bf16.mxu0 0
    %1036 = vmatpush1.bf16.msra.mxu0 %v1030
    %1037 = vmatprep.subr.bf16.mxu0 0
    %1038 = vmatpush1.bf16.msra.mxu0 0
    %1039 = vmatprep.subr.bf16.mxu0 0
    %1040 = vmatpush1.bf16.msra.mxu0 0
    %1041 = vmatprep.subr.bf16.mxu0 0
    %1042 = vmatpush1.bf16.msra.mxu0 0
    %1043 = vmatprep.subr.bf16.mxu0 0
    %1044 = vmatpush1.bf16.msra.mxu0 0
    %1045 = vmatprep.subr.bf16.mxu0 0
    %1046 = vmatpush1.bf16.msra.mxu0 0
    %1047 = vmatprep.subr.bf16.mxu0 0
    %1048 = vmatpush1.bf16.msra.mxu0 0
    %1049 = vmatprep.subr.bf16.mxu0 0
    %1050 = vmatpush1.bf16.msra.mxu0 0
    %1051 = vmatprep.subr.bf16.mxu0 0
    %1052 = vmatpush1.bf16.msra.mxu0 0
    %1053 = vmatprep.subr.bf16.mxu0 0
    %1054 = vmatpush1.bf16.msra.mxu0 0
    %1055 = vmatprep.subr.bf16.mxu0 0
    %1056 = vmatpush1.bf16.msra.mxu0 0
    %1057 = vmatprep.subr.bf16.mxu0 0
    %1058 = vmatpush1.bf16.msra.mxu0 0
    %1059 = vmatprep.subr.bf16.mxu0 0
    %1060 = vmatpush1.bf16.msra.mxu0 0
    %1061 = vmatprep.subr.bf16.mxu0 0
    %1062 = vmatpush1.bf16.msra.mxu0 0
    %1063 = vmatprep.subr.bf16.mxu0 0
    %1064 = vmatpush1.bf16.msra.mxu0 0
    %1065 = vmatprep.subr.bf16.mxu0 0
    %1066 = vmatpush1.bf16.msra.mxu0 0
    %1067 = vmatprep.mubr.bf16.mxu0 0
    %1068 = vmatmul.mubr.bf16.gmra.mrb[0].mxu0 %v1033
    %v1069 = vpop.f32.mrb[0].mxu0
    %v1070 = vadd.f32 0.0, %v1069
    %v1071 = vpop.f32.mrb[0].mxu0
    %v1072 = vpop.f32.mrb[0].mxu0
    %v1073 = vadd.f32 0.0, %v1072
    %v1074 = vpop.f32.mrb[0].mxu0
    %1075 = vdwg.mxu0
    %1078 = vrot.lane.b32.xlu0 %v824, 8
    %v1079 = vpop.permute.xlu0 %1078
    %1080 = vrot.lane.b32.xlu0 %v827, 8
    %v1081 = vpop.permute.xlu0 %1080
    %1086 = vrot.lane.b32.xlu0 %v947, 16
    %v1087 = vpop.permute.xlu0 %1086
    %1088 = vrot.lane.b32.xlu0 %v950, 16
    %v1089 = vpop.permute.xlu0 %1088
    %1094 = vrot.lane.b32.xlu0 %v1070, 24
    %v1095 = vpop.permute.xlu0 %1094
    %1096 = vrot.lane.b32.xlu0 %v1073, 24
    %v1097 = vpop.permute.xlu0 %1096
    %v1100 = vsel %vm585, %v698, %v1079
    %v1101 = vsel %vm585, %v701, %v1081
    %v1102 = vsel %vm635, %v1100, %v1087
    %v1103 = vsel %vm635, %v1101, %v1089
    %vm1104 = vcmask 195584
    %v1105 = vsel %vm1104, %v1102, %v1095
    %v1106 = vsel %vm1104, %v1103, %v1097
    %v1107 = vpack.c.bf16 %v1106, %v1105
    %v1109 = vlaneseq
    %v1110 = vshrl.u32 %v1109, 7
    %v1111 = vsub.s32 0, %v1110
    %v1112 = vrot.slane %v371, %v1111
    %v1118 = vunpack.c.l.b16 %v364
    %v1119 = vunpack.c.l.b16 %v365
    %v1120 = vunpack.c.l.b16 %v366
    %v1121 = vunpack.c.l.b16 %v367
    %v1122 = vpack.c.b16 %v1119, %v1118
    %v1123 = vpack.c.b16 %v1121, %v1120
    %v1127 = vsel %vm412, %v1107, 0
    %1129 = vmatprep.subr.bf16.mxu0 0
    %1130 = vmatpush1.bf16.msra.mxu0 %v1122
    %1131 = vmatprep.subr.bf16.mxu0 0
    %1132 = vmatpush1.bf16.msra.mxu0 %v1123
    %1133 = vmatprep.subr.bf16.mxu0 0
    %1134 = vmatpush1.bf16.msra.mxu0 0
    %1135 = vmatprep.subr.bf16.mxu0 0
    %1136 = vmatpush1.bf16.msra.mxu0 0
    %1137 = vmatprep.subr.bf16.mxu0 0
    %1138 = vmatpush1.bf16.msra.mxu0 0
    %1139 = vmatprep.subr.bf16.mxu0 0
    %1140 = vmatpush1.bf16.msra.mxu0 0
    %1141 = vmatprep.subr.bf16.mxu0 0
    %1142 = vmatpush1.bf16.msra.mxu0 0
    %1143 = vmatprep.subr.bf16.mxu0 0
    %1144 = vmatpush1.bf16.msra.mxu0 0
    %1145 = vmatprep.subr.bf16.mxu0 0
    %1146 = vmatpush1.bf16.msra.mxu0 0
    %1147 = vmatprep.subr.bf16.mxu0 0
    %1148 = vmatpush1.bf16.msra.mxu0 0
    %1149 = vmatprep.subr.bf16.mxu0 0
    %1150 = vmatpush1.bf16.msra.mxu0 0
    %1151 = vmatprep.subr.bf16.mxu0 0
    %1152 = vmatpush1.bf16.msra.mxu0 0
    %1153 = vmatprep.subr.bf16.mxu0 0
    %1154 = vmatpush1.bf16.msra.mxu0 0
    %1155 = vmatprep.subr.bf16.mxu0 0
    %1156 = vmatpush1.bf16.msra.mxu0 0
    %1157 = vmatprep.subr.bf16.mxu0 0
    %1158 = vmatpush1.bf16.msra.mxu0 0
    %1159 = vmatprep.subr.bf16.mxu0 0
    %1160 = vmatpush1.bf16.msra.mxu0 0
    %1161 = vmatprep.mubr.bf16.mxu0 0
    %1162 = vmatmul.mubr.bf16.gmra.mrb[0].mxu0 %v1127
    %v1163 = vpop.f32.mrb[0].mxu0
    %v1164 = vadd.f32 %v1112, %v1163
    %v1165 = vpop.f32.mrb[0].mxu0
    %v1166 = vpop.f32.mrb[0].mxu0
    %v1167 = vadd.f32 %v1112, %v1166
    %v1168 = vpop.f32.mrb[0].mxu0
    %1169 = vdwg.mxu0
    %v1170 = vadd.f32 %v389, %v1164
    %v1171 = vadd.f32 %v390, %v1167
    %v1172 = vsel %vm412, %v1170, 0.0
    %1173 = vadd.xlane.f32.xlu0 %v1172
    %v1174 = vpop.xlane.xlu0 %1173
    %v1175 = vsel %vm412, %v1171, 0.0
    %1176 = vadd.xlane.f32.xlu0 %v1175
    %v1177 = vpop.xlane.xlu0 %1176
    %v1178 = vrcp.pop 32.0
    %v1179 = vmul.f32 %v1174, %v1178
    %v1180 = vmul.f32 %v1177, %v1178
    %v1181 = vsub.f32 %v1170, %v1179
    %v1182 = vsub.f32 %v1171, %v1180
    %v1183 = vmul.f32 %v1181, %v1181
    %v1184 = vmul.f32 %v1182, %v1182
    %v1185 = vsel %vm412, %v1183, 0.0
    %1186 = vadd.xlane.f32.xlu0 %v1185
    %v1187 = vpop.xlane.xlu0 %1186
    %v1188 = vsel %vm412, %v1184, 0.0
    %1189 = vadd.xlane.f32.xlu0 %v1188
    %v1190 = vpop.xlane.xlu0 %1189
    %v1191 = vmul.f32 %v1187, %v1178
    %v1192 = vmul.f32 %v1190, %v1178
    %v1193 = vadd.f32 %v1191, 1e-05
    %v1194 = vadd.f32 %v1192, 1e-05
    %v1195 = vrsqrt.pop %v1193
    %v1196 = vrsqrt.pop %v1194
    %v1197 = vmul.f32 %v1181, %v1195
    %v1198 = vmul.f32 %v1182, %v1196
    %v1199 = vlaneseq
    %v1200 = vshrl.u32 %v1199, 7
    %v1201 = vsub.s32 0, %v1200
    %v1202 = vrot.slane %v386, %v1201
    %v1203 = vmul.f32 %v1197, %v1202
    %v1204 = vmul.f32 %v1198, %v1202
    %v1205 = vlaneseq
    %v1206 = vshrl.u32 %v1205, 7
    %v1207 = vsub.s32 1, %v1206
    %v1208 = vrot.slane %v386, %v1207
    %v1209 = vadd.f32 %v1203, %v1208
    %v1210 = vadd.f32 %v1204, %v1208
    %v1211 = vpack.c.bf16 %v1210, %v1209
    %v1213 = vlaneseq
    %v1214 = vshrl.u32 %v1213, 7
    %v1215 = vsub.s32 0, %v1214
    %v1216 = vrot.slane %v376, %v1215
    %v1222 = vunpack.c.l.b16 %v372
    %v1223 = vunpack.c.l.b16 %v373
    %v1224 = vunpack.c.l.b16 %v374
    %v1225 = vunpack.c.l.b16 %v375
    %v1226 = vpack.c.b16 %v1223, %v1222
    %v1227 = vpack.c.b16 %v1225, %v1224
    %v1231 = vsel %vm412, %v1211, 0
    %1233 = vmatprep.subr.bf16.mxu0 0
    %1234 = vmatpush1.bf16.msra.mxu0 %v1226
    %1235 = vmatprep.subr.bf16.mxu0 0
    %1236 = vmatpush1.bf16.msra.mxu0 %v1227
    %1237 = vmatprep.subr.bf16.mxu0 0
    %1238 = vmatpush1.bf16.msra.mxu0 0
    %1239 = vmatprep.subr.bf16.mxu0 0
    %1240 = vmatpush1.bf16.msra.mxu0 0
    %1241 = vmatprep.subr.bf16.mxu0 0
    %1242 = vmatpush1.bf16.msra.mxu0 0
    %1243 = vmatprep.subr.bf16.mxu0 0
    %1244 = vmatpush1.bf16.msra.mxu0 0
    %1245 = vmatprep.subr.bf16.mxu0 0
    %1246 = vmatpush1.bf16.msra.mxu0 0
    %1247 = vmatprep.subr.bf16.mxu0 0
    %1248 = vmatpush1.bf16.msra.mxu0 0
    %1249 = vmatprep.subr.bf16.mxu0 0
    %1250 = vmatpush1.bf16.msra.mxu0 0
    %1251 = vmatprep.subr.bf16.mxu0 0
    %1252 = vmatpush1.bf16.msra.mxu0 0
    %1253 = vmatprep.subr.bf16.mxu0 0
    %1254 = vmatpush1.bf16.msra.mxu0 0
    %1255 = vmatprep.subr.bf16.mxu0 0
    %1256 = vmatpush1.bf16.msra.mxu0 0
    %1257 = vmatprep.subr.bf16.mxu0 0
    %1258 = vmatpush1.bf16.msra.mxu0 0
    %1259 = vmatprep.subr.bf16.mxu0 0
    %1260 = vmatpush1.bf16.msra.mxu0 0
    %1261 = vmatprep.subr.bf16.mxu0 0
    %1262 = vmatpush1.bf16.msra.mxu0 0
    %1263 = vmatprep.subr.bf16.mxu0 0
    %1264 = vmatpush1.bf16.msra.mxu0 0
    %1265 = vmatprep.mubr.bf16.mxu0 0
    %1266 = vmatmul.mubr.bf16.gmra.mrb[0].mxu0 %v1231
    %v1267 = vpop.f32.mrb[0].mxu0
    %v1268 = vadd.f32 %v1216, %v1267
    %v1269 = vpop.f32.mrb[0].mxu0
    %v1270 = vpop.f32.mrb[0].mxu0
    %v1271 = vadd.f32 %v1216, %v1270
    %v1272 = vpop.f32.mrb[0].mxu0
    %1273 = vdwg.mxu0
    %v1274 = vmax.f32 %v1268, 0.0
    %v1275 = vmax.f32 %v1271, 0.0
    %v1276 = vpack.c.bf16 %v1275, %v1274
    %v1278 = vlaneseq
    %v1279 = vshrl.u32 %v1278, 7
    %v1280 = vsub.s32 0, %v1279
    %v1281 = vrot.slane %v385, %v1280
    %v1291 = vunpack.c.l.b16 %v377
    %v1292 = vunpack.c.l.b16 %v378
    %v1293 = vunpack.c.l.b16 %v379
    %v1294 = vunpack.c.l.b16 %v380
    %v1295 = vunpack.c.l.b16 %v381
    %v1296 = vunpack.c.l.b16 %v382
    %v1297 = vunpack.c.l.b16 %v383
    %v1298 = vunpack.c.l.b16 %v384
    %v1299 = vpack.c.b16 %v1292, %v1291
    %v1300 = vpack.c.b16 %v1294, %v1293
    %v1301 = vpack.c.b16 %v1296, %v1295
    %v1302 = vpack.c.b16 %v1298, %v1297
    %v1308 = vsel %vm250, %v1276, 0
    %1310 = vmatprep.subr.bf16.mxu0 0
    %1311 = vmatpush1.bf16.msra.mxu0 %v1299
    %1312 = vmatprep.subr.bf16.mxu0 0
    %1313 = vmatpush1.bf16.msra.mxu0 %v1300
    %1314 = vmatprep.subr.bf16.mxu0 0
    %1315 = vmatpush1.bf16.msra.mxu0 %v1301
    %1316 = vmatprep.subr.bf16.mxu0 0
    %1317 = vmatpush1.bf16.msra.mxu0 %v1302
    %1318 = vmatprep.subr.bf16.mxu0 0
    %1319 = vmatpush1.bf16.msra.mxu0 0
    %1320 = vmatprep.subr.bf16.mxu0 0
    %1321 = vmatpush1.bf16.msra.mxu0 0
    %1322 = vmatprep.subr.bf16.mxu0 0
    %1323 = vmatpush1.bf16.msra.mxu0 0
    %1324 = vmatprep.subr.bf16.mxu0 0
    %1325 = vmatpush1.bf16.msra.mxu0 0
    %1326 = vmatprep.subr.bf16.mxu0 0
    %1327 = vmatpush1.bf16.msra.mxu0 0
    %1328 = vmatprep.subr.bf16.mxu0 0
    %1329 = vmatpush1.bf16.msra.mxu0 0
    %1330 = vmatprep.subr.bf16.mxu0 0
    %1331 = vmatpush1.bf16.msra.mxu0 0
    %1332 = vmatprep.subr.bf16.mxu0 0
    %1333 = vmatpush1.bf16.msra.mxu0 0
    %1334 = vmatprep.subr.bf16.mxu0 0
    %1335 = vmatpush1.bf16.msra.mxu0 0
    %1336 = vmatprep.subr.bf16.mxu0 0
    %1337 = vmatpush1.bf16.msra.mxu0 0
    %1338 = vmatprep.subr.bf16.mxu0 0
    %1339 = vmatpush1.bf16.msra.mxu0 0
    %1340 = vmatprep.subr.bf16.mxu0 0
    %1341 = vmatpush1.bf16.msra.mxu0 0
    %1342 = vmatprep.mubr.bf16.mxu0 0
    %1343 = vmatmul.mubr.bf16.gmra.mrb[0].mxu0 %v1308
    %v1344 = vpop.f32.mrb[0].mxu0
    %v1345 = vadd.f32 %v1281, %v1344
    %v1346 = vpop.f32.mrb[0].mxu0
    %v1347 = vpop.f32.mrb[0].mxu0
    %v1348 = vadd.f32 %v1281, %v1347
    %v1349 = vpop.f32.mrb[0].mxu0
    %1350 = vdwg.mxu0
    %v1351 = vadd.f32 %v1209, %v1345
    %v1352 = vadd.f32 %v1210, %v1348
    %v1353 = vsel %vm412, %v1351, 0.0
    %1354 = vadd.xlane.f32.xlu0 %v1353
    %v1355 = vpop.xlane.xlu0 %1354
    %v1356 = vsel %vm412, %v1352, 0.0
    %1357 = vadd.xlane.f32.xlu0 %v1356
    %v1358 = vpop.xlane.xlu0 %1357
    %v1359 = vmul.f32 %v1355, %v1178
    %v1360 = vmul.f32 %v1358, %v1178
    %v1361 = vsub.f32 %v1351, %v1359
    %v1362 = vsub.f32 %v1352, %v1360
    %v1363 = vmul.f32 %v1361, %v1361
    %v1364 = vmul.f32 %v1362, %v1362
    %v1365 = vsel %vm412, %v1363, 0.0
    %1366 = vadd.xlane.f32.xlu0 %v1365
    %v1367 = vpop.xlane.xlu0 %1366
    %v1368 = vsel %vm412, %v1364, 0.0
    %1369 = vadd.xlane.f32.xlu0 %v1368
    %v1370 = vpop.xlane.xlu0 %1369
    %v1371 = vmul.f32 %v1367, %v1178
    %v1372 = vmul.f32 %v1370, %v1178
    %v1373 = vadd.f32 %v1371, 1e-05
    %v1374 = vadd.f32 %v1372, 1e-05
    %v1375 = vrsqrt.pop %v1373
    %v1376 = vrsqrt.pop %v1374
    %v1377 = vmul.f32 %v1361, %v1375
    %v1378 = vmul.f32 %v1362, %v1376
    %v1379 = vlaneseq
    %v1380 = vshrl.u32 %v1379, 7
    %v1381 = vsub.s32 2, %v1380
    %v1382 = vrot.slane %v386, %v1381
    %v1383 = vmul.f32 %v1377, %v1382
    %v1384 = vmul.f32 %v1378, %v1382
    %v1385 = vlaneseq
    %v1386 = vshrl.u32 %v1385, 7
    %v1387 = vsub.s32 3, %v1386
    %v1388 = vrot.slane %v386, %v1387
    %v1389 = vadd.f32 %v1383, %v1388
    %v1390 = vadd.f32 %v1384, %v1388
    %v1391 = vsel %vm412, %v1389, 0.0
    %1392 = vadd.xlane.f32.xlu0 %v1391
    %v1393 = vpop.xlane.xlu0 %1392
    %v1394 = vsel %vm412, %v1390, 0.0
    %1395 = vadd.xlane.f32.xlu0 %v1394
    %v1396 = vpop.xlane.xlu0 %1395
    %v1397 = vmul.f32 %v1393, %v1178
    %v1398 = vmul.f32 %v1396, %v1178
    %v1399 = vsub.f32 %v1389, %v1397
    %v1400 = vsub.f32 %v1390, %v1398
    %v1401 = vmul.f32 %v1399, %v1399
    %v1402 = vmul.f32 %v1400, %v1400
    %v1403 = vsel %vm412, %v1401, 0.0
    %1404 = vadd.xlane.f32.xlu0 %v1403
    %v1405 = vpop.xlane.xlu0 %1404
    %v1406 = vsel %vm412, %v1402, 0.0
    %1407 = vadd.xlane.f32.xlu0 %v1406
    %v1408 = vpop.xlane.xlu0 %1407
    %v1409 = vmul.f32 %v1405, %v1178
    %v1410 = vmul.f32 %v1408, %v1178
    %v1411 = vadd.f32 %v1409, 1e-05
    %v1412 = vadd.f32 %v1410, 1e-05
    %v1413 = vrsqrt.pop %v1411
    %v1414 = vrsqrt.pop %v1412
    %v1415 = vmul.f32 %v1399, %v1413
    %v1416 = vmul.f32 %v1400, %v1414
    %v1417 = vlaneseq
    %v1418 = vshrl.u32 %v1417, 7
    %v1419 = vsub.s32 4, %v1418
    %v1420 = vrot.slane %v386, %v1419
    %v1421 = vmul.f32 %v1415, %v1420
    %v1422 = vmul.f32 %v1416, %v1420
    %v1423 = vlaneseq
    %v1424 = vshrl.u32 %v1423, 7
    %v1425 = vsub.s32 5, %v1424
    %v1426 = vrot.slane %v386, %v1425
    %v1427 = vadd.f32 %v1421, %v1426
    %v1428 = vadd.f32 %v1422, %v1426
    %v1429 = vpack.c.bf16 %v1428, %v1427
    %1430 = vxpose.xlu0.c.b16.start [1/8] %v1429, 128
    %1431 = vxpose.xlu0.c.b16.cont [2/8] 0, 128
    %1432 = vxpose.xlu0.c.b16.cont [3/8] 0, 128
    %1433 = vxpose.xlu0.c.b16.cont [4/8] 0, 128
    %1434 = vxpose.xlu0.c.b16.cont [5/8] 0, 128
    %1435 = vxpose.xlu0.c.b16.cont [6/8] 0, 128
    %1436 = vxpose.xlu0.c.b16.cont [7/8] 0, 128
    %1437 = vxpose.xlu0.c.b16.end [8/8] 0, 128
    %v1438 = vpop.trf.xlu0
    %v1439 = vpop.trf.xlu0
    %v1440 = vpop.trf.xlu0
    %v1441 = vpop.trf.xlu0
    %v1442 = vpop.trf.xlu0
    %v1443 = vpop.trf.xlu0
    %v1444 = vpop.trf.xlu0
    %v1445 = vpop.trf.xlu0
    %v1448 = vunpack.c.l.b16 %v387
    %v1449 = vunpack.c.h.b16 %v387
    %v1450 = vunpack.c.l.b16 %v388
    %v1451 = vunpack.c.h.b16 %v388
    %v1452 = vpack.c.b16 %v1450, %v1448
    %v1453 = vpack.c.b16 %v1451, %v1449
    %v1457 = vsel %vm635, %v1438, 0
    %v1460 = vsel %vm635, %v1439, 0
    %1462 = vmatprep.subr.bf16.mxu0 %v1453
    %1463 = vmatpush1.bf16.msra.mxu0 %v1452
    %1464 = vmatprep.subr.bf16.mxu0 0
    %1465 = vmatpush1.bf16.msra.mxu0 0
    %1466 = vmatprep.subr.bf16.mxu0 0
    %1467 = vmatpush1.bf16.msra.mxu0 0
    %1468 = vmatprep.subr.bf16.mxu0 0
    %1469 = vmatpush1.bf16.msra.mxu0 0
    %1470 = vmatprep.subr.bf16.mxu0 0
    %1471 = vmatpush1.bf16.msra.mxu0 0
    %1472 = vmatprep.subr.bf16.mxu0 0
    %1473 = vmatpush1.bf16.msra.mxu0 0
    %1474 = vmatprep.subr.bf16.mxu0 0
    %1475 = vmatpush1.bf16.msra.mxu0 0
    %1476 = vmatprep.subr.bf16.mxu0 0
    %1477 = vmatpush1.bf16.msra.mxu0 0
    %1478 = vmatprep.subr.bf16.mxu0 0
    %1479 = vmatpush1.bf16.msra.mxu0 0
    %1480 = vmatprep.subr.bf16.mxu0 0
    %1481 = vmatpush1.bf16.msra.mxu0 0
    %1482 = vmatprep.subr.bf16.mxu0 0
    %1483 = vmatpush1.bf16.msra.mxu0 0
    %1484 = vmatprep.subr.bf16.mxu0 0
    %1485 = vmatpush1.bf16.msra.mxu0 0
    %1486 = vmatprep.subr.bf16.mxu0 0
    %1487 = vmatpush1.bf16.msra.mxu0 0
    %1488 = vmatprep.subr.bf16.mxu0 0
    %1489 = vmatpush1.bf16.msra.mxu0 0
    %1490 = vmatprep.subr.bf16.mxu0 0
    %1491 = vmatpush1.bf16.msra.mxu0 0
    %1492 = vmatprep.subr.bf16.mxu0 0
    %1493 = vmatpush1.bf16.msra.mxu0 0
    %1494 = vmatprep.mubr.bf16.mxu0 0
    %1495 = vmatmul.mubr.bf16.gmra.mrb[0].mxu0 %v1457
    %v1496 = vpop.f32.mrb[0].mxu0
    %v1497 = vadd.f32 0.0, %v1496
    %v1498 = vpop.f32.mrb[0].mxu0
    %v1499 = vadd.f32 0.0, %v1498
    %v1500 = vpop.f32.mrb[0].mxu0
    %v1501 = vadd.f32 0.0, %v1500
    %v1502 = vpop.f32.mrb[0].mxu0
    %v1503 = vadd.f32 0.0, %v1502
    %1504 = vmatprep.mubr.bf16.mxu0 0
    %1505 = vmatmul.mubr.bf16.gmra.mrb[0].mxu0 %v1460
    %v1506 = vpop.f32.mrb[0].mxu0
    %v1507 = vadd.f32 0.0, %v1506
    %v1508 = vpop.f32.mrb[0].mxu0
    %v1509 = vadd.f32 0.0, %v1508
    %v1510 = vpop.f32.mrb[0].mxu0
    %v1511 = vadd.f32 0.0, %v1510
    %v1512 = vpop.f32.mrb[0].mxu0
    %v1513 = vadd.f32 0.0, %v1512
    %1514 = vdwg.mxu0
    %1515 = vst [vmem:[#allocation17] sm:$0xff] %v1497
    %1516 = vst [vmem:[#allocation17 + $0x8] sm:$0xff] %v1499
    %1517 = vst [vmem:[#allocation17 + $0x10] sm:$0xff] %v1501
    %1518 = vst [vmem:[#allocation17 + $0x18] sm:$0xff] %v1503
    %1519 = vst [vmem:[#allocation17 + $0x20] sm:$0xff] %v1507
    %1520 = vst [vmem:[#allocation17 + $0x28] sm:$0xff] %v1509
    %1521 = vst [vmem:[#allocation17 + $0x30] sm:$0xff] %v1511
    %1522 = vst [vmem:[#allocation17 + $0x38] sm:$0xff] %v1513
    %v1523 = vadd.f32 %v328, %v350
    %v1524 = vadd.f32 %v331, %v351
    %v1525 = vadd.f32 %v336, %v350
    %v1526 = vadd.f32 %v339, %v351
    %v1527 = vpack.c.bf16 %v1524, %v1523
    %v1529 = vsel %vm412, %v1527, 0
    %1531 = vmatprep.subr.bf16.mxu0 0
    %1532 = vmatpush1.bf16.msra.mxu0 %v408
    %1533 = vmatprep.subr.bf16.mxu0 0
    %1534 = vmatpush1.bf16.msra.mxu0 %v409
    %1535 = vmatprep.subr.bf16.mxu0 0
    %1536 = vmatpush1.bf16.msra.mxu0 0
    %1537 = vmatprep.subr.bf16.mxu0 0
    %1538 = vmatpush1.bf16.msra.mxu0 0
    %1539 = vmatprep.subr.bf16.mxu0 0
    %1540 = vmatpush1.bf16.msra.mxu0 0
    %1541 = vmatprep.subr.bf16.mxu0 0
    %1542 = vmatpush1.bf16.msra.mxu0 0
    %1543 = vmatprep.subr.bf16.mxu0 0
    %1544 = vmatpush1.bf16.msra.mxu0 0
    %1545 = vmatprep.subr.bf16.mxu0 0
    %1546 = vmatpush1.bf16.msra.mxu0 0
    %1547 = vmatprep.subr.bf16.mxu0 0
    %1548 = vmatpush1.bf16.msra.mxu0 0
    %1549 = vmatprep.subr.bf16.mxu0 0
    %1550 = vmatpush1.bf16.msra.mxu0 0
    %1551 = vmatprep.subr.bf16.mxu0 0
    %1552 = vmatpush1.bf16.msra.mxu0 0
    %1553 = vmatprep.subr.bf16.mxu0 0
    %1554 = vmatpush1.bf16.msra.mxu0 0
    %1555 = vmatprep.subr.bf16.mxu0 0
    %1556 = vmatpush1.bf16.msra.mxu0 0
    %1557 = vmatprep.subr.bf16.mxu0 0
    %1558 = vmatpush1.bf16.msra.mxu0 0
    %1559 = vmatprep.subr.bf16.mxu0 0
    %1560 = vmatpush1.bf16.msra.mxu0 0
    %1561 = vmatprep.subr.bf16.mxu0 0
    %1562 = vmatpush1.bf16.msra.mxu0 0
    %1563 = vmatprep.mubr.bf16.mxu0 0
    %1564 = vmatmul.mubr.bf16.gmra.mrb[0].mxu0 %v1529
    %v1565 = vpop.f32.mrb[0].mxu0
    %v1566 = vadd.f32 %v398, %v1565
    %v1567 = vpop.f32.mrb[0].mxu0
    %v1568 = vpop.f32.mrb[0].mxu0
    %v1569 = vadd.f32 %v398, %v1568
    %v1570 = vpop.f32.mrb[0].mxu0
    %1571 = vdwg.mxu0
    %v1572 = vpack.c.bf16 %v1526, %v1525
    %v1574 = vsel %vm412, %v1572, 0
    %1576 = vmatprep.subr.bf16.mxu0 0
    %1577 = vmatpush1.bf16.msra.mxu0 %v472
    %1578 = vmatprep.subr.bf16.mxu0 0
    %1579 = vmatpush1.bf16.msra.mxu0 %v473
    %1580 = vmatprep.subr.bf16.mxu0 0
    %1581 = vmatpush1.bf16.msra.mxu0 0
    %1582 = vmatprep.subr.bf16.mxu0 0
    %1583 = vmatpush1.bf16.msra.mxu0 0
    %1584 = vmatprep.subr.bf16.mxu0 0
    %1585 = vmatpush1.bf16.msra.mxu0 0
    %1586 = vmatprep.subr.bf16.mxu0 0
    %1587 = vmatpush1.bf16.msra.mxu0 0
    %1588 = vmatprep.subr.bf16.mxu0 0
    %1589 = vmatpush1.bf16.msra.mxu0 0
    %1590 = vmatprep.subr.bf16.mxu0 0
    %1591 = vmatpush1.bf16.msra.mxu0 0
    %1592 = vmatprep.subr.bf16.mxu0 0
    %1593 = vmatpush1.bf16.msra.mxu0 0
    %1594 = vmatprep.subr.bf16.mxu0 0
    %1595 = vmatpush1.bf16.msra.mxu0 0
    %1596 = vmatprep.subr.bf16.mxu0 0
    %1597 = vmatpush1.bf16.msra.mxu0 0
    %1598 = vmatprep.subr.bf16.mxu0 0
    %1599 = vmatpush1.bf16.msra.mxu0 0
    %1600 = vmatprep.subr.bf16.mxu0 0
    %1601 = vmatpush1.bf16.msra.mxu0 0
    %1602 = vmatprep.subr.bf16.mxu0 0
    %1603 = vmatpush1.bf16.msra.mxu0 0
    %1604 = vmatprep.subr.bf16.mxu0 0
    %1605 = vmatpush1.bf16.msra.mxu0 0
    %1606 = vmatprep.subr.bf16.mxu0 0
    %1607 = vmatpush1.bf16.msra.mxu0 0
    %1608 = vmatprep.mubr.bf16.mxu0 0
    %1609 = vmatmul.mubr.bf16.gmra.mrb[0].mxu0 %v1574
    %v1610 = vpop.f32.mrb[0].mxu0
    %v1611 = vadd.f32 %v462, %v1610
    %v1612 = vpop.f32.mrb[0].mxu0
    %v1613 = vpop.f32.mrb[0].mxu0
    %v1614 = vadd.f32 %v462, %v1613
    %v1615 = vpop.f32.mrb[0].mxu0
    %1616 = vdwg.mxu0
    %v1617 = vpack.c.bf16 %v347, %v344
    %v1619 = vsel %vm412, %v1617, 0
    %1621 = vmatprep.subr.bf16.mxu0 0
    %1622 = vmatpush1.bf16.msra.mxu0 %v535
    %1623 = vmatprep.subr.bf16.mxu0 0
    %1624 = vmatpush1.bf16.msra.mxu0 %v536
    %1625 = vmatprep.subr.bf16.mxu0 0
    %1626 = vmatpush1.bf16.msra.mxu0 0
    %1627 = vmatprep.subr.bf16.mxu0 0
    %1628 = vmatpush1.bf16.msra.mxu0 0
    %1629 = vmatprep.subr.bf16.mxu0 0
    %1630 = vmatpush1.bf16.msra.mxu0 0
    %1631 = vmatprep.subr.bf16.mxu0 0
    %1632 = vmatpush1.bf16.msra.mxu0 0
    %1633 = vmatprep.subr.bf16.mxu0 0
    %1634 = vmatpush1.bf16.msra.mxu0 0
    %1635 = vmatprep.subr.bf16.mxu0 0
    %1636 = vmatpush1.bf16.msra.mxu0 0
    %1637 = vmatprep.subr.bf16.mxu0 0
    %1638 = vmatpush1.bf16.msra.mxu0 0
    %1639 = vmatprep.subr.bf16.mxu0 0
    %1640 = vmatpush1.bf16.msra.mxu0 0
    %1641 = vmatprep.subr.bf16.mxu0 0
    %1642 = vmatpush1.bf16.msra.mxu0 0
    %1643 = vmatprep.subr.bf16.mxu0 0
    %1644 = vmatpush1.bf16.msra.mxu0 0
    %1645 = vmatprep.subr.bf16.mxu0 0
    %1646 = vmatpush1.bf16.msra.mxu0 0
    %1647 = vmatprep.subr.bf16.mxu0 0
    %1648 = vmatpush1.bf16.msra.mxu0 0
    %1649 = vmatprep.subr.bf16.mxu0 0
    %1650 = vmatpush1.bf16.msra.mxu0 0
    %1651 = vmatprep.subr.bf16.mxu0 0
    %1652 = vmatpush1.bf16.msra.mxu0 0
    %1653 = vmatprep.mubr.bf16.mxu0 0
    %1654 = vmatmul.mubr.bf16.gmra.mrb[0].mxu0 %v1619
    %v1655 = vpop.f32.mrb[0].mxu0
    %v1656 = vadd.f32 %v525, %v1655
    %v1657 = vpop.f32.mrb[0].mxu0
    %v1658 = vpop.f32.mrb[0].mxu0
    %v1659 = vadd.f32 %v525, %v1658
    %v1660 = vpop.f32.mrb[0].mxu0
    %1661 = vdwg.mxu0
    %v1662 = vpack.c.bf16 %v1569, %v1566
    %v1663 = vpack.c.bf16 %v1614, %v1611
    %v1665 = vsel %vm585, %v1662, 0
    %v1668 = vsel %vm585, %v1663, 0
    %1670 = vmatprep.subr.bf16.mxu0 0
    %1671 = vmatpush1.bf16.xpose.msra.mxu0 %v1668
    %1672 = vmatprep.subr.bf16.mxu0 0
    %1673 = vmatpush1.bf16.xpose.msra.mxu0 0
    %1674 = vmatprep.subr.bf16.mxu0 0
    %1675 = vmatpush1.bf16.xpose.msra.mxu0 0
    %1676 = vmatprep.subr.bf16.mxu0 0
    %1677 = vmatpush1.bf16.xpose.msra.mxu0 0
    %1678 = vmatprep.subr.bf16.mxu0 0
    %1679 = vmatpush1.bf16.xpose.msra.mxu0 0
    %1680 = vmatprep.subr.bf16.mxu0 0
    %1681 = vmatpush1.bf16.xpose.msra.mxu0 0
    %1682 = vmatprep.subr.bf16.mxu0 0
    %1683 = vmatpush1.bf16.xpose.msra.mxu0 0
    %1684 = vmatprep.subr.bf16.mxu0 0
    %1685 = vmatpush1.bf16.xpose.msra.mxu0 0
    %1686 = vmatprep.subr.bf16.mxu0 0
    %1687 = vmatpush1.bf16.xpose.msra.mxu0 0
    %1688 = vmatprep.subr.bf16.mxu0 0
    %1689 = vmatpush1.bf16.xpose.msra.mxu0 0
    %1690 = vmatprep.subr.bf16.mxu0 0
    %1691 = vmatpush1.bf16.xpose.msra.mxu0 0
    %1692 = vmatprep.subr.bf16.mxu0 0
    %1693 = vmatpush1.bf16.xpose.msra.mxu0 0
    %1694 = vmatprep.subr.bf16.mxu0 0
    %1695 = vmatpush1.bf16.xpose.msra.mxu0 0
    %1696 = vmatprep.subr.bf16.mxu0 0
    %1697 = vmatpush1.bf16.xpose.msra.mxu0 0
    %1698 = vmatprep.subr.bf16.mxu0 0
    %1699 = vmatpush1.bf16.xpose.msra.mxu0 0
    %1700 = vmatprep.subr.bf16.mxu0 0
    %1701 = vmatpush1.bf16.xpose.msra.mxu0 0
    %1702 = vmatprep.mubr.bf16.mxu0 0
    %1703 = vmatmul.mubr.bf16.gmra.mrb[0].mxu0 %v1665
    %v1704 = vpop.f32.mrb[0].mxu0
    %v1705 = vadd.f32 0.0, %v1704
    %v1706 = vpop.f32.mrb[0].mxu0
    %v1707 = vpop.f32.mrb[0].mxu0
    %v1708 = vadd.f32 0.0, %v1707
    %v1709 = vpop.f32.mrb[0].mxu0
    %1710 = vdwg.mxu0
    %v1711 = vmul.f32 %v1705, 0.35355338
    %v1712 = vmul.f32 %v1708, 0.35355338
    %v1713 = vsel %vm635, %v1711, -inf
    %1714 = vmax.xlane.f32.xlu0 %v1713
    %v1715 = vpop.xlane.xlu0 %1714
    %v1716 = vsel %vm635, %v1712, -inf
    %1717 = vmax.xlane.f32.xlu0 %v1716
    %v1718 = vpop.xlane.xlu0 %1717
    %v1719 = vsub.f32 %v1711, %v1715
    %v1720 = vsub.f32 %v1712, %v1718
    %v1721 = vmul.f32 %v1719, 1.442695
    %v1722 = vpow.pop %v1721
    %v1723 = vmul.f32 %v1720, 1.442695
    %v1724 = vpow.pop %v1723
    %v1725 = vsel %vm635, %v1722, 0.0
    %1726 = vadd.xlane.f32.xlu0 %v1725
    %v1727 = vpop.xlane.xlu0 %1726
    %v1728 = vsel %vm635, %v1724, 0.0
    %1729 = vadd.xlane.f32.xlu0 %v1728
    %v1730 = vpop.xlane.xlu0 %1729
    %v1731 = vrcp.pop %v1727
    %v1732 = vmul.f32 %v1722, %v1731
    %v1733 = vrcp.pop %v1730
    %v1734 = vmul.f32 %v1724, %v1733
    %v1735 = vpack.c.bf16 %v1734, %v1732
    %v1736 = vpack.c.bf16 %v1659, %v1656
    %v1738 = vsel %vm635, %v1735, 0
    %1740 = vmatprep.subr.bf16.mxu0 0
    %1741 = vmatpush1.bf16.msra.mxu0 %v1736
    %1742 = vmatprep.subr.bf16.mxu0 0
    %1743 = vmatpush1.bf16.msra.mxu0 0
    %1744 = vmatprep.subr.bf16.mxu0 0
    %1745 = vmatpush1.bf16.msra.mxu0 0
    %1746 = vmatprep.subr.bf16.mxu0 0
    %1747 = vmatpush1.bf16.msra.mxu0 0
    %1748 = vmatprep.subr.bf16.mxu0 0
    %1749 = vmatpush1.bf16.msra.mxu0 0
    %1750 = vmatprep.subr.bf16.mxu0 0
    %1751 = vmatpush1.bf16.msra.mxu0 0
    %1752 = vmatprep.subr.bf16.mxu0 0
    %1753 = vmatpush1.bf16.msra.mxu0 0
    %1754 = vmatprep.subr.bf16.mxu0 0
    %1755 = vmatpush1.bf16.msra.mxu0 0
    %1756 = vmatprep.subr.bf16.mxu0 0
    %1757 = vmatpush1.bf16.msra.mxu0 0
    %1758 = vmatprep.subr.bf16.mxu0 0
    %1759 = vmatpush1.bf16.msra.mxu0 0
    %1760 = vmatprep.subr.bf16.mxu0 0
    %1761 = vmatpush1.bf16.msra.mxu0 0
    %1762 = vmatprep.subr.bf16.mxu0 0
    %1763 = vmatpush1.bf16.msra.mxu0 0
    %1764 = vmatprep.subr.bf16.mxu0 0
    %1765 = vmatpush1.bf16.msra.mxu0 0
    %1766 = vmatprep.subr.bf16.mxu0 0
    %1767 = vmatpush1.bf16.msra.mxu0 0
    %1768 = vmatprep.subr.bf16.mxu0 0
    %1769 = vmatpush1.bf16.msra.mxu0 0
    %1770 = vmatprep.subr.bf16.mxu0 0
    %1771 = vmatpush1.bf16.msra.mxu0 0
    %1772 = vmatprep.mubr.bf16.mxu0 0
    %1773 = vmatmul.mubr.bf16.gmra.mrb[0].mxu0 %v1738
    %v1774 = vpop.f32.mrb[0].mxu0
    %v1775 = vadd.f32 0.0, %v1774
    %v1776 = vpop.f32.mrb[0].mxu0
    %v1777 = vpop.f32.mrb[0].mxu0
    %v1778 = vadd.f32 0.0, %v1777
    %v1779 = vpop.f32.mrb[0].mxu0
    %1780 = vdwg.mxu0
    %1782 = vrot.lane.b32.xlu0 %v1662, 120
    %v1783 = vpop.permute.xlu0 %1782
    %1785 = vrot.lane.b32.xlu0 %v1663, 120
    %v1786 = vpop.permute.xlu0 %1785
    %v1788 = vsel %vm585, %v1783, 0
    %v1791 = vsel %vm585, %v1786, 0
    %1793 = vmatprep.subr.bf16.mxu0 0
    %1794 = vmatpush1.bf16.xpose.msra.mxu0 %v1791
    %1795 = vmatprep.subr.bf16.mxu0 0
    %1796 = vmatpush1.bf16.xpose.msra.mxu0 0
    %1797 = vmatprep.subr.bf16.mxu0 0
    %1798 = vmatpush1.bf16.xpose.msra.mxu0 0
    %1799 = vmatprep.subr.bf16.mxu0 0
    %1800 = vmatpush1.bf16.xpose.msra.mxu0 0
    %1801 = vmatprep.subr.bf16.mxu0 0
    %1802 = vmatpush1.bf16.xpose.msra.mxu0 0
    %1803 = vmatprep.subr.bf16.mxu0 0
    %1804 = vmatpush1.bf16.xpose.msra.mxu0 0
    %1805 = vmatprep.subr.bf16.mxu0 0
    %1806 = vmatpush1.bf16.xpose.msra.mxu0 0
    %1807 = vmatprep.subr.bf16.mxu0 0
    %1808 = vmatpush1.bf16.xpose.msra.mxu0 0
    %1809 = vmatprep.subr.bf16.mxu0 0
    %1810 = vmatpush1.bf16.xpose.msra.mxu0 0
    %1811 = vmatprep.subr.bf16.mxu0 0
    %1812 = vmatpush1.bf16.xpose.msra.mxu0 0
    %1813 = vmatprep.subr.bf16.mxu0 0
    %1814 = vmatpush1.bf16.xpose.msra.mxu0 0
    %1815 = vmatprep.subr.bf16.mxu0 0
    %1816 = vmatpush1.bf16.xpose.msra.mxu0 0
    %1817 = vmatprep.subr.bf16.mxu0 0
    %1818 = vmatpush1.bf16.xpose.msra.mxu0 0
    %1819 = vmatprep.subr.bf16.mxu0 0
    %1820 = vmatpush1.bf16.xpose.msra.mxu0 0
    %1821 = vmatprep.subr.bf16.mxu0 0
    %1822 = vmatpush1.bf16.xpose.msra.mxu0 0
    %1823 = vmatprep.subr.bf16.mxu0 0
    %1824 = vmatpush1.bf16.xpose.msra.mxu0 0
    %1825 = vmatprep.mubr.bf16.mxu0 0
    %1826 = vmatmul.mubr.bf16.gmra.mrb[0].mxu0 %v1788
    %v1827 = vpop.f32.mrb[0].mxu0
    %v1828 = vadd.f32 0.0, %v1827
    %v1829 = vpop.f32.mrb[0].mxu0
    %v1830 = vpop.f32.mrb[0].mxu0
    %v1831 = vadd.f32 0.0, %v1830
    %v1832 = vpop.f32.mrb[0].mxu0
    %1833 = vdwg.mxu0
    %v1834 = vmul.f32 %v1828, 0.35355338
    %v1835 = vmul.f32 %v1831, 0.35355338
    %v1836 = vsel %vm635, %v1834, -inf
    %1837 = vmax.xlane.f32.xlu0 %v1836
    %v1838 = vpop.xlane.xlu0 %1837
    %v1839 = vsel %vm635, %v1835, -inf
    %1840 = vmax.xlane.f32.xlu0 %v1839
    %v1841 = vpop.xlane.xlu0 %1840
    %v1842 = vsub.f32 %v1834, %v1838
    %v1843 = vsub.f32 %v1835, %v1841
    %v1844 = vmul.f32 %v1842, 1.442695
    %v1845 = vpow.pop %v1844
    %v1846 = vmul.f32 %v1843, 1.442695
    %v1847 = vpow.pop %v1846
    %v1848 = vsel %vm635, %v1845, 0.0
    %1849 = vadd.xlane.f32.xlu0 %v1848
    %v1850 = vpop.xlane.xlu0 %1849
    %v1851 = vsel %vm635, %v1847, 0.0
    %1852 = vadd.xlane.f32.xlu0 %v1851
    %v1853 = vpop.xlane.xlu0 %1852
    %v1854 = vrcp.pop %v1850
    %v1855 = vmul.f32 %v1845, %v1854
    %v1856 = vrcp.pop %v1853
    %v1857 = vmul.f32 %v1847, %v1856
    %v1858 = vpack.c.bf16 %v1857, %v1855
    %1860 = vrot.lane.b32.xlu0 %v1736, 120
    %v1861 = vpop.permute.xlu0 %1860
    %v1864 = vsel %vm635, %v1858, 0
    %1866 = vmatprep.subr.bf16.mxu0 0
    %1867 = vmatpush1.bf16.msra.mxu0 %v1861
    %1868 = vmatprep.subr.bf16.mxu0 0
    %1869 = vmatpush1.bf16.msra.mxu0 0
    %1870 = vmatprep.subr.bf16.mxu0 0
    %1871 = vmatpush1.bf16.msra.mxu0 0
    %1872 = vmatprep.subr.bf16.mxu0 0
    %1873 = vmatpush1.bf16.msra.mxu0 0
    %1874 = vmatprep.subr.bf16.mxu0 0
    %1875 = vmatpush1.bf16.msra.mxu0 0
    %1876 = vmatprep.subr.bf16.mxu0 0
    %1877 = vmatpush1.bf16.msra.mxu0 0
    %1878 = vmatprep.subr.bf16.mxu0 0
    %1879 = vmatpush1.bf16.msra.mxu0 0
    %1880 = vmatprep.subr.bf16.mxu0 0
    %1881 = vmatpush1.bf16.msra.mxu0 0
    %1882 = vmatprep.subr.bf16.mxu0 0
    %1883 = vmatpush1.bf16.msra.mxu0 0
    %1884 = vmatprep.subr.bf16.mxu0 0
    %1885 = vmatpush1.bf16.msra.mxu0 0
    %1886 = vmatprep.subr.bf16.mxu0 0
    %1887 = vmatpush1.bf16.msra.mxu0 0
    %1888 = vmatprep.subr.bf16.mxu0 0
    %1889 = vmatpush1.bf16.msra.mxu0 0
    %1890 = vmatprep.subr.bf16.mxu0 0
    %1891 = vmatpush1.bf16.msra.mxu0 0
    %1892 = vmatprep.subr.bf16.mxu0 0
    %1893 = vmatpush1.bf16.msra.mxu0 0
    %1894 = vmatprep.subr.bf16.mxu0 0
    %1895 = vmatpush1.bf16.msra.mxu0 0
    %1896 = vmatprep.subr.bf16.mxu0 0
    %1897 = vmatpush1.bf16.msra.mxu0 0
    %1898 = vmatprep.mubr.bf16.mxu0 0
    %1899 = vmatmul.mubr.bf16.gmra.mrb[0].mxu0 %v1864
    %v1900 = vpop.f32.mrb[0].mxu0
    %v1901 = vadd.f32 0.0, %v1900
    %v1902 = vpop.f32.mrb[0].mxu0
    %v1903 = vpop.f32.mrb[0].mxu0
    %v1904 = vadd.f32 0.0, %v1903
    %v1905 = vpop.f32.mrb[0].mxu0
    %1906 = vdwg.mxu0
    %1907 = vrot.lane.b32.xlu0 %v1662, 112
    %v1908 = vpop.permute.xlu0 %1907
    %1909 = vrot.lane.b32.xlu0 %v1663, 112
    %v1910 = vpop.permute.xlu0 %1909
    %v1912 = vsel %vm585, %v1908, 0
    %v1915 = vsel %vm585, %v1910, 0
    %1917 = vmatprep.subr.bf16.mxu0 0
    %1918 = vmatpush1.bf16.xpose.msra.mxu0 %v1915
    %1919 = vmatprep.subr.bf16.mxu0 0
    %1920 = vmatpush1.bf16.xpose.msra.mxu0 0
    %1921 = vmatprep.subr.bf16.mxu0 0
    %1922 = vmatpush1.bf16.xpose.msra.mxu0 0
    %1923 = vmatprep.subr.bf16.mxu0 0
    %1924 = vmatpush1.bf16.xpose.msra.mxu0 0
    %1925 = vmatprep.subr.bf16.mxu0 0
    %1926 = vmatpush1.bf16.xpose.msra.mxu0 0
    %1927 = vmatprep.subr.bf16.mxu0 0
    %1928 = vmatpush1.bf16.xpose.msra.mxu0 0
    %1929 = vmatprep.subr.bf16.mxu0 0
    %1930 = vmatpush1.bf16.xpose.msra.mxu0 0
    %1931 = vmatprep.subr.bf16.mxu0 0
    %1932 = vmatpush1.bf16.xpose.msra.mxu0 0
    %1933 = vmatprep.subr.bf16.mxu0 0
    %1934 = vmatpush1.bf16.xpose.msra.mxu0 0
    %1935 = vmatprep.subr.bf16.mxu0 0
    %1936 = vmatpush1.bf16.xpose.msra.mxu0 0
    %1937 = vmatprep.subr.bf16.mxu0 0
    %1938 = vmatpush1.bf16.xpose.msra.mxu0 0
    %1939 = vmatprep.subr.bf16.mxu0 0
    %1940 = vmatpush1.bf16.xpose.msra.mxu0 0
    %1941 = vmatprep.subr.bf16.mxu0 0
    %1942 = vmatpush1.bf16.xpose.msra.mxu0 0
    %1943 = vmatprep.subr.bf16.mxu0 0
    %1944 = vmatpush1.bf16.xpose.msra.mxu0 0
    %1945 = vmatprep.subr.bf16.mxu0 0
    %1946 = vmatpush1.bf16.xpose.msra.mxu0 0
    %1947 = vmatprep.subr.bf16.mxu0 0
    %1948 = vmatpush1.bf16.xpose.msra.mxu0 0
    %1949 = vmatprep.mubr.bf16.mxu0 0
    %1950 = vmatmul.mubr.bf16.gmra.mrb[0].mxu0 %v1912
    %v1951 = vpop.f32.mrb[0].mxu0
    %v1952 = vadd.f32 0.0, %v1951
    %v1953 = vpop.f32.mrb[0].mxu0
    %v1954 = vpop.f32.mrb[0].mxu0
    %v1955 = vadd.f32 0.0, %v1954
    %v1956 = vpop.f32.mrb[0].mxu0
    %1957 = vdwg.mxu0
    %v1958 = vmul.f32 %v1952, 0.35355338
    %v1959 = vmul.f32 %v1955, 0.35355338
    %v1960 = vsel %vm635, %v1958, -inf
    %1961 = vmax.xlane.f32.xlu0 %v1960
    %v1962 = vpop.xlane.xlu0 %1961
    %v1963 = vsel %vm635, %v1959, -inf
    %1964 = vmax.xlane.f32.xlu0 %v1963
    %v1965 = vpop.xlane.xlu0 %1964
    %v1966 = vsub.f32 %v1958, %v1962
    %v1967 = vsub.f32 %v1959, %v1965
    %v1968 = vmul.f32 %v1966, 1.442695
    %v1969 = vpow.pop %v1968
    %v1970 = vmul.f32 %v1967, 1.442695
    %v1971 = vpow.pop %v1970
    %v1972 = vsel %vm635, %v1969, 0.0
    %1973 = vadd.xlane.f32.xlu0 %v1972
    %v1974 = vpop.xlane.xlu0 %1973
    %v1975 = vsel %vm635, %v1971, 0.0
    %1976 = vadd.xlane.f32.xlu0 %v1975
    %v1977 = vpop.xlane.xlu0 %1976
    %v1978 = vrcp.pop %v1974
    %v1979 = vmul.f32 %v1969, %v1978
    %v1980 = vrcp.pop %v1977
    %v1981 = vmul.f32 %v1971, %v1980
    %v1982 = vpack.c.bf16 %v1981, %v1979
    %1983 = vrot.lane.b32.xlu0 %v1736, 112
    %v1984 = vpop.permute.xlu0 %1983
    %v1987 = vsel %vm635, %v1982, 0
    %1989 = vmatprep.subr.bf16.mxu0 0
    %1990 = vmatpush1.bf16.msra.mxu0 %v1984
    %1991 = vmatprep.subr.bf16.mxu0 0
    %1992 = vmatpush1.bf16.msra.mxu0 0
    %1993 = vmatprep.subr.bf16.mxu0 0
    %1994 = vmatpush1.bf16.msra.mxu0 0
    %1995 = vmatprep.subr.bf16.mxu0 0
    %1996 = vmatpush1.bf16.msra.mxu0 0
    %1997 = vmatprep.subr.bf16.mxu0 0
    %1998 = vmatpush1.bf16.msra.mxu0 0
    %1999 = vmatprep.subr.bf16.mxu0 0
    %2000 = vmatpush1.bf16.msra.mxu0 0
    %2001 = vmatprep.subr.bf16.mxu0 0
    %2002 = vmatpush1.bf16.msra.mxu0 0
    %2003 = vmatprep.subr.bf16.mxu0 0
    %2004 = vmatpush1.bf16.msra.mxu0 0
    %2005 = vmatprep.subr.bf16.mxu0 0
    %2006 = vmatpush1.bf16.msra.mxu0 0
    %2007 = vmatprep.subr.bf16.mxu0 0
    %2008 = vmatpush1.bf16.msra.mxu0 0
    %2009 = vmatprep.subr.bf16.mxu0 0
    %2010 = vmatpush1.bf16.msra.mxu0 0
    %2011 = vmatprep.subr.bf16.mxu0 0
    %2012 = vmatpush1.bf16.msra.mxu0 0
    %2013 = vmatprep.subr.bf16.mxu0 0
    %2014 = vmatpush1.bf16.msra.mxu0 0
    %2015 = vmatprep.subr.bf16.mxu0 0
    %2016 = vmatpush1.bf16.msra.mxu0 0
    %2017 = vmatprep.subr.bf16.mxu0 0
    %2018 = vmatpush1.bf16.msra.mxu0 0
    %2019 = vmatprep.subr.bf16.mxu0 0
    %2020 = vmatpush1.bf16.msra.mxu0 0
    %2021 = vmatprep.mubr.bf16.mxu0 0
    %2022 = vmatmul.mubr.bf16.gmra.mrb[0].mxu0 %v1987
    %v2023 = vpop.f32.mrb[0].mxu0
    %v2024 = vadd.f32 0.0, %v2023
    %v2025 = vpop.f32.mrb[0].mxu0
    %v2026 = vpop.f32.mrb[0].mxu0
    %v2027 = vadd.f32 0.0, %v2026
    %v2028 = vpop.f32.mrb[0].mxu0
    %2029 = vdwg.mxu0
    %2030 = vrot.lane.b32.xlu0 %v1662, 104
    %v2031 = vpop.permute.xlu0 %2030
    %2032 = vrot.lane.b32.xlu0 %v1663, 104
    %v2033 = vpop.permute.xlu0 %2032
    %v2035 = vsel %vm585, %v2031, 0
    %v2038 = vsel %vm585, %v2033, 0
    %2040 = vmatprep.subr.bf16.mxu0 0
    %2041 = vmatpush1.bf16.xpose.msra.mxu0 %v2038
    %2042 = vmatprep.subr.bf16.mxu0 0
    %2043 = vmatpush1.bf16.xpose.msra.mxu0 0
    %2044 = vmatprep.subr.bf16.mxu0 0
    %2045 = vmatpush1.bf16.xpose.msra.mxu0 0
    %2046 = vmatprep.subr.bf16.mxu0 0
    %2047 = vmatpush1.bf16.xpose.msra.mxu0 0
    %2048 = vmatprep.subr.bf16.mxu0 0
    %2049 = vmatpush1.bf16.xpose.msra.mxu0 0
    %2050 = vmatprep.subr.bf16.mxu0 0
    %2051 = vmatpush1.bf16.xpose.msra.mxu0 0
    %2052 = vmatprep.subr.bf16.mxu0 0
    %2053 = vmatpush1.bf16.xpose.msra.mxu0 0
    %2054 = vmatprep.subr.bf16.mxu0 0
    %2055 = vmatpush1.bf16.xpose.msra.mxu0 0
    %2056 = vmatprep.subr.bf16.mxu0 0
    %2057 = vmatpush1.bf16.xpose.msra.mxu0 0
    %2058 = vmatprep.subr.bf16.mxu0 0
    %2059 = vmatpush1.bf16.xpose.msra.mxu0 0
    %2060 = vmatprep.subr.bf16.mxu0 0
    %2061 = vmatpush1.bf16.xpose.msra.mxu0 0
    %2062 = vmatprep.subr.bf16.mxu0 0
    %2063 = vmatpush1.bf16.xpose.msra.mxu0 0
    %2064 = vmatprep.subr.bf16.mxu0 0
    %2065 = vmatpush1.bf16.xpose.msra.mxu0 0
    %2066 = vmatprep.subr.bf16.mxu0 0
    %2067 = vmatpush1.bf16.xpose.msra.mxu0 0
    %2068 = vmatprep.subr.bf16.mxu0 0
    %2069 = vmatpush1.bf16.xpose.msra.mxu0 0
    %2070 = vmatprep.subr.bf16.mxu0 0
    %2071 = vmatpush1.bf16.xpose.msra.mxu0 0
    %2072 = vmatprep.mubr.bf16.mxu0 0
    %2073 = vmatmul.mubr.bf16.gmra.mrb[0].mxu0 %v2035
    %v2074 = vpop.f32.mrb[0].mxu0
    %v2075 = vadd.f32 0.0, %v2074
    %v2076 = vpop.f32.mrb[0].mxu0
    %v2077 = vpop.f32.mrb[0].mxu0
    %v2078 = vadd.f32 0.0, %v2077
    %v2079 = vpop.f32.mrb[0].mxu0
    %2080 = vdwg.mxu0
    %v2081 = vmul.f32 %v2075, 0.35355338
    %v2082 = vmul.f32 %v2078, 0.35355338
    %v2083 = vsel %vm635, %v2081, -inf
    %2084 = vmax.xlane.f32.xlu0 %v2083
    %v2085 = vpop.xlane.xlu0 %2084
    %v2086 = vsel %vm635, %v2082, -inf
    %2087 = vmax.xlane.f32.xlu0 %v2086
    %v2088 = vpop.xlane.xlu0 %2087
    %v2089 = vsub.f32 %v2081, %v2085
    %v2090 = vsub.f32 %v2082, %v2088
    %v2091 = vmul.f32 %v2089, 1.442695
    %v2092 = vpow.pop %v2091
    %v2093 = vmul.f32 %v2090, 1.442695
    %v2094 = vpow.pop %v2093
    %v2095 = vsel %vm635, %v2092, 0.0
    %2096 = vadd.xlane.f32.xlu0 %v2095
    %v2097 = vpop.xlane.xlu0 %2096
    %v2098 = vsel %vm635, %v2094, 0.0
    %2099 = vadd.xlane.f32.xlu0 %v2098
    %v2100 = vpop.xlane.xlu0 %2099
    %v2101 = vrcp.pop %v2097
    %v2102 = vmul.f32 %v2092, %v2101
    %v2103 = vrcp.pop %v2100
    %v2104 = vmul.f32 %v2094, %v2103
    %v2105 = vpack.c.bf16 %v2104, %v2102
    %2106 = vrot.lane.b32.xlu0 %v1736, 104
    %v2107 = vpop.permute.xlu0 %2106
    %v2110 = vsel %vm635, %v2105, 0
    %2112 = vmatprep.subr.bf16.mxu0 0
    %2113 = vmatpush1.bf16.msra.mxu0 %v2107
    %2114 = vmatprep.subr.bf16.mxu0 0
    %2115 = vmatpush1.bf16.msra.mxu0 0
    %2116 = vmatprep.subr.bf16.mxu0 0
    %2117 = vmatpush1.bf16.msra.mxu0 0
    %2118 = vmatprep.subr.bf16.mxu0 0
    %2119 = vmatpush1.bf16.msra.mxu0 0
    %2120 = vmatprep.subr.bf16.mxu0 0
    %2121 = vmatpush1.bf16.msra.mxu0 0
    %2122 = vmatprep.subr.bf16.mxu0 0
    %2123 = vmatpush1.bf16.msra.mxu0 0
    %2124 = vmatprep.subr.bf16.mxu0 0
    %2125 = vmatpush1.bf16.msra.mxu0 0
    %2126 = vmatprep.subr.bf16.mxu0 0
    %2127 = vmatpush1.bf16.msra.mxu0 0
    %2128 = vmatprep.subr.bf16.mxu0 0
    %2129 = vmatpush1.bf16.msra.mxu0 0
    %2130 = vmatprep.subr.bf16.mxu0 0
    %2131 = vmatpush1.bf16.msra.mxu0 0
    %2132 = vmatprep.subr.bf16.mxu0 0
    %2133 = vmatpush1.bf16.msra.mxu0 0
    %2134 = vmatprep.subr.bf16.mxu0 0
    %2135 = vmatpush1.bf16.msra.mxu0 0
    %2136 = vmatprep.subr.bf16.mxu0 0
    %2137 = vmatpush1.bf16.msra.mxu0 0
    %2138 = vmatprep.subr.bf16.mxu0 0
    %2139 = vmatpush1.bf16.msra.mxu0 0
    %2140 = vmatprep.subr.bf16.mxu0 0
    %2141 = vmatpush1.bf16.msra.mxu0 0
    %2142 = vmatprep.subr.bf16.mxu0 0
    %2143 = vmatpush1.bf16.msra.mxu0 0
    %2144 = vmatprep.mubr.bf16.mxu0 0
    %2145 = vmatmul.mubr.bf16.gmra.mrb[0].mxu0 %v2110
    %v2146 = vpop.f32.mrb[0].mxu0
    %v2147 = vadd.f32 0.0, %v2146
    %v2148 = vpop.f32.mrb[0].mxu0
    %v2149 = vpop.f32.mrb[0].mxu0
    %v2150 = vadd.f32 0.0, %v2149
    %v2151 = vpop.f32.mrb[0].mxu0
    %2152 = vdwg.mxu0
    %2155 = vrot.lane.b32.xlu0 %v1901, 8
    %v2156 = vpop.permute.xlu0 %2155
    %2157 = vrot.lane.b32.xlu0 %v1904, 8
    %v2158 = vpop.permute.xlu0 %2157
    %2163 = vrot.lane.b32.xlu0 %v2024, 16
    %v2164 = vpop.permute.xlu0 %2163
    %2165 = vrot.lane.b32.xlu0 %v2027, 16
    %v2166 = vpop.permute.xlu0 %2165
    %2171 = vrot.lane.b32.xlu0 %v2147, 24
    %v2172 = vpop.permute.xlu0 %2171
    %2173 = vrot.lane.b32.xlu0 %v2150, 24
    %v2174 = vpop.permute.xlu0 %2173
    %v2177 = vsel %vm585, %v1775, %v2156
    %v2178 = vsel %vm585, %v1778, %v2158
    %v2179 = vsel %vm635, %v2177, %v2164
    %v2180 = vsel %vm635, %v2178, %v2166
    %v2181 = vsel %vm1104, %v2179, %v2172
    %v2182 = vsel %vm1104, %v2180, %v2174
    %v2183 = vpack.c.bf16 %v2182, %v2181
    %v2185 = vsel %vm412, %v2183, 0
    %2187 = vmatprep.subr.bf16.mxu0 0
    %2188 = vmatpush1.bf16.msra.mxu0 %v1122
    %2189 = vmatprep.subr.bf16.mxu0 0
    %2190 = vmatpush1.bf16.msra.mxu0 %v1123
    %2191 = vmatprep.subr.bf16.mxu0 0
    %2192 = vmatpush1.bf16.msra.mxu0 0
    %2193 = vmatprep.subr.bf16.mxu0 0
    %2194 = vmatpush1.bf16.msra.mxu0 0
    %2195 = vmatprep.subr.bf16.mxu0 0
    %2196 = vmatpush1.bf16.msra.mxu0 0
    %2197 = vmatprep.subr.bf16.mxu0 0
    %2198 = vmatpush1.bf16.msra.mxu0 0
    %2199 = vmatprep.subr.bf16.mxu0 0
    %2200 = vmatpush1.bf16.msra.mxu0 0
    %2201 = vmatprep.subr.bf16.mxu0 0
    %2202 = vmatpush1.bf16.msra.mxu0 0
    %2203 = vmatprep.subr.bf16.mxu0 0
    %2204 = vmatpush1.bf16.msra.mxu0 0
    %2205 = vmatprep.subr.bf16.mxu0 0
    %2206 = vmatpush1.bf16.msra.mxu0 0
    %2207 = vmatprep.subr.bf16.mxu0 0
    %2208 = vmatpush1.bf16.msra.mxu0 0
    %2209 = vmatprep.subr.bf16.mxu0 0
    %2210 = vmatpush1.bf16.msra.mxu0 0
    %2211 = vmatprep.subr.bf16.mxu0 0
    %2212 = vmatpush1.bf16.msra.mxu0 0
    %2213 = vmatprep.subr.bf16.mxu0 0
    %2214 = vmatpush1.bf16.msra.mxu0 0
    %2215 = vmatprep.subr.bf16.mxu0 0
    %2216 = vmatpush1.bf16.msra.mxu0 0
    %2217 = vmatprep.subr.bf16.mxu0 0
    %2218 = vmatpush1.bf16.msra.mxu0 0
    %2219 = vmatprep.mubr.bf16.mxu0 0
    %2220 = vmatmul.mubr.bf16.gmra.mrb[0].mxu0 %v2185
    %v2221 = vpop.f32.mrb[0].mxu0
    %v2222 = vadd.f32 %v1112, %v2221
    %v2223 = vpop.f32.mrb[0].mxu0
    %v2224 = vpop.f32.mrb[0].mxu0
    %v2225 = vadd.f32 %v1112, %v2224
    %v2226 = vpop.f32.mrb[0].mxu0
    %2227 = vdwg.mxu0
    %v2228 = vadd.f32 %v1523, %v2222
    %v2229 = vadd.f32 %v1524, %v2225
    %v2230 = vsel %vm412, %v2228, 0.0
    %2231 = vadd.xlane.f32.xlu0 %v2230
    %v2232 = vpop.xlane.xlu0 %2231
    %v2233 = vsel %vm412, %v2229, 0.0
    %2234 = vadd.xlane.f32.xlu0 %v2233
    %v2235 = vpop.xlane.xlu0 %2234
    %v2236 = vmul.f32 %v2232, %v1178
    %v2237 = vmul.f32 %v2235, %v1178
    %v2238 = vsub.f32 %v2228, %v2236
    %v2239 = vsub.f32 %v2229, %v2237
    %v2240 = vmul.f32 %v2238, %v2238
    %v2241 = vmul.f32 %v2239, %v2239
    %v2242 = vsel %vm412, %v2240, 0.0
    %2243 = vadd.xlane.f32.xlu0 %v2242
    %v2244 = vpop.xlane.xlu0 %2243
    %v2245 = vsel %vm412, %v2241, 0.0
    %2246 = vadd.xlane.f32.xlu0 %v2245
    %v2247 = vpop.xlane.xlu0 %2246
    %v2248 = vmul.f32 %v2244, %v1178
    %v2249 = vmul.f32 %v2247, %v1178
    %v2250 = vadd.f32 %v2248, 1e-05
    %v2251 = vadd.f32 %v2249, 1e-05
    %v2252 = vrsqrt.pop %v2250
    %v2253 = vrsqrt.pop %v2251
    %v2254 = vmul.f32 %v2238, %v2252
    %v2255 = vmul.f32 %v2239, %v2253
    %v2256 = vmul.f32 %v2254, %v1202
    %v2257 = vmul.f32 %v2255, %v1202
    %v2258 = vadd.f32 %v2256, %v1208
    %v2259 = vadd.f32 %v2257, %v1208
    %v2260 = vpack.c.bf16 %v2259, %v2258
    %v2262 = vsel %vm412, %v2260, 0
    %2264 = vmatprep.subr.bf16.mxu0 0
    %2265 = vmatpush1.bf16.msra.mxu0 %v1226
    %2266 = vmatprep.subr.bf16.mxu0 0
    %2267 = vmatpush1.bf16.msra.mxu0 %v1227
    %2268 = vmatprep.subr.bf16.mxu0 0
    %2269 = vmatpush1.bf16.msra.mxu0 0
    %2270 = vmatprep.subr.bf16.mxu0 0
    %2271 = vmatpush1.bf16.msra.mxu0 0
    %2272 = vmatprep.subr.bf16.mxu0 0
    %2273 = vmatpush1.bf16.msra.mxu0 0
    %2274 = vmatprep.subr.bf16.mxu0 0
    %2275 = vmatpush1.bf16.msra.mxu0 0
    %2276 = vmatprep.subr.bf16.mxu0 0
    %2277 = vmatpush1.bf16.msra.mxu0 0
    %2278 = vmatprep.subr.bf16.mxu0 0
    %2279 = vmatpush1.bf16.msra.mxu0 0
    %2280 = vmatprep.subr.bf16.mxu0 0
    %2281 = vmatpush1.bf16.msra.mxu0 0
    %2282 = vmatprep.subr.bf16.mxu0 0
    %2283 = vmatpush1.bf16.msra.mxu0 0
    %2284 = vmatprep.subr.bf16.mxu0 0
    %2285 = vmatpush1.bf16.msra.mxu0 0
    %2286 = vmatprep.subr.bf16.mxu0 0
    %2287 = vmatpush1.bf16.msra.mxu0 0
    %2288 = vmatprep.subr.bf16.mxu0 0
    %2289 = vmatpush1.bf16.msra.mxu0 0
    %2290 = vmatprep.subr.bf16.mxu0 0
    %2291 = vmatpush1.bf16.msra.mxu0 0
    %2292 = vmatprep.subr.bf16.mxu0 0
    %2293 = vmatpush1.bf16.msra.mxu0 0
    %2294 = vmatprep.subr.bf16.mxu0 0
    %2295 = vmatpush1.bf16.msra.mxu0 0
    %2296 = vmatprep.mubr.bf16.mxu0 0
    %2297 = vmatmul.mubr.bf16.gmra.mrb[0].mxu0 %v2262
    %v2298 = vpop.f32.mrb[0].mxu0
    %v2299 = vadd.f32 %v1216, %v2298
    %v2300 = vpop.f32.mrb[0].mxu0
    %v2301 = vpop.f32.mrb[0].mxu0
    %v2302 = vadd.f32 %v1216, %v2301
    %v2303 = vpop.f32.mrb[0].mxu0
    %2304 = vdwg.mxu0
    %v2305 = vmax.f32 %v2299, 0.0
    %v2306 = vmax.f32 %v2302, 0.0
    %v2307 = vpack.c.bf16 %v2306, %v2305
    %v2309 = vsel %vm250, %v2307, 0
    %2311 = vmatprep.subr.bf16.mxu0 0
    %2312 = vmatpush1.bf16.msra.mxu0 %v1299
    %2313 = vmatprep.subr.bf16.mxu0 0
    %2314 = vmatpush1.bf16.msra.mxu0 %v1300
    %2315 = vmatprep.subr.bf16.mxu0 0
    %2316 = vmatpush1.bf16.msra.mxu0 %v1301
    %2317 = vmatprep.subr.bf16.mxu0 0
    %2318 = vmatpush1.bf16.msra.mxu0 %v1302
    %2319 = vmatprep.subr.bf16.mxu0 0
    %2320 = vmatpush1.bf16.msra.mxu0 0
    %2321 = vmatprep.subr.bf16.mxu0 0
    %2322 = vmatpush1.bf16.msra.mxu0 0
    %2323 = vmatprep.subr.bf16.mxu0 0
    %2324 = vmatpush1.bf16.msra.mxu0 0
    %2325 = vmatprep.subr.bf16.mxu0 0
    %2326 = vmatpush1.bf16.msra.mxu0 0
    %2327 = vmatprep.subr.bf16.mxu0 0
    %2328 = vmatpush1.bf16.msra.mxu0 0
    %2329 = vmatprep.subr.bf16.mxu0 0
    %2330 = vmatpush1.bf16.msra.mxu0 0
    %2331 = vmatprep.subr.bf16.mxu0 0
    %2332 = vmatpush1.bf16.msra.mxu0 0
    %2333 = vmatprep.subr.bf16.mxu0 0
    %2334 = vmatpush1.bf16.msra.mxu0 0
    %2335 = vmatprep.subr.bf16.mxu0 0
    %2336 = vmatpush1.bf16.msra.mxu0 0
    %2337 = vmatprep.subr.bf16.mxu0 0
    %2338 = vmatpush1.bf16.msra.mxu0 0
    %2339 = vmatprep.subr.bf16.mxu0 0
    %2340 = vmatpush1.bf16.msra.mxu0 0
    %2341 = vmatprep.subr.bf16.mxu0 0
    %2342 = vmatpush1.bf16.msra.mxu0 0
    %2343 = vmatprep.mubr.bf16.mxu0 0
    %2344 = vmatmul.mubr.bf16.gmra.mrb[0].mxu0 %v2309
    %v2345 = vpop.f32.mrb[0].mxu0
    %v2346 = vadd.f32 %v1281, %v2345
    %v2347 = vpop.f32.mrb[0].mxu0
    %v2348 = vpop.f32.mrb[0].mxu0
    %v2349 = vadd.f32 %v1281, %v2348
    %v2350 = vpop.f32.mrb[0].mxu0
    %2351 = vdwg.mxu0
    %v2352 = vadd.f32 %v2258, %v2346
    %v2353 = vadd.f32 %v2259, %v2349
    %v2354 = vsel %vm412, %v2352, 0.0
    %2355 = vadd.xlane.f32.xlu0 %v2354
    %v2356 = vpop.xlane.xlu0 %2355
    %v2357 = vsel %vm412, %v2353, 0.0
    %2358 = vadd.xlane.f32.xlu0 %v2357
    %v2359 = vpop.xlane.xlu0 %2358
    %v2360 = vmul.f32 %v2356, %v1178
    %v2361 = vmul.f32 %v2359, %v1178
    %v2362 = vsub.f32 %v2352, %v2360
    %v2363 = vsub.f32 %v2353, %v2361
    %v2364 = vmul.f32 %v2362, %v2362
    %v2365 = vmul.f32 %v2363, %v2363
    %v2366 = vsel %vm412, %v2364, 0.0
    %2367 = vadd.xlane.f32.xlu0 %v2366
    %v2368 = vpop.xlane.xlu0 %2367
    %v2369 = vsel %vm412, %v2365, 0.0
    %2370 = vadd.xlane.f32.xlu0 %v2369
    %v2371 = vpop.xlane.xlu0 %2370
    %v2372 = vmul.f32 %v2368, %v1178
    %v2373 = vmul.f32 %v2371, %v1178
    %v2374 = vadd.f32 %v2372, 1e-05
    %v2375 = vadd.f32 %v2373, 1e-05
    %v2376 = vrsqrt.pop %v2374
    %v2377 = vrsqrt.pop %v2375
    %v2378 = vmul.f32 %v2362, %v2376
    %v2379 = vmul.f32 %v2363, %v2377
    %v2380 = vmul.f32 %v2378, %v1382
    %v2381 = vmul.f32 %v2379, %v1382
    %v2382 = vadd.f32 %v2380, %v1388
    %v2383 = vadd.f32 %v2381, %v1388
    %v2384 = vsel %vm412, %v2382, 0.0
    %2385 = vadd.xlane.f32.xlu0 %v2384
    %v2386 = vpop.xlane.xlu0 %2385
    %v2387 = vsel %vm412, %v2383, 0.0
    %2388 = vadd.xlane.f32.xlu0 %v2387
    %v2389 = vpop.xlane.xlu0 %2388
    %v2390 = vmul.f32 %v2386, %v1178
    %v2391 = vmul.f32 %v2389, %v1178
    %v2392 = vsub.f32 %v2382, %v2390
    %v2393 = vsub.f32 %v2383, %v2391
    %v2394 = vmul.f32 %v2392, %v2392
    %v2395 = vmul.f32 %v2393, %v2393
    %v2396 = vsel %vm412, %v2394, 0.0
    %2397 = vadd.xlane.f32.xlu0 %v2396
    %v2398 = vpop.xlane.xlu0 %2397
    %v2399 = vsel %vm412, %v2395, 0.0
    %2400 = vadd.xlane.f32.xlu0 %v2399
    %v2401 = vpop.xlane.xlu0 %2400
    %v2402 = vmul.f32 %v2398, %v1178
    %v2403 = vmul.f32 %v2401, %v1178
    %v2404 = vadd.f32 %v2402, 1e-05
    %v2405 = vadd.f32 %v2403, 1e-05
    %v2406 = vrsqrt.pop %v2404
    %v2407 = vrsqrt.pop %v2405
    %v2408 = vmul.f32 %v2392, %v2406
    %v2409 = vmul.f32 %v2393, %v2407
    %v2410 = vmul.f32 %v2408, %v1420
    %v2411 = vmul.f32 %v2409, %v1420
    %v2412 = vadd.f32 %v2410, %v1426
    %v2413 = vadd.f32 %v2411, %v1426
    %v2414 = vpack.c.bf16 %v2413, %v2412
    %2415 = vxpose.xlu0.c.b16.start [1/8] %v2414, 128
    %2416 = vxpose.xlu0.c.b16.cont [2/8] 0, 128
    %2417 = vxpose.xlu0.c.b16.cont [3/8] 0, 128
    %2418 = vxpose.xlu0.c.b16.cont [4/8] 0, 128
    %2419 = vxpose.xlu0.c.b16.cont [5/8] 0, 128
    %2420 = vxpose.xlu0.c.b16.cont [6/8] 0, 128
    %2421 = vxpose.xlu0.c.b16.cont [7/8] 0, 128
    %2422 = vxpose.xlu0.c.b16.end [8/8] 0, 128
    %v2423 = vpop.trf.xlu0
    %v2424 = vpop.trf.xlu0
    %v2425 = vpop.trf.xlu0
    %v2426 = vpop.trf.xlu0
    %v2427 = vpop.trf.xlu0
    %v2428 = vpop.trf.xlu0
    %v2429 = vpop.trf.xlu0
    %v2430 = vpop.trf.xlu0
    %v2432 = vsel %vm635, %v2423, 0
    %v2435 = vsel %vm635, %v2424, 0
    %2437 = vmatprep.subr.bf16.mxu0 %v1453
    %2438 = vmatpush1.bf16.msra.mxu0 %v1452
    %2439 = vmatprep.subr.bf16.mxu0 0
    %2440 = vmatpush1.bf16.msra.mxu0 0
    %2441 = vmatprep.subr.bf16.mxu0 0
    %2442 = vmatpush1.bf16.msra.mxu0 0
    %2443 = vmatprep.subr.bf16.mxu0 0
    %2444 = vmatpush1.bf16.msra.mxu0 0
    %2445 = vmatprep.subr.bf16.mxu0 0
    %2446 = vmatpush1.bf16.msra.mxu0 0
    %2447 = vmatprep.subr.bf16.mxu0 0
    %2448 = vmatpush1.bf16.msra.mxu0 0
    %2449 = vmatprep.subr.bf16.mxu0 0
    %2450 = vmatpush1.bf16.msra.mxu0 0
    %2451 = vmatprep.subr.bf16.mxu0 0
    %2452 = vmatpush1.bf16.msra.mxu0 0
    %2453 = vmatprep.subr.bf16.mxu0 0
    %2454 = vmatpush1.bf16.msra.mxu0 0
    %2455 = vmatprep.subr.bf16.mxu0 0
    %2456 = vmatpush1.bf16.msra.mxu0 0
    %2457 = vmatprep.subr.bf16.mxu0 0
    %2458 = vmatpush1.bf16.msra.mxu0 0
    %2459 = vmatprep.subr.bf16.mxu0 0
    %2460 = vmatpush1.bf16.msra.mxu0 0
    %2461 = vmatprep.subr.bf16.mxu0 0
    %2462 = vmatpush1.bf16.msra.mxu0 0
    %2463 = vmatprep.subr.bf16.mxu0 0
    %2464 = vmatpush1.bf16.msra.mxu0 0
    %2465 = vmatprep.subr.bf16.mxu0 0
    %2466 = vmatpush1.bf16.msra.mxu0 0
    %2467 = vmatprep.subr.bf16.mxu0 0
    %2468 = vmatpush1.bf16.msra.mxu0 0
    %2469 = vmatprep.mubr.bf16.mxu0 0
    %2470 = vmatmul.mubr.bf16.gmra.mrb[0].mxu0 %v2432
    %v2471 = vpop.f32.mrb[0].mxu0
    %v2472 = vadd.f32 0.0, %v2471
    %v2473 = vpop.f32.mrb[0].mxu0
    %v2474 = vadd.f32 0.0, %v2473
    %v2475 = vpop.f32.mrb[0].mxu0
    %v2476 = vadd.f32 0.0, %v2475
    %v2477 = vpop.f32.mrb[0].mxu0
    %v2478 = vadd.f32 0.0, %v2477
    %2479 = vmatprep.mubr.bf16.mxu0 0
    %2480 = vmatmul.mubr.bf16.gmra.mrb[0].mxu0 %v2435
    %v2481 = vpop.f32.mrb[0].mxu0
    %v2482 = vadd.f32 0.0, %v2481
    %v2483 = vpop.f32.mrb[0].mxu0
    %v2484 = vadd.f32 0.0, %v2483
    %v2485 = vpop.f32.mrb[0].mxu0
    %v2486 = vadd.f32 0.0, %v2485
    %v2487 = vpop.f32.mrb[0].mxu0
    %v2488 = vadd.f32 0.0, %v2487
    %2489 = vdwg.mxu0
    %s2490 = scalar_lea.vmem [#allocation17], 64
    %2491 = vst [vmem:[%s2490] sm:$0xff] %v2472
    %2492 = vst [vmem:[%s2490 + $0x8] sm:$0xff] %v2474
    %2493 = vst [vmem:[%s2490 + $0x10] sm:$0xff] %v2476
    %2494 = vst [vmem:[%s2490 + $0x18] sm:$0xff] %v2478
    %2495 = vst [vmem:[%s2490 + $0x20] sm:$0xff] %v2482
    %2496 = vst [vmem:[%s2490 + $0x28] sm:$0xff] %v2484
    %2497 = vst [vmem:[%s2490 + $0x30] sm:$0xff] %v2486
    %2498 = vst [vmem:[%s2490 + $0x38] sm:$0xff] %v2488
    // Predicated region
    $region110: #{tpu_custom_call.1} parent=1 // pred_check
      _
    $region111: #{tpu_custom_call.1} parent=1 // pred_check_branch
      %2500 = sbr.rel (0) target = $region113
    $region112: #{tpu_custom_call.1} parent=1 // pred_region
      %s2502 = ssub.s32 2048, 2048
      %2503 = vsyncadd [#allocation4], %s2502
      %s2504 = sshll.u32 [#allocation17], 4
      %s2505 = int_to_ptr.vmem [resolvable:$true] %s2504
      %2510 = dma.vmem_to_hbm [thread:$0]  %s2505, 2048, %s18, [#allocation4], 256, 256, 16
    $region113: #{tpu_custom_call.1} parent=1 // pred_fallthru
      _
    // Predicated region
    $region114: #{tpu_custom_call.1} parent=1 // pred_check
      _
    $region115: #{tpu_custom_call.1} parent=1 // pred_check_branch
      %2512 = sbr.rel (0) target = $region117
    $region116: #{tpu_custom_call.1} parent=1 // pred_region
      %2513 = dma.done [#allocation4], 2048
    $region117: #{tpu_custom_call.1} parent=1 // pred_fallthru
      _
    %2514 = vsyncpa [#allocation3], 1
    %2515 = vsyncpa [#allocation6], 1
    %2516 = vsyncpa [#allocation9], 1
    %2517 = vsyncpa [#allocation12], 1
    %2518 = vsyncpa [#allocation15], 1
    %2519 = vsyncpa [#allocation4], 1

</llo_original>
